<compile_context>
chip_gen: v7x
topology: tpu7x:2x2x1
jax: 0.10.0
libtpu: 0.0.40
codegen_flags: <defaults>
</compile_context>

<pallas_src>
import math

import jax
import jax.numpy as jnp
from jax.experimental import pallas as pl
from jax.experimental.pallas import tpu as pltpu

VAR_CENTER = 0.1
VAR_SIZE = 0.2

# ----------------------------------------------------------------------------
# Pallas kernel 1: fused decode + pairwise IoU + metric assembly
#   Per grid step (image n, lane-block j):
#     priors/loc (4, LB) coordinate-major -> in-kernel SSD decode + anchor corners,
#     GT (G,4) xyxy + per-GT validity + per-GT class score (G, LB)
#     -> cls_metric (G, LB) and loc_metric (G, LB) written directly (raw IoU never
#        touches HBM).
# ----------------------------------------------------------------------------
def _metric_kernel(gt_ref, valid_ref, pri_ref, loc_ref, cls_ref, clsm_ref, locm_ref):
    gx1 = gt_ref[:, 0:1]
    gy1 = gt_ref[:, 1:2]
    gx2 = gt_ref[:, 2:3]
    gy2 = gt_ref[:, 3:4]
    area_g = (gx2 - gx1) * (gy2 - gy1)                       # (G,1)

    pcx = pri_ref[0:1, :]
    pcy = pri_ref[1:2, :]
    pw = pri_ref[2:3, :]
    ph = pri_ref[3:4, :]
    lcx = loc_ref[0:1, :]
    lcy = loc_ref[1:2, :]
    lw = loc_ref[2:3, :]
    lh = loc_ref[3:4, :]

    # anchor corners (point_form) computed in-register
    ax1 = pcx - 0.5 * pw
    ay1 = pcy - 0.5 * ph
    ax2 = pcx + 0.5 * pw
    ay2 = pcy + 0.5 * ph

    # SSD decode fused in-kernel (exp on the EUP slot; no decoded array in HBM)
    dcx = pcx + lcx * VAR_CENTER * pw
    dcy = pcy + lcy * VAR_CENTER * ph
    dw = pw * jnp.exp(lw * VAR_SIZE)
    dh = ph * jnp.exp(lh * VAR_SIZE)
    dx1 = dcx - 0.5 * dw
    dy1 = dcy - 0.5 * dh
    dx2 = dcx + 0.5 * dw
    dy2 = dcy + 0.5 * dh

    def _iou(bx1, by1, bx2, by2):
        iw = jnp.maximum(jnp.minimum(gx2, bx2) - jnp.maximum(gx1, bx1), 0.0)
        ih = jnp.maximum(jnp.minimum(gy2, by2) - jnp.maximum(gy1, by1), 0.0)
        inter = iw * ih
        area_b = (bx2 - bx1) * (by2 - by1)
        union = jnp.maximum(area_g + area_b - inter, 1e-10)
        # approx reciprocal -> EUP slot instead of a multi-step VPU Newton divide
        return inter * pl.reciprocal(union, approx=True)

    validc = valid_ref[...]                                  # (G,1)
    # "localize to classify": decoded-box IoU, gated by GT validity
    clsm_ref[...] = _iou(dx1, dy1, dx2, dy2) * validc
    # "classify to localize": anchor IoU * class score (validity already folded into cls)
    locm_ref[...] = _iou(ax1, ay1, ax2, ay2) * cls_ref[...]


def fused_decode_iou_metrics(gt, validf, priors, loc_data, cls_score, lane_block=None):
    """gt (N,G,4) xyxy, validf (N,G), priors (P,4) cxcywh, loc_data (N,P,4), cls_score (N,G,P)
    -> (cls_metric, loc_metric), each (N,G,P)."""
    N, G, _ = gt.shape
    P = priors.shape[0]
    if lane_block is None:
        lane_block = P if P <= 2048 else 2048
        # v7x: keep >= 2 grid steps along a "parallel" axis so both TensorCores get work
        if N < 2 and lane_block == P and P >= 256 and (P // 2) % 128 == 0:
            lane_block = P // 2
    assert P % lane_block == 0 and lane_block % 128 == 0
    # TODO(synk): when N is large and P is modest, block several images per grid step to
    # amortize the ~0.35us per-step overhead.

    pri_cm = priors.T.astype(jnp.float32)                        # (4, P) cxcywh
    loc_cm = jnp.swapaxes(loc_data, 1, 2).astype(jnp.float32)    # (N, 4, P) (small transpose)

    clsm, locm = pl.pallas_call(
        _metric_kernel,
        out_shape=(jax.ShapeDtypeStruct((N, G, P), jnp.float32),
                   jax.ShapeDtypeStruct((N, G, P), jnp.float32)),
        grid=(N, P // lane_block),
        in_specs=[
            pl.BlockSpec((None, G, 4), lambda n, j: (n, 0, 0)),
            pl.BlockSpec((None, G, 1), lambda n, j: (n, 0, 0)),
            pl.BlockSpec((4, lane_block), lambda n, j: (0, j)),
            pl.BlockSpec((None, 4, lane_block), lambda n, j: (n, 0, j)),
            pl.BlockSpec((None, G, lane_block), lambda n, j: (n, 0, j)),
        ],
        out_specs=(pl.BlockSpec((None, G, lane_block), lambda n, j: (n, 0, j)),
                   pl.BlockSpec((None, G, lane_block), lambda n, j: (n, 0, j))),
        compiler_params=pltpu.CompilerParams(
            dimension_semantics=("parallel", "parallel")),
    )(gt.astype(jnp.float32), validf[..., None].astype(jnp.float32),
      pri_cm, loc_cm, cls_score.astype(jnp.float32))
    return clsm, locm


# ----------------------------------------------------------------------------
# Pallas kernel 2: fused loss reduction
#   Generalized Focal Loss sum + Balanced-L1 weighted sum from lane-dense (-1,128) bf16
#   slabs, f32 accumulation into small (8,128) resident output blocks, 2-way parallel
#   leading grid axis (v7x megacore), partials summed in the wrapper.
# ----------------------------------------------------------------------------
_BL1_ALPHA = 0.5
_BL1_GAMMA = 1.5
_BL1_BETA = 0.11
_BL1_B = math.exp(_BL1_GAMMA / _BL1_ALPHA) - 1.0
_BL1_C = _BL1_GAMMA / _BL1_B - _BL1_ALPHA * _BL1_BETA

_NC = 2   # leading "parallel" grid axis (both v7x TensorCores; harmless loop on v5e/v6e)


def _fused_loss_kernel(gx_ref, gt_ref, bp_ref, bt_ref, bw_ref, loss_c_ref, loss_l_ref):
    i = pl.program_id(1)

    @pl.when(i == 0)
    def _():
        loss_c_ref[...] = jnp.zeros_like(loss_c_ref)
        loss_l_ref[...] = jnp.zeros_like(loss_l_ref)

    # ---- Generalized Focal (quality focal): BCE-with-logits * (p - t)^2 ----
    # Shared transcendentals: one exp, one log, one approx reciprocal per element.
    # NOTE: the (logit=0, target=0.5) padding is loss-neutral ONLY because of the
    # (p - t)^2 modulation of this quality-focal form (use_focal=False path).
    x = gx_ref[...].astype(jnp.float32)
    t = gt_ref[...].astype(jnp.float32)
    e = jnp.exp(-jnp.abs(x))
    r = pl.reciprocal(1.0 + e, approx=True)
    p = jnp.where(x >= 0.0, r, e * r)                         # sigmoid(x)
    bce = jnp.maximum(x, 0.0) - x * t + jnp.log1p(e)
    diff = p - t
    g = bce * (diff * diff)                                   # (brg, 128)
    loss_c_ref[...] += g.reshape(-1, 8, 128).sum(axis=0)

    # ---- Balanced-L1 (Libra R-CNN), un-normalized weights (normalized in wrapper) ----
    d = jnp.abs(bp_ref[...].astype(jnp.float32) - bt_ref[...].astype(jnp.float32))
    small = (_BL1_ALPHA / _BL1_B) * (_BL1_B * d + 1.0) * jnp.log(
        _BL1_B * d / _BL1_BETA + 1.0) - _BL1_ALPHA * d
    large = _BL1_GAMMA * d + _BL1_C
    b = jnp.where(d < _BL1_BETA, small, large) * bw_ref[...].astype(jnp.float32)
    loss_l_ref[...] += b.reshape(-1, 8, 128).sum(axis=0)


def _to_lane_dense(x, fill, dtype):
    """Flatten, cast, reshape to (-1, 128), padding with a loss-neutral fill value."""
    flat = x.reshape(-1).astype(dtype)
    n = flat.shape[0]
    target = ((n + 127) // 128) * 128
    if target != n:
        flat = jnp.concatenate([flat, jnp.full((target - n,), fill, dtype)])
    return flat.reshape(-1, 128)


def _pad_rows(x2d, rows_multiple, fill):
    r = x2d.shape[0]
    target = ((r + rows_multiple - 1) // rows_multiple) * rows_multiple
    if target == r:
        return x2d
    pad = jnp.full((target - r, x2d.shape[1]), fill, x2d.dtype)
    return jnp.concatenate([x2d, pad], axis=0)


def fused_loss_sums(gfl_logits, gfl_targets, bl1_pred, bl1_tgt, bl1_w,
                    max_block_rows=2048, in_dtype=jnp.bfloat16):
    """Returns (gfocal_sum, balanced_l1_weighted_sum(un-normalized)) from ONE pallas_call."""
    # GFL padding: logit 0 / target 0.5 -> (p-t)^2 == 0 -> zero loss (quality-focal only).
    gx = _to_lane_dense(gfl_logits, 0.0, in_dtype)
    gt = _to_lane_dense(gfl_targets, 0.5, in_dtype)
    # BL1 padding: weight 0 -> zero loss contribution.
    bp = _to_lane_dense(bl1_pred, 0.0, in_dtype)
    bt = _to_lane_dense(bl1_tgt, 0.0, in_dtype)
    bw = _to_lane_dense(bl1_w, 0.0, in_dtype)

    # max_block_rows=2048 keeps the working set well under v7x's smaller (64 MiB) VMEM.
    T = max(1, -(-max(gx.shape[0], bp.shape[0]) // (_NC * max_block_rows)))
    rm = 8 * _NC * T
    gx = _pad_rows(gx, rm, 0.0)
    gt = _pad_rows(gt, rm, 0.5)
    bp = _pad_rows(bp, rm, 0.0)
    bt = _pad_rows(bt, rm, 0.0)
    bw = _pad_rows(bw, rm, 0.0)
    brg = gx.shape[0] // (_NC * T)
    brb = bp.shape[0] // (_NC * T)

    out_c, out_l = pl.pallas_call(
        _fused_loss_kernel,
        out_shape=(jax.ShapeDtypeStruct((_NC, 8, 128), jnp.float32),
                   jax.ShapeDtypeStruct((_NC, 8, 128), jnp.float32)),
        grid=(_NC, T),
        in_specs=[
            pl.BlockSpec((brg, 128), lambda c, i: (c * T + i, 0)),
            pl.BlockSpec((brg, 128), lambda c, i: (c * T + i, 0)),
            pl.BlockSpec((brb, 128), lambda c, i: (c * T + i, 0)),
            pl.BlockSpec((brb, 128), lambda c, i: (c * T + i, 0)),
            pl.BlockSpec((brb, 128), lambda c, i: (c * T + i, 0)),
        ],
        out_specs=(pl.BlockSpec((None, 8, 128), lambda c, i: (c, 0, 0)),
                   pl.BlockSpec((None, 8, 128), lambda c, i: (c, 0, 0))),
        compiler_params=pltpu.CompilerParams(
            dimension_semantics=("parallel", "arbitrary")),
    )(gx, gt, bp, bt, bw)
    # tiny final cross-core / cross-lane reduce in XLA (2 * 1024 elements)
    return jnp.sum(out_c), jnp.sum(out_l)


# ----------------------------------------------------------------------------
# Plain-JAX box utilities (glue)
# ----------------------------------------------------------------------------
def point_form(priors):
    """cxcywh -> xyxy."""
    return jnp.concatenate(
        [priors[:, :2] - priors[:, 2:] / 2.0, priors[:, :2] + priors[:, 2:] / 2.0],
        axis=-1,
    )


def encode(matched_xyxy, priors):
    """SSD encode: xyxy GT (M,4) + cxcywh priors (M,4) -> regression targets (M,4)."""
    g_cxcy = (matched_xyxy[:, :2] + matched_xyxy[:, 2:]) / 2.0 - priors[:, :2]
    g_cxcy = g_cxcy / (VAR_CENTER * priors[:, 2:])
    g_wh = jnp.log(
        jnp.maximum(matched_xyxy[:, 2:] - matched_xyxy[:, :2], 1e-8) / priors[:, 2:]
    ) / VAR_SIZE
    return jnp.concatenate([g_cxcy, g_wh], axis=-1)


# ----------------------------------------------------------------------------
# mutual_match (MutualGuide algorithm), fully batched over N
# ----------------------------------------------------------------------------
def _assign(metric, topk):
    """Keep best-GT per anchor, mark top-k anchors per GT as positives (+3). metric: (N,G,P)."""
    best_per_anchor = jnp.max(metric, axis=1, keepdims=True)        # (N,1,P)
    metric = jnp.where(metric >= best_per_anchor, metric, 0.0)
    # TPU-native partial-reduce top-k (no full sort over the prior axis).
    # NOTE: value-threshold selection (>= kth) can mark more than topk anchors on ties;
    # this is a small behavioral deviation from index-based torch.topk selection.
    k = min(topk, metric.shape[-1])
    kth = jax.lax.approx_max_k(metric, k)[0][..., -1:]              # (N,G,1)
    pos = (metric >= kth) & (metric > 0.0)
    metric = metric + 3.0 * pos.astype(jnp.float32)
    best_gt = jnp.argmax(metric, axis=1)                            # (N,P)
    best_val = jnp.max(metric, axis=1)                              # (N,P)
    return best_gt, best_val


def mutual_match_batched(gt_boxes, gt_labels, gt_valid, priors, loc_data, conf_data, topk=9):
    N, G, _ = gt_boxes.shape
    C = conf_data.shape[-1]

    # zero-out padded GT so degenerate boxes cannot produce bogus IoU
    validf = gt_valid.astype(jnp.float32)                           # (N,G)
    gt_safe = jnp.where(gt_valid[..., None], gt_boxes, 0.0).astype(jnp.float32)

    # class score per (GT, prior) via one-hot contraction on the MXU (no gather/transpose
    # of the (N,P,C) logits); validity folded into the one-hot.
    onehot = jax.nn.one_hot(gt_labels, C, dtype=jnp.float32) * validf[..., None]   # (N,G,C)
    cls_score = jnp.einsum("ngc,npc->ngp", onehot,
                           jax.nn.sigmoid(conf_data.astype(jnp.float32)),
                           preferred_element_type=jnp.float32)      # (N,G,P)

    # fused decode + IoU + metric kernel
    cls_metric, loc_metric = fused_decode_iou_metrics(
        gt_safe, validf, priors, loc_data, cls_score)               # (N,G,P) each

    gt_c, val_c = _assign(cls_metric, topk)
    gt_l, val_l = _assign(loc_metric, topk)

    # NOTE: anchors whose metrics are all zero argmax to GT slot 0; they are filtered
    # downstream by the overlap_t <= 1.0 background mask (as in the +3 offset scheme).
    conf_t = jnp.take_along_axis(gt_labels, gt_c, axis=1) + 1       # (N,P), background == 0
    overlap_t = val_c                                               # (N,P)
    loc_t = jnp.take_along_axis(gt_safe, gt_l[..., None], axis=1)   # (N,P,4)
    pred_t = val_l                                                  # (N,P)
    return loc_t, conf_t.astype(jnp.int32), overlap_t, pred_t


# ----------------------------------------------------------------------------
# DetectionLoss.forward (mutual_guide=True, use_focal=False)
# ----------------------------------------------------------------------------
def detection_loss(loc_data, conf_data, priors, gt_boxes, gt_labels, gt_valid):
    N, P, C = conf_data.shape
    priors = priors.astype(jnp.float32)
    priors_xyxy = point_form(priors)

    loc_t, conf_t, overlap_t, pred_t = mutual_match_batched(
        gt_boxes, gt_labels, gt_valid, priors, loc_data, conf_data)

    # ---- localization loss (Balanced L1, weight-masked instead of boolean gather) ----
    pos = pred_t >= 3.0                                             # (N,P)
    w = jnp.maximum(pred_t - 3.0, 0.0)                              # zero on negatives
    wsum4 = 4.0 * jnp.sum(w)                                        # torch sums 4 identical cols
    # avoid log(0) on never-used rows: substitute the anchor itself (loss is zero-weighted)
    loc_t_safe = jnp.where(pos[..., None], loc_t, priors_xyxy[None])
    priors_tiled = jnp.tile(priors, (N, 1))                         # (N*P,4)
    enc_t = encode(loc_t_safe.reshape(-1, 4), priors_tiled)         # (N*P,4)
    weights4 = jnp.broadcast_to(w.reshape(-1, 1), (N * P, 4))       # un-normalized

    # ---- classification targets (Generalized Focal with IoU-quality scores) ----
    neg = overlap_t <= 1.0
    conf_t = jnp.where(neg, 0, conf_t)
    batch_label = jax.nn.one_hot(conf_t, C + 1, dtype=jnp.float32)[..., 1:]   # (N,P,C)
    score = jnp.maximum(overlap_t - 3.0, 0.0)
    q_targets = batch_label * score[..., None]

    # ---- single fused Pallas reduction for both losses (bf16 streams, f32 accum) ----
    raw_c, raw_l = fused_loss_sums(
        conf_data.reshape(-1, C), q_targets.reshape(-1, C),
        loc_data.reshape(-1, 4), enc_t, weights4)

    loss_l = jnp.where(wsum4 > 0.0, raw_l / jnp.maximum(wsum4, 1e-12), 0.0)
    num_pos = jnp.maximum(jnp.sum((q_targets > 0.0).astype(jnp.float32)), 1.0)
    return {"loss_l": loss_l, "loss_c": raw_c / num_pos}


detection_loss_jit = jax.jit(detection_loss)


# ----------------------------------------------------------------------------
# Example
# ----------------------------------------------------------------------------
def make_priors(grid=16, scales=(0.10, 0.18)):
    xs = (jnp.arange(grid, dtype=jnp.float32) + 0.5) / grid
    cy, cx = jnp.meshgrid(xs, xs, indexing="ij")
    cx = cx.reshape(-1)
    cy = cy.reshape(-1)
    pri = []
    for s in scales:
        wh = jnp.full_like(cx, s)
        pri.append(jnp.stack([cx, cy, wh, wh], axis=-1))
    return jnp.concatenate(pri, axis=0)  # (grid*grid*len(scales), 4) cxcywh


if __name__ == "__main__":
    key = jax.random.PRNGKey(0)
    N, P, C, G = 2, 512, 8, 8

    priors = make_priors(grid=16, scales=(0.10, 0.18))
    assert priors.shape == (P, 4)

    k1, k2, k3, k4, k5 = jax.random.split(key, 5)
    loc_data = 0.1 * jax.random.normal(k1, (N, P, 4), dtype=jnp.float32)
    conf_data = jax.random.normal(k2, (N, P, C), dtype=jnp.float32)

    centers = 0.2 + 0.6 * jax.random.uniform(k3, (N, G, 2), dtype=jnp.float32)
    sizes = 0.10 + 0.20 * jax.random.uniform(k4, (N, G, 2), dtype=jnp.float32)
    gt_boxes = jnp.concatenate(
        [jnp.clip(centers - sizes / 2.0, 0.0, 1.0),
         jnp.clip(centers + sizes / 2.0, 0.0, 1.0)], axis=-1)   # (N,G,4) xyxy
    gt_labels = jax.random.randint(k5, (N, G), 0, C, dtype=jnp.int32)
    gt_valid = jnp.stack(
        [jnp.arange(G) < 3, jnp.arange(G) < 5], axis=0)          # 3 and 5 real objects

    result = detection_loss_jit(loc_data, conf_data, priors, gt_boxes, gt_labels, gt_valid)
    result = jax.block_until_ready(result)

    ll = float(result["loss_l"])
    lc = float(result["loss_c"])
    assert math.isfinite(ll) and math.isfinite(lc), (ll, lc)
    print("KERNEL_OK")
</pallas_src>

<mosaic_0001>
module attributes {stable_mosaic.version = 11 : i64} {
  func.func @_metric_kernel(%arg0: i32, %arg1: i32, %arg2: memref<1x8x4xf32, #tpu.memory_space<vmem>>, %arg3: memref<1x8x1xf32, #tpu.memory_space<vmem>>, %arg4: memref<4x512xf32, #tpu.memory_space<vmem>>, %arg5: memref<1x4x512xf32, #tpu.memory_space<vmem>>, %arg6: memref<1x8x512xf32, #tpu.memory_space<vmem>>, %arg7: memref<1x8x512xf32, #tpu.memory_space<vmem>>, %arg8: memref<1x8x512xf32, #tpu.memory_space<vmem>>) attributes {dimension_semantics = [#tpu.dimension_semantics<parallel>, #tpu.dimension_semantics<parallel>], iteration_bounds = array<i64: 2, 1>, scalar_prefetch = 0 : i64, scratch_operands = 0 : i64, tpu.core_type = #tpu.core_type<tc>, window_params = [{transform_indices = @transform_0, window_bounds = array<i64: 1, 8, 4>}, {transform_indices = @transform_1, window_bounds = array<i64: 1, 8, 1>}, {transform_indices = @transform_2, window_bounds = array<i64: 4, 512>}, {transform_indices = @transform_3, window_bounds = array<i64: 1, 4, 512>}, {transform_indices = @transform_4, window_bounds = array<i64: 1, 8, 512>}, {transform_indices = @transform_5, window_bounds = array<i64: 1, 8, 512>}, {transform_indices = @transform_6, window_bounds = array<i64: 1, 8, 512>}]} {
    %c0 = arith.constant 0 : index
    %c0_0 = arith.constant 0 : index
    %c0_1 = arith.constant 0 : index
    %0 = vector.load %arg2[%c0, %c0_0, %c0_1] : memref<1x8x4xf32, #tpu.memory_space<vmem>>, vector<1x8x1xf32>
    %1 = vector.shape_cast %0 : vector<1x8x1xf32> to vector<8x1xf32>
    %c0_2 = arith.constant 0 : index
    %c0_3 = arith.constant 0 : index
    %c1 = arith.constant 1 : index
    %2 = vector.load %arg2[%c0_2, %c0_3, %c1] : memref<1x8x4xf32, #tpu.memory_space<vmem>>, vector<1x8x1xf32>
    %3 = vector.shape_cast %2 : vector<1x8x1xf32> to vector<8x1xf32>
    %c0_4 = arith.constant 0 : index
    %c0_5 = arith.constant 0 : index
    %c2 = arith.constant 2 : index
    %4 = vector.load %arg2[%c0_4, %c0_5, %c2] : memref<1x8x4xf32, #tpu.memory_space<vmem>>, vector<1x8x1xf32>
    %5 = vector.shape_cast %4 : vector<1x8x1xf32> to vector<8x1xf32>
    %c0_6 = arith.constant 0 : index
    %c0_7 = arith.constant 0 : index
    %c3 = arith.constant 3 : index
    %6 = vector.load %arg2[%c0_6, %c0_7, %c3] : memref<1x8x4xf32, #tpu.memory_space<vmem>>, vector<1x8x1xf32>
    %7 = vector.shape_cast %6 : vector<1x8x1xf32> to vector<8x1xf32>
    %8 = arith.subf %5, %1 : vector<8x1xf32>
    %9 = arith.subf %7, %3 : vector<8x1xf32>
    %10 = arith.mulf %8, %9 : vector<8x1xf32>
    %c0_8 = arith.constant 0 : index
    %c0_9 = arith.constant 0 : index
    %11 = vector.load %arg4[%c0_8, %c0_9] : memref<4x512xf32, #tpu.memory_space<vmem>>, vector<1x512xf32>
    %c1_10 = arith.constant 1 : index
    %c0_11 = arith.constant 0 : index
    %12 = vector.load %arg4[%c1_10, %c0_11] : memref<4x512xf32, #tpu.memory_space<vmem>>, vector<1x512xf32>
    %c2_12 = arith.constant 2 : index
    %c0_13 = arith.constant 0 : index
    %13 = vector.load %arg4[%c2_12, %c0_13] : memref<4x512xf32, #tpu.memory_space<vmem>>, vector<1x512xf32>
    %c3_14 = arith.constant 3 : index
    %c0_15 = arith.constant 0 : index
    %14 = vector.load %arg4[%c3_14, %c0_15] : memref<4x512xf32, #tpu.memory_space<vmem>>, vector<1x512xf32>
    %c0_16 = arith.constant 0 : index
    %c0_17 = arith.constant 0 : index
    %c0_18 = arith.constant 0 : index
    %15 = vector.load %arg5[%c0_16, %c0_17, %c0_18] : memref<1x4x512xf32, #tpu.memory_space<vmem>>, vector<1x1x512xf32>
    %16 = vector.shape_cast %15 : vector<1x1x512xf32> to vector<1x512xf32>
    %c0_19 = arith.constant 0 : index
    %c1_20 = arith.constant 1 : index
    %c0_21 = arith.constant 0 : index
    %17 = vector.load %arg5[%c0_19, %c1_20, %c0_21] : memref<1x4x512xf32, #tpu.memory_space<vmem>>, vector<1x1x512xf32>
    %18 = vector.shape_cast %17 : vector<1x1x512xf32> to vector<1x512xf32>
    %c0_22 = arith.constant 0 : index
    %c2_23 = arith.constant 2 : index
    %c0_24 = arith.constant 0 : index
    %19 = vector.load %arg5[%c0_22, %c2_23, %c0_24] : memref<1x4x512xf32, #tpu.memory_space<vmem>>, vector<1x1x512xf32>
    %20 = vector.shape_cast %19 : vector<1x1x512xf32> to vector<1x512xf32>
    %c0_25 = arith.constant 0 : index
    %c3_26 = arith.constant 3 : index
    %c0_27 = arith.constant 0 : index
    %21 = vector.load %arg5[%c0_25, %c3_26, %c0_27] : memref<1x4x512xf32, #tpu.memory_space<vmem>>, vector<1x1x512xf32>
    %22 = vector.shape_cast %21 : vector<1x1x512xf32> to vector<1x512xf32>
    %cst = arith.constant 5.000000e-01 : f32
    %23 = vector.broadcast %cst : f32 to vector<1x512xf32>
    %24 = arith.mulf %23, %13 : vector<1x512xf32>
    %25 = arith.subf %11, %24 : vector<1x512xf32>
    %cst_28 = arith.constant 5.000000e-01 : f32
    %26 = vector.broadcast %cst_28 : f32 to vector<1x512xf32>
    %27 = arith.mulf %26, %14 : vector<1x512xf32>
    %28 = arith.subf %12, %27 : vector<1x512xf32>
    %cst_29 = arith.constant 5.000000e-01 : f32
    %29 = vector.broadcast %cst_29 : f32 to vector<1x512xf32>
    %30 = arith.mulf %29, %13 : vector<1x512xf32>
    %31 = arith.addf %11, %30 : vector<1x512xf32>
    %cst_30 = arith.constant 5.000000e-01 : f32
    %32 = vector.broadcast %cst_30 : f32 to vector<1x512xf32>
    %33 = arith.mulf %32, %14 : vector<1x512xf32>
    %34 = arith.addf %12, %33 : vector<1x512xf32>
    %cst_31 = arith.constant 1.000000e-01 : f32
    %35 = vector.broadcast %cst_31 : f32 to vector<1x512xf32>
    %36 = arith.mulf %16, %35 : vector<1x512xf32>
    %37 = arith.mulf %36, %13 : vector<1x512xf32>
    %38 = arith.addf %11, %37 : vector<1x512xf32>
    %cst_32 = arith.constant 1.000000e-01 : f32
    %39 = vector.broadcast %cst_32 : f32 to vector<1x512xf32>
    %40 = arith.mulf %18, %39 : vector<1x512xf32>
    %41 = arith.mulf %40, %14 : vector<1x512xf32>
    %42 = arith.addf %12, %41 : vector<1x512xf32>
    %cst_33 = arith.constant 2.000000e-01 : f32
    %43 = vector.broadcast %cst_33 : f32 to vector<1x512xf32>
    %44 = arith.mulf %20, %43 : vector<1x512xf32>
    %45 = math.exp %44 : vector<1x512xf32>
    %46 = arith.mulf %13, %45 : vector<1x512xf32>
    %cst_34 = arith.constant 2.000000e-01 : f32
    %47 = vector.broadcast %cst_34 : f32 to vector<1x512xf32>
    %48 = arith.mulf %22, %47 : vector<1x512xf32>
    %49 = math.exp %48 : vector<1x512xf32>
    %50 = arith.mulf %14, %49 : vector<1x512xf32>
    %cst_35 = arith.constant 5.000000e-01 : f32
    %51 = vector.broadcast %cst_35 : f32 to vector<1x512xf32>
    %52 = arith.mulf %51, %46 : vector<1x512xf32>
    %53 = arith.subf %38, %52 : vector<1x512xf32>
    %cst_36 = arith.constant 5.000000e-01 : f32
    %54 = vector.broadcast %cst_36 : f32 to vector<1x512xf32>
    %55 = arith.mulf %54, %50 : vector<1x512xf32>
    %56 = arith.subf %42, %55 : vector<1x512xf32>
    %cst_37 = arith.constant 5.000000e-01 : f32
    %57 = vector.broadcast %cst_37 : f32 to vector<1x512xf32>
    %58 = arith.mulf %57, %46 : vector<1x512xf32>
    %59 = arith.addf %38, %58 : vector<1x512xf32>
    %cst_38 = arith.constant 5.000000e-01 : f32
    %60 = vector.broadcast %cst_38 : f32 to vector<1x512xf32>
    %61 = arith.mulf %60, %50 : vector<1x512xf32>
    %62 = arith.addf %42, %61 : vector<1x512xf32>
    %c0_39 = arith.constant 0 : index
    %c0_40 = arith.constant 0 : index
    %c0_41 = arith.constant 0 : index
    %63 = vector.load %arg3[%c0_39, %c0_40, %c0_41] : memref<1x8x1xf32, #tpu.memory_space<vmem>>, vector<1x8x1xf32>
    %64 = vector.shape_cast %63 : vector<1x8x1xf32> to vector<8x1xf32>
    %65 = vector.broadcast %5 : vector<8x1xf32> to vector<8x512xf32>
    %66 = vector.broadcast %59 : vector<1x512xf32> to vector<8x512xf32>
    %67 = arith.minimumf %65, %66 : vector<8x512xf32>
    %68 = vector.broadcast %1 : vector<8x1xf32> to vector<8x512xf32>
    %69 = vector.broadcast %53 : vector<1x512xf32> to vector<8x512xf32>
    %70 = arith.maximumf %68, %69 : vector<8x512xf32>
    %71 = arith.subf %67, %70 : vector<8x512xf32>
    %cst_42 = arith.constant 0.000000e+00 : f32
    %72 = vector.broadcast %cst_42 : f32 to vector<8x512xf32>
    %73 = arith.maximumf %71, %72 : vector<8x512xf32>
    %74 = vector.broadcast %7 : vector<8x1xf32> to vector<8x512xf32>
    %75 = vector.broadcast %62 : vector<1x512xf32> to vector<8x512xf32>
    %76 = arith.minimumf %74, %75 : vector<8x512xf32>
    %77 = vector.broadcast %3 : vector<8x1xf32> to vector<8x512xf32>
    %78 = vector.broadcast %56 : vector<1x512xf32> to vector<8x512xf32>
    %79 = arith.maximumf %77, %78 : vector<8x512xf32>
    %80 = arith.subf %76, %79 : vector<8x512xf32>
    %cst_43 = arith.constant 0.000000e+00 : f32
    %81 = vector.broadcast %cst_43 : f32 to vector<8x512xf32>
    %82 = arith.maximumf %80, %81 : vector<8x512xf32>
    %83 = arith.mulf %73, %82 : vector<8x512xf32>
    %84 = arith.subf %59, %53 : vector<1x512xf32>
    %85 = arith.subf %62, %56 : vector<1x512xf32>
    %86 = arith.mulf %84, %85 : vector<1x512xf32>
    %87 = vector.broadcast %10 : vector<8x1xf32> to vector<8x512xf32>
    %88 = vector.broadcast %86 : vector<1x512xf32> to vector<8x512xf32>
    %89 = arith.addf %87, %88 : vector<8x512xf32>
    %90 = arith.subf %89, %83 : vector<8x512xf32>
    %cst_44 = arith.constant 1.000000e-10 : f32
    %91 = vector.broadcast %cst_44 : f32 to vector<8x512xf32>
    %92 = arith.maximumf %90, %91 : vector<8x512xf32>
    %93 = tpu.reciprocal %92 {approx = true} : vector<8x512xf32> -> vector<8x512xf32>
    %94 = arith.mulf %83, %93 : vector<8x512xf32>
    %95 = vector.broadcast %64 : vector<8x1xf32> to vector<8x512xf32>
    %96 = arith.mulf %94, %95 : vector<8x512xf32>
    %c0_45 = arith.constant 0 : index
    %c0_46 = arith.constant 0 : index
    %c0_47 = arith.constant 0 : index
    %97 = vector.load %arg7[%c0_45, %c0_46, %c0_47] : memref<1x8x512xf32, #tpu.memory_space<vmem>>, vector<1x8x512xf32>
    %98 = vector.shape_cast %97 : vector<1x8x512xf32> to vector<8x512xf32>
    %99 = vector.shape_cast %96 : vector<8x512xf32> to vector<1x8x512xf32>
    tpu.vector_store %arg7[%c0_45, %c0_46, %c0_47], %99 {strides = array<i32>} : memref<1x8x512xf32, #tpu.memory_space<vmem>>, vector<1x8x512xf32>,
    %100 = vector.broadcast %5 : vector<8x1xf32> to vector<8x512xf32>
    %101 = vector.broadcast %31 : vector<1x512xf32> to vector<8x512xf32>
    %102 = arith.minimumf %100, %101 : vector<8x512xf32>
    %103 = vector.broadcast %1 : vector<8x1xf32> to vector<8x512xf32>
    %104 = vector.broadcast %25 : vector<1x512xf32> to vector<8x512xf32>
    %105 = arith.maximumf %103, %104 : vector<8x512xf32>
    %106 = arith.subf %102, %105 : vector<8x512xf32>
    %cst_48 = arith.constant 0.000000e+00 : f32
    %107 = vector.broadcast %cst_48 : f32 to vector<8x512xf32>
    %108 = arith.maximumf %106, %107 : vector<8x512xf32>
    %109 = vector.broadcast %7 : vector<8x1xf32> to vector<8x512xf32>
    %110 = vector.broadcast %34 : vector<1x512xf32> to vector<8x512xf32>
    %111 = arith.minimumf %109, %110 : vector<8x512xf32>
    %112 = vector.broadcast %3 : vector<8x1xf32> to vector<8x512xf32>
    %113 = vector.broadcast %28 : vector<1x512xf32> to vector<8x512xf32>
    %114 = arith.maximumf %112, %113 : vector<8x512xf32>
    %115 = arith.subf %111, %114 : vector<8x512xf32>
    %cst_49 = arith.constant 0.000000e+00 : f32
    %116 = vector.broadcast %cst_49 : f32 to vector<8x512xf32>
    %117 = arith.maximumf %115, %116 : vector<8x512xf32>
    %118 = arith.mulf %108, %117 : vector<8x512xf32>
    %119 = arith.subf %31, %25 : vector<1x512xf32>
    %120 = arith.subf %34, %28 : vector<1x512xf32>
    %121 = arith.mulf %119, %120 : vector<1x512xf32>
    %122 = vector.broadcast %10 : vector<8x1xf32> to vector<8x512xf32>
    %123 = vector.broadcast %121 : vector<1x512xf32> to vector<8x512xf32>
    %124 = arith.addf %122, %123 : vector<8x512xf32>
    %125 = arith.subf %124, %118 : vector<8x512xf32>
    %cst_50 = arith.constant 1.000000e-10 : f32
    %126 = vector.broadcast %cst_50 : f32 to vector<8x512xf32>
    %127 = arith.maximumf %125, %126 : vector<8x512xf32>
    %128 = tpu.reciprocal %127 {approx = true} : vector<8x512xf32> -> vector<8x512xf32>
    %129 = arith.mulf %118, %128 : vector<8x512xf32>
    %c0_51 = arith.constant 0 : index
    %c0_52 = arith.constant 0 : index
    %c0_53 = arith.constant 0 : index
    %130 = vector.load %arg6[%c0_51, %c0_52, %c0_53] : memref<1x8x512xf32, #tpu.memory_space<vmem>>, vector<1x8x512xf32>
    %131 = vector.shape_cast %130 : vector<1x8x512xf32> to vector<8x512xf32>
    %132 = arith.mulf %129, %131 : vector<8x512xf32>
    %c0_54 = arith.constant 0 : index
    %c0_55 = arith.constant 0 : index
    %c0_56 = arith.constant 0 : index
    %133 = vector.load %arg8[%c0_54, %c0_55, %c0_56] : memref<1x8x512xf32, #tpu.memory_space<vmem>>, vector<1x8x512xf32>
    %134 = vector.shape_cast %133 : vector<1x8x512xf32> to vector<8x512xf32>
    %135 = vector.shape_cast %132 : vector<8x512xf32> to vector<1x8x512xf32>
    tpu.vector_store %arg8[%c0_54, %c0_55, %c0_56], %135 {strides = array<i32>} : memref<1x8x512xf32, #tpu.memory_space<vmem>>, vector<1x8x512xf32>,
    return
  }
  func.func @transform_0(%arg0: i32, %arg1: i32) -> (i32, i32, i32) {
    %c0_i32 = arith.constant 0 : i32
    %c0_i32_0 = arith.constant 0 : i32
    %c0_i32_1 = arith.constant 0 : i32
    return %arg0, %c0_i32, %c0_i32_0 : i32, i32, i32
  }
  func.func @transform_1(%arg0: i32, %arg1: i32) -> (i32, i32, i32) {
    %c0_i32 = arith.constant 0 : i32
    %c0_i32_0 = arith.constant 0 : i32
    %c0_i32_1 = arith.constant 0 : i32
    return %arg0, %c0_i32, %c0_i32_0 : i32, i32, i32
  }
  func.func @transform_2(%arg0: i32, %arg1: i32) -> (i32, i32) {
    %c0_i32 = arith.constant 0 : i32
    %c0_i32_0 = arith.constant 0 : i32
    return %c0_i32, %arg1 : i32, i32
  }
  func.func @transform_3(%arg0: i32, %arg1: i32) -> (i32, i32, i32) {
    %c0_i32 = arith.constant 0 : i32
    %c0_i32_0 = arith.constant 0 : i32
    return %arg0, %c0_i32, %arg1 : i32, i32, i32
  }
  func.func @transform_4(%arg0: i32, %arg1: i32) -> (i32, i32, i32) {
    %c0_i32 = arith.constant 0 : i32
    %c0_i32_0 = arith.constant 0 : i32
    return %arg0, %c0_i32, %arg1 : i32, i32, i32
  }
  func.func @transform_5(%arg0: i32, %arg1: i32) -> (i32, i32, i32) {
    %c0_i32 = arith.constant 0 : i32
    %c0_i32_0 = arith.constant 0 : i32
    return %arg0, %c0_i32, %arg1 : i32, i32, i32
  }
  func.func @transform_6(%arg0: i32, %arg1: i32) -> (i32, i32, i32) {
    %c0_i32 = arith.constant 0 : i32
    %c0_i32_0 = arith.constant 0 : i32
    return %arg0, %c0_i32, %arg1 : i32, i32, i32
  }
}

module attributes {stable_mosaic.version = 11 : i64} {
  func.func @_fused_loss_kernel(%arg0: i32, %arg1: i32, %arg2: memref<32x128xbf16, #tpu.memory_space<vmem>>, %arg3: memref<32x128xbf16, #tpu.memory_space<vmem>>, %arg4: memref<16x128xbf16, #tpu.memory_space<vmem>>, %arg5: memref<16x128xbf16, #tpu.memory_space<vmem>>, %arg6: memref<16x128xbf16, #tpu.memory_space<vmem>>, %arg7: memref<1x8x128xf32, #tpu.memory_space<vmem>>, %arg8: memref<1x8x128xf32, #tpu.memory_space<vmem>>) attributes {dimension_semantics = [#tpu.dimension_semantics<parallel>, #tpu.dimension_semantics<arbitrary>], iteration_bounds = array<i64: 2, 1>, scalar_prefetch = 0 : i64, scratch_operands = 0 : i64, tpu.core_type = #tpu.core_type<tc>, window_params = [{transform_indices = @transform_0, window_bounds = array<i64: 32, 128>}, {transform_indices = @transform_1, window_bounds = array<i64: 32, 128>}, {transform_indices = @transform_2, window_bounds = array<i64: 16, 128>}, {transform_indices = @transform_3, window_bounds = array<i64: 16, 128>}, {transform_indices = @transform_4, window_bounds = array<i64: 16, 128>}, {transform_indices = @transform_5, window_bounds = array<i64: 1, 8, 128>}, {transform_indices = @transform_6, window_bounds = array<i64: 1, 8, 128>}]} {
    %c0_i32 = arith.constant 0 : i32
    %0 = arith.cmpi eq, %arg1, %c0_i32 : i32
    %1 = arith.extui %0 : i1 to i32
    %c0_i32_0 = arith.constant 0 : i32
    %2 = arith.cmpi ne, %1, %c0_i32_0 : i32
    scf.if %2 {
      %cst_37 = arith.constant 0.000000e+00 : f32
      %76 = vector.broadcast %cst_37 : f32 to vector<8x128xf32>
      %c0_38 = arith.constant 0 : index
      %c0_39 = arith.constant 0 : index
      %c0_40 = arith.constant 0 : index
      %77 = vector.load %arg7[%c0_38, %c0_39, %c0_40] : memref<1x8x128xf32, #tpu.memory_space<vmem>>, vector<1x8x128xf32>
      %78 = vector.shape_cast %77 : vector<1x8x128xf32> to vector<8x128xf32>
      %79 = vector.shape_cast %76 : vector<8x128xf32> to vector<1x8x128xf32>
      tpu.vector_store %arg7[%c0_38, %c0_39, %c0_40], %79 {strides = array<i32>} : memref<1x8x128xf32, #tpu.memory_space<vmem>>, vector<1x8x128xf32>,
      %cst_41 = arith.constant 0.000000e+00 : f32
      %80 = vector.broadcast %cst_41 : f32 to vector<8x128xf32>
      %c0_42 = arith.constant 0 : index
      %c0_43 = arith.constant 0 : index
      %c0_44 = arith.constant 0 : index
      %81 = vector.load %arg8[%c0_42, %c0_43, %c0_44] : memref<1x8x128xf32, #tpu.memory_space<vmem>>, vector<1x8x128xf32>
      %82 = vector.shape_cast %81 : vector<1x8x128xf32> to vector<8x128xf32>
      %83 = vector.shape_cast %80 : vector<8x128xf32> to vector<1x8x128xf32>
      tpu.vector_store %arg8[%c0_42, %c0_43, %c0_44], %83 {strides = array<i32>} : memref<1x8x128xf32, #tpu.memory_space<vmem>>, vector<1x8x128xf32>,
    } else {
    }
    %c0 = arith.constant 0 : index
    %c0_1 = arith.constant 0 : index
    %3 = vector.load %arg2[%c0, %c0_1] : memref<32x128xbf16, #tpu.memory_space<vmem>>, vector<32x128xbf16>
    %4 = arith.extf %3 : vector<32x128xbf16> to vector<32x128xf32>
    %c0_2 = arith.constant 0 : index
    %c0_3 = arith.constant 0 : index
    %5 = vector.load %arg3[%c0_2, %c0_3] : memref<32x128xbf16, #tpu.memory_space<vmem>>, vector<32x128xbf16>
    %6 = arith.extf %5 : vector<32x128xbf16> to vector<32x128xf32>
    %7 = math.absf %4 : vector<32x128xf32>
    %cst = arith.constant 0.000000e+00 : f32
    %8 = vector.broadcast %cst : f32 to vector<32x128xf32>
    %9 = arith.subf %8, %7 : vector<32x128xf32>
    %10 = math.exp %9 : vector<32x128xf32>
    %cst_4 = arith.constant 1.000000e+00 : f32
    %11 = vector.broadcast %cst_4 : f32 to vector<32x128xf32>
    %12 = arith.addf %11, %10 : vector<32x128xf32>
    %13 = tpu.reciprocal %12 {approx = true} : vector<32x128xf32> -> vector<32x128xf32>
    %cst_5 = arith.constant 0.000000e+00 : f32
    %14 = vector.broadcast %cst_5 : f32 to vector<32x128xf32>
    %15 = arith.cmpf oge, %4, %14 : vector<32x128xf32>
    %16 = arith.mulf %10, %13 : vector<32x128xf32>
    %17 = arith.select %15, %13, %16 : vector<32x128xi1>, vector<32x128xf32>
    %cst_6 = arith.constant 0.000000e+00 : f32
    %18 = vector.broadcast %cst_6 : f32 to vector<32x128xf32>
    %19 = arith.maximumf %4, %18 : vector<32x128xf32>
    %20 = arith.mulf %4, %6 : vector<32x128xf32>
    %21 = arith.subf %19, %20 : vector<32x128xf32>
    %22 = math.log1p %10 : vector<32x128xf32>
    %23 = arith.addf %21, %22 : vector<32x128xf32>
    %24 = arith.subf %17, %6 : vector<32x128xf32>
    %25 = arith.mulf %24, %24 : vector<32x128xf32>
    %26 = arith.mulf %23, %25 : vector<32x128xf32>
    %c0_7 = arith.constant 0 : index
    %c0_8 = arith.constant 0 : index
    %c0_9 = arith.constant 0 : index
    %27 = vector.load %arg7[%c0_7, %c0_8, %c0_9] : memref<1x8x128xf32, #tpu.memory_space<vmem>>, vector<1x8x128xf32>
    %28 = vector.shape_cast %27 : vector<1x8x128xf32> to vector<8x128xf32>
    %29 = vector.shape_cast %26 : vector<32x128xf32> to vector<4x8x128xf32>
    %cst_10 = arith.constant dense<0.000000e+00> : vector<8x128xf32>
    %30 = vector.multi_reduction <add>, %29, %cst_10 [0] : vector<4x8x128xf32> to vector<8x128xf32>
    %31 = arith.addf %28, %30 : vector<8x128xf32>
    %c0_11 = arith.constant 0 : index
    %c0_12 = arith.constant 0 : index
    %c0_13 = arith.constant 0 : index
    %32 = vector.load %arg7[%c0_11, %c0_12, %c0_13] : memref<1x8x128xf32, #tpu.memory_space<vmem>>, vector<1x8x128xf32>
    %33 = vector.shape_cast %32 : vector<1x8x128xf32> to vector<8x128xf32>
    %34 = vector.shape_cast %31 : vector<8x128xf32> to vector<1x8x128xf32>
    tpu.vector_store %arg7[%c0_11, %c0_12, %c0_13], %34 {strides = array<i32>} : memref<1x8x128xf32, #tpu.memory_space<vmem>>, vector<1x8x128xf32>,
    %c0_14 = arith.constant 0 : index
    %c0_15 = arith.constant 0 : index
    %35 = vector.load %arg4[%c0_14, %c0_15] : memref<16x128xbf16, #tpu.memory_space<vmem>>, vector<16x128xbf16>
    %36 = arith.extf %35 : vector<16x128xbf16> to vector<16x128xf32>
    %c0_16 = arith.constant 0 : index
    %c0_17 = arith.constant 0 : index
    %37 = vector.load %arg5[%c0_16, %c0_17] : memref<16x128xbf16, #tpu.memory_space<vmem>>, vector<16x128xbf16>
    %38 = arith.extf %37 : vector<16x128xbf16> to vector<16x128xf32>
    %39 = arith.subf %36, %38 : vector<16x128xf32>
    %40 = math.absf %39 : vector<16x128xf32>
    %cst_18 = arith.constant 19.085537 : f32
    %41 = vector.broadcast %cst_18 : f32 to vector<16x128xf32>
    %42 = arith.mulf %41, %40 : vector<16x128xf32>
    %cst_19 = arith.constant 1.000000e+00 : f32
    %43 = vector.broadcast %cst_19 : f32 to vector<16x128xf32>
    %44 = arith.addf %42, %43 : vector<16x128xf32>
    %cst_20 = arith.constant 0.0261978488 : f32
    %45 = vector.broadcast %cst_20 : f32 to vector<16x128xf32>
    %46 = arith.mulf %45, %44 : vector<16x128xf32>
    %cst_21 = arith.constant 19.085537 : f32
    %47 = vector.broadcast %cst_21 : f32 to vector<16x128xf32>
    %48 = arith.mulf %47, %40 : vector<16x128xf32>
    %cst_22 = arith.constant 1.100000e-01 : f32
    %49 = vector.broadcast %cst_22 : f32 to vector<16x128xf32>
    %50 = arith.divf %48, %49 : vector<16x128xf32>
    %cst_23 = arith.constant 1.000000e+00 : f32
    %51 = vector.broadcast %cst_23 : f32 to vector<16x128xf32>
    %52 = arith.addf %50, %51 : vector<16x128xf32>
    %53 = math.log %52 : vector<16x128xf32>
    %54 = arith.mulf %46, %53 : vector<16x128xf32>
    %cst_24 = arith.constant 5.000000e-01 : f32
    %55 = vector.broadcast %cst_24 : f32 to vector<16x128xf32>
    %56 = arith.mulf %55, %40 : vector<16x128xf32>
    %57 = arith.subf %54, %56 : vector<16x128xf32>
    %cst_25 = arith.constant 1.500000e+00 : f32
    %58 = vector.broadcast %cst_25 : f32 to vector<16x128xf32>
    %59 = arith.mulf %58, %40 : vector<16x128xf32>
    %cst_26 = arith.constant 0.023593545 : f32
    %60 = vector.broadcast %cst_26 : f32 to vector<16x128xf32>
    %61 = arith.addf %59, %60 : vector<16x128xf32>
    %cst_27 = arith.constant 1.100000e-01 : f32
    %62 = vector.broadcast %cst_27 : f32 to vector<16x128xf32>
    %63 = arith.cmpf olt, %40, %62 : vector<16x128xf32>
    %64 = arith.select %63, %57, %61 : vector<16x128xi1>, vector<16x128xf32>
    %c0_28 = arith.constant 0 : index
    %c0_29 = arith.constant 0 : index
    %65 = vector.load %arg6[%c0_28, %c0_29] : memref<16x128xbf16, #tpu.memory_space<vmem>>, vector<16x128xbf16>
    %66 = arith.extf %65 : vector<16x128xbf16> to vector<16x128xf32>
    %67 = arith.mulf %64, %66 : vector<16x128xf32>
    %c0_30 = arith.constant 0 : index
    %c0_31 = arith.constant 0 : index
    %c0_32 = arith.constant 0 : index
    %68 = vector.load %arg8[%c0_30, %c0_31, %c0_32] : memref<1x8x128xf32, #tpu.memory_space<vmem>>, vector<1x8x128xf32>
    %69 = vector.shape_cast %68 : vector<1x8x128xf32> to vector<8x128xf32>
    %70 = vector.shape_cast %67 : vector<16x128xf32> to vector<2x8x128xf32>
    %cst_33 = arith.constant dense<0.000000e+00> : vector<8x128xf32>
    %71 = vector.multi_reduction <add>, %70, %cst_33 [0] : vector<2x8x128xf32> to vector<8x128xf32>
    %72 = arith.addf %69, %71 : vector<8x128xf32>
    %c0_34 = arith.constant 0 : index
    %c0_35 = arith.constant 0 : index
    %c0_36 = arith.constant 0 : index
    %73 = vector.load %arg8[%c0_34, %c0_35, %c0_36] : memref<1x8x128xf32, #tpu.memory_space<vmem>>, vector<1x8x128xf32>
    %74 = vector.shape_cast %73 : vector<1x8x128xf32> to vector<8x128xf32>
    %75 = vector.shape_cast %72 : vector<8x128xf32> to vector<1x8x128xf32>
    tpu.vector_store %arg8[%c0_34, %c0_35, %c0_36], %75 {strides = array<i32>} : memref<1x8x128xf32, #tpu.memory_space<vmem>>, vector<1x8x128xf32>,
    return
  }
  func.func @transform_0(%arg0: i32, %arg1: i32) -> (i32, i32) {
    %c1_i32 = arith.constant 1 : i32
    %0 = arith.muli %arg0, %c1_i32 : i32
    %1 = arith.addi %0, %arg1 : i32
    %c0_i32 = arith.constant 0 : i32
    %c0_i32_0 = arith.constant 0 : i32
    return %1, %c0_i32 : i32, i32
  }
  func.func @transform_1(%arg0: i32, %arg1: i32) -> (i32, i32) {
    %c1_i32 = arith.constant 1 : i32
    %0 = arith.muli %arg0, %c1_i32 : i32
    %1 = arith.addi %0, %arg1 : i32
    %c0_i32 = arith.constant 0 : i32
    %c0_i32_0 = arith.constant 0 : i32
    return %1, %c0_i32 : i32, i32
  }
  func.func @transform_2(%arg0: i32, %arg1: i32) -> (i32, i32) {
    %c1_i32 = arith.constant 1 : i32
    %0 = arith.muli %arg0, %c1_i32 : i32
    %1 = arith.addi %0, %arg1 : i32
    %c0_i32 = arith.constant 0 : i32
    %c0_i32_0 = arith.constant 0 : i32
    return %1, %c0_i32 : i32, i32
  }
  func.func @transform_3(%arg0: i32, %arg1: i32) -> (i32, i32) {
    %c1_i32 = arith.constant 1 : i32
    %0 = arith.muli %arg0, %c1_i32 : i32
    %1 = arith.addi %0, %arg1 : i32
    %c0_i32 = arith.constant 0 : i32
    %c0_i32_0 = arith.constant 0 : i32
    return %1, %c0_i32 : i32, i32
  }
  func.func @transform_4(%arg0: i32, %arg1: i32) -> (i32, i32) {
    %c1_i32 = arith.constant 1 : i32
    %0 = arith.muli %arg0, %c1_i32 : i32
    %1 = arith.addi %0, %arg1 : i32
    %c0_i32 = arith.constant 0 : i32
    %c0_i32_0 = arith.constant 0 : i32
    return %1, %c0_i32 : i32, i32
  }
  func.func @transform_5(%arg0: i32, %arg1: i32) -> (i32, i32, i32) {
    %c0_i32 = arith.constant 0 : i32
    %c0_i32_0 = arith.constant 0 : i32
    %c0_i32_1 = arith.constant 0 : i32
    return %arg0, %c0_i32, %c0_i32_0 : i32, i32, i32
  }
  func.func @transform_6(%arg0: i32, %arg1: i32) -> (i32, i32, i32) {
    %c0_i32 = arith.constant 0 : i32
    %c0_i32_0 = arith.constant 0 : i32
    %c0_i32_1 = arith.constant 0 : i32
    return %arg0, %c0_i32, %c0_i32_0 : i32, i32, i32
  }
}

</mosaic_0001>

<llo_original>
// kernel: approx_top_k.2
$region0: #{approx_top_k.2}
  %s0 = inlined_call_operand.vmem [shape: f32[2,8,256], index: 0, kind: input, shape index: {}]
  %s1 = inlined_call_operand.vmem [shape: f32[2,8,256], index: 1, kind: output, shape index: {}]
  $region1: #{approx_top_k.2} parent=0
    #allocation0 [shape = 'u8[16384]{0}', space=vmem, size = 0x4000, scoped, tag = 'operand span for operand 0']
    #allocation1 [shape = 'u8[16384]{0}', space=vmem, size = 0x4000, scoped, tag = 'operand span for operand 1']
    loop: start=0, step=1, limit=4
    $region2: #{approx_top_k.2} parent=1 // loop_pre_header
      _
    $region3: #{approx_top_k.2} parent=1 // loop_header
      %s3 = sphi 0, %s7
      %p4 = scmp.ge.s32.totalorder %s3, 4
      %s10 = sphi 0, %s29
      %s11 = sphi 0, %s25
      %s12 = sphi 0, %s21
      %s13 = sphi 0, %s10
      %s14 = sphi 0, %s11
      %s15 = sphi 0, %s12
      %s16 = sphi 0, %s13
      %s17 = sphi 0, %s14
      %s18 = sphi 0, %s15
    $region4: #{approx_top_k.2} parent=1 // loop_header_branch
      %6 = sbr.rel (%p4) target = $region8
    $region5: #{approx_top_k.2} parent=1 // loop_body
      %s8 = ssub.s32 %s3, 1
      %s9 = ssub.s32 %s3, 2
      %s19 = sadd.s32 1, %s12
      %p20 = scmp.ge.s32.totalorder %s19, 1
      %s21 = scalar_select %p20, 0, %s19
      %s22 = sadd.s32 1, %s11
      %s23 = scalar_select %p20, %s22, %s11
      %p24 = scmp.ge.s32.totalorder %s23, 1
      %s25 = scalar_select %p24, 0, %s23
      %s26 = sadd.s32 1, %s10
      %s27 = scalar_select %p24, %s26, %s10
      %p28 = scmp.ge.s32.totalorder %s27, 2
      %s29 = scalar_select %p28, 0, %s27
      %p30 = scmp.le.s32.totalorder 1, %s3
      %p31 = scmp.lt.s32.totalorder %s3, 3
      %p32 = pnand %p30, %p31
      %p33 = pneg %p32
      // Predicated region
      $region9: #{approx_top_k.2} parent=5 // pred_check
        _
      $region10: #{approx_top_k.2} parent=5 // pred_check_branch
        %35 = sbr.rel (%p32) target = $region12
      $region11: #{approx_top_k.2} parent=5 // pred_region
        %s36 = ssub.s32 %s3, 1
      $region12: #{approx_top_k.2} parent=5 // pred_fallthru
        _
      %p37 = scmp.lt.s32.totalorder %s3, 2
      // Predicated region
      $region13: #{approx_top_k.2} parent=5 // pred_check
        %p38 = pneg %p37
      $region14: #{approx_top_k.2} parent=5 // pred_check_branch
        %40 = sbr.rel (%p38) target = $region16
      $region15: #{approx_top_k.2} parent=5 // pred_region
        %s41 = sand.u32 %s3, 1
        %s42 = sand.u32 %s3, 1
        %s43 = smul.addr %s42, 16
        %s44 = scalar_lea.vmem [#allocation0], %s43
        %s45 = smul.u32 2, %s12
        %s46 = smul.addr %s11, 2
        %s47 = sadd.s32 %s45, %s46
        %s48 = smul.addr %s10, 2
        %s49 = sadd.s32 %s47, %s48
        %s50 = smul.addr %s49, 8
        %s51 = scalar_lea.vmem %s0, %s50
        // Predicated region
        $region17: #{approx_top_k.2} parent=15 // pred_check
          _
        $region18: #{approx_top_k.2} parent=15 // pred_check_branch
          %53 = sbr.rel (0) target = $region20
        $region19: #{approx_top_k.2} parent=15 // pred_region
          // Predicated region
          $region21: #{approx_top_k.2} parent=19 // pred_check
            _
          $region22: #{approx_top_k.2} parent=19 // pred_check_branch
            %55 = sbr.rel (0) target = $region24
          $region23: #{approx_top_k.2} parent=19 // pred_region
            loop: start=0, step=1, limit=1
            $region25: #{approx_top_k.2} parent=23 // loop_pre_header
              _
            $region26: #{approx_top_k.2} parent=23 // loop_header
              %s57 = sphi 0, %s61
              %p58 = scmp.ge.s32.totalorder %s57, 1
              %s62 = sphi %s51, %s51
              %s63 = sphi %s44, %s44
            $region27: #{approx_top_k.2} parent=23 // loop_header_branch
              %60 = sbr.rel (%p58) target = $region31
            $region28: #{approx_top_k.2} parent=23 // loop_body
              %v64 = vld [vmem:[%s62] sm:$0xff]
              %65 = vst [vmem:[%s63] sm:$0xff] %v64
              %v66 = vld [vmem:[%s62 + $0x8] sm:$0xff]
              %67 = vst [vmem:[%s63 + $0x8] sm:$0xff] %v66
            $region29: #{approx_top_k.2} parent=23 // loop_footer
              %s61 = sadd.s32 1, %s57
            $region30: #{approx_top_k.2} parent=23 // loop_footer_branch
              %56 = sbr.rel target = $region26
            $region31: #{approx_top_k.2} parent=23 // loop_exit
              _
          $region24: #{approx_top_k.2} parent=19 // pred_fallthru
            _
          // Predicated region
          $region32: #{approx_top_k.2} parent=19 // pred_check
            _
          $region33: #{approx_top_k.2} parent=19 // pred_check_branch
            %69 = sbr.rel target = $region35
          $region34: #{approx_top_k.2} parent=19 // pred_region
            _
          $region35: #{approx_top_k.2} parent=19 // pred_fallthru
            _
        $region20: #{approx_top_k.2} parent=15 // pred_fallthru
          _
        %70 = vnop
      $region16: #{approx_top_k.2} parent=5 // pred_fallthru
        _
      %p71 = scmp.le.s32.totalorder 1, %s3
      %p72 = scmp.lt.s32.totalorder %s3, 3
      %p73 = pnand %p71, %p72
      %p74 = pneg %p73
      // Predicated region
      $region36: #{approx_top_k.2} parent=5 // pred_check
        _
      $region37: #{approx_top_k.2} parent=5 // pred_check_branch
        %76 = sbr.rel (%p73) target = $region39
      $region38: #{approx_top_k.2} parent=5 // pred_region
        %s77 = ssub.s32 %s3, 1
        %s78 = sand.u32 %s8, 1
        %s79 = sand.u32 %s8, 1
        %s80 = smul.addr %s79, 16
        %s81 = scalar_lea.vmem [#allocation0], %s80
        %s82 = sand.u32 %s8, 1
        %s83 = sand.u32 %s8, 1
        %s84 = smul.addr %s83, 16
        %s85 = scalar_lea.vmem [#allocation0], %s84
        %s86 = sand.u32 %s8, 1
        %s87 = sand.u32 %s8, 1
        %s88 = smul.addr %s87, 16
        %s89 = scalar_lea.vmem [#allocation1], %s88
        %s90 = smul.u32 2, %s15
        %s91 = smul.u32 2, %s15
        %s92 = smul.u32 %s90, 128
        %v93 = vlaneseq
        %v94 = vand.u32 %v93, 127
        %v95 = vxor.u32 %v94, 1
        %96 = vset.pattern.permute.xlu0 %v95
        %v97 = vlaneseq
        %v98 = vand.u32 %v97, 127
        %v99 = vand.u32 %v98, 1
        %vm100 = vcmp.eq.s32.totalorder 0, %v99
        %s102 = scalar_lea.vmem %s81, 0 [#allocation0]
        %v103 = vld [vmem:[%s102] sm:$0xff]
        %104 = vperm.xlu0 %96, %v103
        %v105 = vpop.permute.xlu0 %104
        %106 = xla_tuple %v105, %v103
        %107 = xla_tuple %106
        %vm108 = vcmp.gt.f32.partialorder %v105, %v103
        %v109 = vsel %vm108, 1, 0
        %110 = xla_tuple %v109
        %111 = xla_tuple %v103, %v105
        %112 = xla_tuple %111
        %vm113 = vcmp.gt.f32.partialorder %v103, %v105
        %v114 = vsel %vm113, 1, 0
        %115 = xla_tuple %v114
        %vm116 = vcmp.ne.s32.totalorder %v109, 0
        %vm117 = vcmp.ne.s32.totalorder %v114, 0
        %v118 = vsel %vm116, %v105, %v103
        %v119 = vsel %vm117, %v105, %v103
        %v120 = vsel %vm100, %v118, %v119
        %s122 = scalar_lea.vmem %s89, 0 [#allocation1]
        %123 = vst [vmem:[%s122] sm:$0xff] %v120
        %s124 = sadd.s32 %s92, 128
        %s126 = scalar_lea.vmem %s81, 8 [#allocation0]
        %v127 = vld [vmem:[%s126] sm:$0xff]
        %128 = vperm.xlu0 %96, %v127
        %v129 = vpop.permute.xlu0 %128
        %130 = xla_tuple %v129, %v127
        %131 = xla_tuple %130
        %vm132 = vcmp.gt.f32.partialorder %v129, %v127
        %v133 = vsel %vm132, 1, 0
        %134 = xla_tuple %v133
        %135 = xla_tuple %v127, %v129
        %136 = xla_tuple %135
        %vm137 = vcmp.gt.f32.partialorder %v127, %v129
        %v138 = vsel %vm137, 1, 0
        %139 = xla_tuple %v138
        %vm140 = vcmp.ne.s32.totalorder %v133, 0
        %vm141 = vcmp.ne.s32.totalorder %v138, 0
        %v142 = vsel %vm140, %v129, %v127
        %v143 = vsel %vm141, %v129, %v127
        %v144 = vsel %vm100, %v142, %v143
        %s146 = scalar_lea.vmem %s89, 8 [#allocation1]
        %147 = vst [vmem:[%s146] sm:$0xff] %v144
        %s148 = smul.u32 %s90, 128
        %v149 = vlaneseq
        %v150 = vand.u32 %v149, 127
        %v151 = vxor.u32 %v150, 3
        %152 = vset.pattern.permute.xlu0 %v151
        %v153 = vlaneseq
        %v154 = vand.u32 %v153, 127
        %v155 = vand.u32 %v154, 2
        %vm156 = vcmp.eq.s32.totalorder 0, %v155
        %s158 = scalar_lea.vmem %s89, 0 [#allocation1]
        %v159 = vld [vmem:[%s158] sm:$0xff]
        %160 = vperm.xlu0 %152, %v159
        %v161 = vpop.permute.xlu0 %160
        %162 = xla_tuple %v161, %v159
        %163 = xla_tuple %162
        %vm164 = vcmp.gt.f32.partialorder %v161, %v159
        %v165 = vsel %vm164, 1, 0
        %166 = xla_tuple %v165
        %167 = xla_tuple %v159, %v161
        %168 = xla_tuple %167
        %vm169 = vcmp.gt.f32.partialorder %v159, %v161
        %v170 = vsel %vm169, 1, 0
        %171 = xla_tuple %v170
        %vm172 = vcmp.ne.s32.totalorder %v165, 0
        %vm173 = vcmp.ne.s32.totalorder %v170, 0
        %v174 = vsel %vm172, %v161, %v159
        %v175 = vsel %vm173, %v161, %v159
        %v176 = vsel %vm156, %v174, %v175
        %s178 = scalar_lea.vmem %s89, 0 [#allocation1]
        %179 = vst [vmem:[%s178] sm:$0xff] %v176
        %s180 = sadd.s32 %s148, 128
        %s182 = scalar_lea.vmem %s89, 8 [#allocation1]
        %v183 = vld [vmem:[%s182] sm:$0xff]
        %184 = vperm.xlu0 %152, %v183
        %v185 = vpop.permute.xlu0 %184
        %186 = xla_tuple %v185, %v183
        %187 = xla_tuple %186
        %vm188 = vcmp.gt.f32.partialorder %v185, %v183
        %v189 = vsel %vm188, 1, 0
        %190 = xla_tuple %v189
        %191 = xla_tuple %v183, %v185
        %192 = xla_tuple %191
        %vm193 = vcmp.gt.f32.partialorder %v183, %v185
        %v194 = vsel %vm193, 1, 0
        %195 = xla_tuple %v194
        %vm196 = vcmp.ne.s32.totalorder %v189, 0
        %vm197 = vcmp.ne.s32.totalorder %v194, 0
        %v198 = vsel %vm196, %v185, %v183
        %v199 = vsel %vm197, %v185, %v183
        %v200 = vsel %vm156, %v198, %v199
        %s202 = scalar_lea.vmem %s89, 8 [#allocation1]
        %203 = vst [vmem:[%s202] sm:$0xff] %v200
        %s204 = smul.u32 %s90, 128
        %v205 = vlaneseq
        %v206 = vand.u32 %v205, 127
        %v207 = vxor.u32 %v206, 1
        %208 = vset.pattern.permute.xlu0 %v207
        %v209 = vlaneseq
        %v210 = vand.u32 %v209, 127
        %v211 = vand.u32 %v210, 1
        %vm212 = vcmp.eq.s32.totalorder 0, %v211
        %s214 = scalar_lea.vmem %s89, 0 [#allocation1]
        %v215 = vld [vmem:[%s214] sm:$0xff]
        %216 = vperm.xlu0 %208, %v215
        %v217 = vpop.permute.xlu0 %216
        %218 = xla_tuple %v217, %v215
        %219 = xla_tuple %218
        %vm220 = vcmp.gt.f32.partialorder %v217, %v215
        %v221 = vsel %vm220, 1, 0
        %222 = xla_tuple %v221
        %223 = xla_tuple %v215, %v217
        %224 = xla_tuple %223
        %vm225 = vcmp.gt.f32.partialorder %v215, %v217
        %v226 = vsel %vm225, 1, 0
        %227 = xla_tuple %v226
        %vm228 = vcmp.ne.s32.totalorder %v221, 0
        %vm229 = vcmp.ne.s32.totalorder %v226, 0
        %v230 = vsel %vm228, %v217, %v215
        %v231 = vsel %vm229, %v217, %v215
        %v232 = vsel %vm212, %v230, %v231
        %s234 = scalar_lea.vmem %s89, 0 [#allocation1]
        %235 = vst [vmem:[%s234] sm:$0xff] %v232
        %s236 = sadd.s32 %s204, 128
        %s238 = scalar_lea.vmem %s89, 8 [#allocation1]
        %v239 = vld [vmem:[%s238] sm:$0xff]
        %240 = vperm.xlu0 %208, %v239
        %v241 = vpop.permute.xlu0 %240
        %242 = xla_tuple %v241, %v239
        %243 = xla_tuple %242
        %vm244 = vcmp.gt.f32.partialorder %v241, %v239
        %v245 = vsel %vm244, 1, 0
        %246 = xla_tuple %v245
        %247 = xla_tuple %v239, %v241
        %248 = xla_tuple %247
        %vm249 = vcmp.gt.f32.partialorder %v239, %v241
        %v250 = vsel %vm249, 1, 0
        %251 = xla_tuple %v250
        %vm252 = vcmp.ne.s32.totalorder %v245, 0
        %vm253 = vcmp.ne.s32.totalorder %v250, 0
        %v254 = vsel %vm252, %v241, %v239
        %v255 = vsel %vm253, %v241, %v239
        %v256 = vsel %vm212, %v254, %v255
        %s258 = scalar_lea.vmem %s89, 8 [#allocation1]
        %259 = vst [vmem:[%s258] sm:$0xff] %v256
        %s260 = smul.u32 %s90, 128
        %v261 = vlaneseq
        %v262 = vand.u32 %v261, 127
        %v263 = vxor.u32 %v262, 7
        %264 = vset.pattern.permute.xlu0 %v263
        %v265 = vlaneseq
        %v266 = vand.u32 %v265, 127
        %v267 = vand.u32 %v266, 4
        %vm268 = vcmp.eq.s32.totalorder 0, %v267
        %s270 = scalar_lea.vmem %s89, 0 [#allocation1]
        %v271 = vld [vmem:[%s270] sm:$0xff]
        %272 = vperm.xlu0 %264, %v271
        %v273 = vpop.permute.xlu0 %272
        %274 = xla_tuple %v273, %v271
        %275 = xla_tuple %274
        %vm276 = vcmp.gt.f32.partialorder %v273, %v271
        %v277 = vsel %vm276, 1, 0
        %278 = xla_tuple %v277
        %279 = xla_tuple %v271, %v273
        %280 = xla_tuple %279
        %vm281 = vcmp.gt.f32.partialorder %v271, %v273
        %v282 = vsel %vm281, 1, 0
        %283 = xla_tuple %v282
        %vm284 = vcmp.ne.s32.totalorder %v277, 0
        %vm285 = vcmp.ne.s32.totalorder %v282, 0
        %v286 = vsel %vm284, %v273, %v271
        %v287 = vsel %vm285, %v273, %v271
        %v288 = vsel %vm268, %v286, %v287
        %s290 = scalar_lea.vmem %s89, 0 [#allocation1]
        %291 = vst [vmem:[%s290] sm:$0xff] %v288
        %s292 = sadd.s32 %s260, 128
        %s294 = scalar_lea.vmem %s89, 8 [#allocation1]
        %v295 = vld [vmem:[%s294] sm:$0xff]
        %296 = vperm.xlu0 %264, %v295
        %v297 = vpop.permute.xlu0 %296
        %298 = xla_tuple %v297, %v295
        %299 = xla_tuple %298
        %vm300 = vcmp.gt.f32.partialorder %v297, %v295
        %v301 = vsel %vm300, 1, 0
        %302 = xla_tuple %v301
        %303 = xla_tuple %v295, %v297
        %304 = xla_tuple %303
        %vm305 = vcmp.gt.f32.partialorder %v295, %v297
        %v306 = vsel %vm305, 1, 0
        %307 = xla_tuple %v306
        %vm308 = vcmp.ne.s32.totalorder %v301, 0
        %vm309 = vcmp.ne.s32.totalorder %v306, 0
        %v310 = vsel %vm308, %v297, %v295
        %v311 = vsel %vm309, %v297, %v295
        %v312 = vsel %vm268, %v310, %v311
        %s314 = scalar_lea.vmem %s89, 8 [#allocation1]
        %315 = vst [vmem:[%s314] sm:$0xff] %v312
        %s316 = smul.u32 %s90, 128
        %v317 = vlaneseq
        %v318 = vand.u32 %v317, 127
        %v319 = vxor.u32 %v318, 2
        %320 = vset.pattern.permute.xlu0 %v319
        %v321 = vlaneseq
        %v322 = vand.u32 %v321, 127
        %v323 = vand.u32 %v322, 2
        %vm324 = vcmp.eq.s32.totalorder 0, %v323
        %s326 = scalar_lea.vmem %s89, 0 [#allocation1]
        %v327 = vld [vmem:[%s326] sm:$0xff]
        %328 = vperm.xlu0 %320, %v327
        %v329 = vpop.permute.xlu0 %328
        %330 = xla_tuple %v329, %v327
        %331 = xla_tuple %330
        %vm332 = vcmp.gt.f32.partialorder %v329, %v327
        %v333 = vsel %vm332, 1, 0
        %334 = xla_tuple %v333
        %335 = xla_tuple %v327, %v329
        %336 = xla_tuple %335
        %vm337 = vcmp.gt.f32.partialorder %v327, %v329
        %v338 = vsel %vm337, 1, 0
        %339 = xla_tuple %v338
        %vm340 = vcmp.ne.s32.totalorder %v333, 0
        %vm341 = vcmp.ne.s32.totalorder %v338, 0
        %v342 = vsel %vm340, %v329, %v327
        %v343 = vsel %vm341, %v329, %v327
        %v344 = vsel %vm324, %v342, %v343
        %s346 = scalar_lea.vmem %s89, 0 [#allocation1]
        %347 = vst [vmem:[%s346] sm:$0xff] %v344
        %s348 = sadd.s32 %s316, 128
        %s350 = scalar_lea.vmem %s89, 8 [#allocation1]
        %v351 = vld [vmem:[%s350] sm:$0xff]
        %352 = vperm.xlu0 %320, %v351
        %v353 = vpop.permute.xlu0 %352
        %354 = xla_tuple %v353, %v351
        %355 = xla_tuple %354
        %vm356 = vcmp.gt.f32.partialorder %v353, %v351
        %v357 = vsel %vm356, 1, 0
        %358 = xla_tuple %v357
        %359 = xla_tuple %v351, %v353
        %360 = xla_tuple %359
        %vm361 = vcmp.gt.f32.partialorder %v351, %v353
        %v362 = vsel %vm361, 1, 0
        %363 = xla_tuple %v362
        %vm364 = vcmp.ne.s32.totalorder %v357, 0
        %vm365 = vcmp.ne.s32.totalorder %v362, 0
        %v366 = vsel %vm364, %v353, %v351
        %v367 = vsel %vm365, %v353, %v351
        %v368 = vsel %vm324, %v366, %v367
        %s370 = scalar_lea.vmem %s89, 8 [#allocation1]
        %371 = vst [vmem:[%s370] sm:$0xff] %v368
        %s372 = smul.u32 %s90, 128
        %v373 = vlaneseq
        %v374 = vand.u32 %v373, 127
        %v375 = vxor.u32 %v374, 1
        %376 = vset.pattern.permute.xlu0 %v375
        %v377 = vlaneseq
        %v378 = vand.u32 %v377, 127
        %v379 = vand.u32 %v378, 1
        %vm380 = vcmp.eq.s32.totalorder 0, %v379
        %s382 = scalar_lea.vmem %s89, 0 [#allocation1]
        %v383 = vld [vmem:[%s382] sm:$0xff]
        %384 = vperm.xlu0 %376, %v383
        %v385 = vpop.permute.xlu0 %384
        %386 = xla_tuple %v385, %v383
        %387 = xla_tuple %386
        %vm388 = vcmp.gt.f32.partialorder %v385, %v383
        %v389 = vsel %vm388, 1, 0
        %390 = xla_tuple %v389
        %391 = xla_tuple %v383, %v385
        %392 = xla_tuple %391
        %vm393 = vcmp.gt.f32.partialorder %v383, %v385
        %v394 = vsel %vm393, 1, 0
        %395 = xla_tuple %v394
        %vm396 = vcmp.ne.s32.totalorder %v389, 0
        %vm397 = vcmp.ne.s32.totalorder %v394, 0
        %v398 = vsel %vm396, %v385, %v383
        %v399 = vsel %vm397, %v385, %v383
        %v400 = vsel %vm380, %v398, %v399
        %s402 = scalar_lea.vmem %s89, 0 [#allocation1]
        %403 = vst [vmem:[%s402] sm:$0xff] %v400
        %s404 = sadd.s32 %s372, 128
        %s406 = scalar_lea.vmem %s89, 8 [#allocation1]
        %v407 = vld [vmem:[%s406] sm:$0xff]
        %408 = vperm.xlu0 %376, %v407
        %v409 = vpop.permute.xlu0 %408
        %410 = xla_tuple %v409, %v407
        %411 = xla_tuple %410
        %vm412 = vcmp.gt.f32.partialorder %v409, %v407
        %v413 = vsel %vm412, 1, 0
        %414 = xla_tuple %v413
        %415 = xla_tuple %v407, %v409
        %416 = xla_tuple %415
        %vm417 = vcmp.gt.f32.partialorder %v407, %v409
        %v418 = vsel %vm417, 1, 0
        %419 = xla_tuple %v418
        %vm420 = vcmp.ne.s32.totalorder %v413, 0
        %vm421 = vcmp.ne.s32.totalorder %v418, 0
        %v422 = vsel %vm420, %v409, %v407
        %v423 = vsel %vm421, %v409, %v407
        %v424 = vsel %vm380, %v422, %v423
        %s426 = scalar_lea.vmem %s89, 8 [#allocation1]
        %427 = vst [vmem:[%s426] sm:$0xff] %v424
        %s428 = smul.u32 %s90, 128
        %v429 = vlaneseq
        %v430 = vand.u32 %v429, 127
        %v431 = vxor.u32 %v430, 15
        %432 = vset.pattern.permute.xlu0 %v431
        %v433 = vlaneseq
        %v434 = vand.u32 %v433, 127
        %v435 = vand.u32 %v434, 8
        %vm436 = vcmp.eq.s32.totalorder 0, %v435
        %s438 = scalar_lea.vmem %s89, 0 [#allocation1]
        %v439 = vld [vmem:[%s438] sm:$0xff]
        %440 = vperm.xlu0 %432, %v439
        %v441 = vpop.permute.xlu0 %440
        %442 = xla_tuple %v441, %v439
        %443 = xla_tuple %442
        %vm444 = vcmp.gt.f32.partialorder %v441, %v439
        %v445 = vsel %vm444, 1, 0
        %446 = xla_tuple %v445
        %447 = xla_tuple %v439, %v441
        %448 = xla_tuple %447
        %vm449 = vcmp.gt.f32.partialorder %v439, %v441
        %v450 = vsel %vm449, 1, 0
        %451 = xla_tuple %v450
        %vm452 = vcmp.ne.s32.totalorder %v445, 0
        %vm453 = vcmp.ne.s32.totalorder %v450, 0
        %v454 = vsel %vm452, %v441, %v439
        %v455 = vsel %vm453, %v441, %v439
        %v456 = vsel %vm436, %v454, %v455
        %s458 = scalar_lea.vmem %s89, 0 [#allocation1]
        %459 = vst [vmem:[%s458] sm:$0xff] %v456
        %s460 = sadd.s32 %s428, 128
        %s462 = scalar_lea.vmem %s89, 8 [#allocation1]
        %v463 = vld [vmem:[%s462] sm:$0xff]
        %464 = vperm.xlu0 %432, %v463
        %v465 = vpop.permute.xlu0 %464
        %466 = xla_tuple %v465, %v463
        %467 = xla_tuple %466
        %vm468 = vcmp.gt.f32.partialorder %v465, %v463
        %v469 = vsel %vm468, 1, 0
        %470 = xla_tuple %v469
        %471 = xla_tuple %v463, %v465
        %472 = xla_tuple %471
        %vm473 = vcmp.gt.f32.partialorder %v463, %v465
        %v474 = vsel %vm473, 1, 0
        %475 = xla_tuple %v474
        %vm476 = vcmp.ne.s32.totalorder %v469, 0
        %vm477 = vcmp.ne.s32.totalorder %v474, 0
        %v478 = vsel %vm476, %v465, %v463
        %v479 = vsel %vm477, %v465, %v463
        %v480 = vsel %vm436, %v478, %v479
        %s482 = scalar_lea.vmem %s89, 8 [#allocation1]
        %483 = vst [vmem:[%s482] sm:$0xff] %v480
        %s484 = smul.u32 %s90, 128
        %v485 = vlaneseq
        %v486 = vand.u32 %v485, 127
        %v487 = vxor.u32 %v486, 4
        %488 = vset.pattern.permute.xlu0 %v487
        %v489 = vlaneseq
        %v490 = vand.u32 %v489, 127
        %v491 = vand.u32 %v490, 4
        %vm492 = vcmp.eq.s32.totalorder 0, %v491
        %s494 = scalar_lea.vmem %s89, 0 [#allocation1]
        %v495 = vld [vmem:[%s494] sm:$0xff]
        %496 = vperm.xlu0 %488, %v495
        %v497 = vpop.permute.xlu0 %496
        %498 = xla_tuple %v497, %v495
        %499 = xla_tuple %498
        %vm500 = vcmp.gt.f32.partialorder %v497, %v495
        %v501 = vsel %vm500, 1, 0
        %502 = xla_tuple %v501
        %503 = xla_tuple %v495, %v497
        %504 = xla_tuple %503
        %vm505 = vcmp.gt.f32.partialorder %v495, %v497
        %v506 = vsel %vm505, 1, 0
        %507 = xla_tuple %v506
        %vm508 = vcmp.ne.s32.totalorder %v501, 0
        %vm509 = vcmp.ne.s32.totalorder %v506, 0
        %v510 = vsel %vm508, %v497, %v495
        %v511 = vsel %vm509, %v497, %v495
        %v512 = vsel %vm492, %v510, %v511
        %s514 = scalar_lea.vmem %s89, 0 [#allocation1]
        %515 = vst [vmem:[%s514] sm:$0xff] %v512
        %s516 = sadd.s32 %s484, 128
        %s518 = scalar_lea.vmem %s89, 8 [#allocation1]
        %v519 = vld [vmem:[%s518] sm:$0xff]
        %520 = vperm.xlu0 %488, %v519
        %v521 = vpop.permute.xlu0 %520
        %522 = xla_tuple %v521, %v519
        %523 = xla_tuple %522
        %vm524 = vcmp.gt.f32.partialorder %v521, %v519
        %v525 = vsel %vm524, 1, 0
        %526 = xla_tuple %v525
        %527 = xla_tuple %v519, %v521
        %528 = xla_tuple %527
        %vm529 = vcmp.gt.f32.partialorder %v519, %v521
        %v530 = vsel %vm529, 1, 0
        %531 = xla_tuple %v530
        %vm532 = vcmp.ne.s32.totalorder %v525, 0
        %vm533 = vcmp.ne.s32.totalorder %v530, 0
        %v534 = vsel %vm532, %v521, %v519
        %v535 = vsel %vm533, %v521, %v519
        %v536 = vsel %vm492, %v534, %v535
        %s538 = scalar_lea.vmem %s89, 8 [#allocation1]
        %539 = vst [vmem:[%s538] sm:$0xff] %v536
        %s540 = smul.u32 %s90, 128
        %v541 = vlaneseq
        %v542 = vand.u32 %v541, 127
        %v543 = vxor.u32 %v542, 2
        %544 = vset.pattern.permute.xlu0 %v543
        %v545 = vlaneseq
        %v546 = vand.u32 %v545, 127
        %v547 = vand.u32 %v546, 2
        %vm548 = vcmp.eq.s32.totalorder 0, %v547
        %s550 = scalar_lea.vmem %s89, 0 [#allocation1]
        %v551 = vld [vmem:[%s550] sm:$0xff]
        %552 = vperm.xlu0 %544, %v551
        %v553 = vpop.permute.xlu0 %552
        %554 = xla_tuple %v553, %v551
        %555 = xla_tuple %554
        %vm556 = vcmp.gt.f32.partialorder %v553, %v551
        %v557 = vsel %vm556, 1, 0
        %558 = xla_tuple %v557
        %559 = xla_tuple %v551, %v553
        %560 = xla_tuple %559
        %vm561 = vcmp.gt.f32.partialorder %v551, %v553
        %v562 = vsel %vm561, 1, 0
        %563 = xla_tuple %v562
        %vm564 = vcmp.ne.s32.totalorder %v557, 0
        %vm565 = vcmp.ne.s32.totalorder %v562, 0
        %v566 = vsel %vm564, %v553, %v551
        %v567 = vsel %vm565, %v553, %v551
        %v568 = vsel %vm548, %v566, %v567
        %s570 = scalar_lea.vmem %s89, 0 [#allocation1]
        %571 = vst [vmem:[%s570] sm:$0xff] %v568
        %s572 = sadd.s32 %s540, 128
        %s574 = scalar_lea.vmem %s89, 8 [#allocation1]
        %v575 = vld [vmem:[%s574] sm:$0xff]
        %576 = vperm.xlu0 %544, %v575
        %v577 = vpop.permute.xlu0 %576
        %578 = xla_tuple %v577, %v575
        %579 = xla_tuple %578
        %vm580 = vcmp.gt.f32.partialorder %v577, %v575
        %v581 = vsel %vm580, 1, 0
        %582 = xla_tuple %v581
        %583 = xla_tuple %v575, %v577
        %584 = xla_tuple %583
        %vm585 = vcmp.gt.f32.partialorder %v575, %v577
        %v586 = vsel %vm585, 1, 0
        %587 = xla_tuple %v586
        %vm588 = vcmp.ne.s32.totalorder %v581, 0
        %vm589 = vcmp.ne.s32.totalorder %v586, 0
        %v590 = vsel %vm588, %v577, %v575
        %v591 = vsel %vm589, %v577, %v575
        %v592 = vsel %vm548, %v590, %v591
        %s594 = scalar_lea.vmem %s89, 8 [#allocation1]
        %595 = vst [vmem:[%s594] sm:$0xff] %v592
        %s596 = smul.u32 %s90, 128
        %v597 = vlaneseq
        %v598 = vand.u32 %v597, 127
        %v599 = vxor.u32 %v598, 1
        %600 = vset.pattern.permute.xlu0 %v599
        %v601 = vlaneseq
        %v602 = vand.u32 %v601, 127
        %v603 = vand.u32 %v602, 1
        %vm604 = vcmp.eq.s32.totalorder 0, %v603
        %s606 = scalar_lea.vmem %s89, 0 [#allocation1]
        %v607 = vld [vmem:[%s606] sm:$0xff]
        %608 = vperm.xlu0 %600, %v607
        %v609 = vpop.permute.xlu0 %608
        %610 = xla_tuple %v609, %v607
        %611 = xla_tuple %610
        %vm612 = vcmp.gt.f32.partialorder %v609, %v607
        %v613 = vsel %vm612, 1, 0
        %614 = xla_tuple %v613
        %615 = xla_tuple %v607, %v609
        %616 = xla_tuple %615
        %vm617 = vcmp.gt.f32.partialorder %v607, %v609
        %v618 = vsel %vm617, 1, 0
        %619 = xla_tuple %v618
        %vm620 = vcmp.ne.s32.totalorder %v613, 0
        %vm621 = vcmp.ne.s32.totalorder %v618, 0
        %v622 = vsel %vm620, %v609, %v607
        %v623 = vsel %vm621, %v609, %v607
        %v624 = vsel %vm604, %v622, %v623
        %s626 = scalar_lea.vmem %s89, 0 [#allocation1]
        %627 = vst [vmem:[%s626] sm:$0xff] %v624
        %s628 = sadd.s32 %s596, 128
        %s630 = scalar_lea.vmem %s89, 8 [#allocation1]
        %v631 = vld [vmem:[%s630] sm:$0xff]
        %632 = vperm.xlu0 %600, %v631
        %v633 = vpop.permute.xlu0 %632
        %634 = xla_tuple %v633, %v631
        %635 = xla_tuple %634
        %vm636 = vcmp.gt.f32.partialorder %v633, %v631
        %v637 = vsel %vm636, 1, 0
        %638 = xla_tuple %v637
        %639 = xla_tuple %v631, %v633
        %640 = xla_tuple %639
        %vm641 = vcmp.gt.f32.partialorder %v631, %v633
        %v642 = vsel %vm641, 1, 0
        %643 = xla_tuple %v642
        %vm644 = vcmp.ne.s32.totalorder %v637, 0
        %vm645 = vcmp.ne.s32.totalorder %v642, 0
        %v646 = vsel %vm644, %v633, %v631
        %v647 = vsel %vm645, %v633, %v631
        %v648 = vsel %vm604, %v646, %v647
        %s650 = scalar_lea.vmem %s89, 8 [#allocation1]
        %651 = vst [vmem:[%s650] sm:$0xff] %v648
        %s652 = smul.u32 %s90, 128
        %v653 = vlaneseq
        %v654 = vand.u32 %v653, 127
        %v655 = vxor.u32 %v654, 31
        %656 = vset.pattern.permute.xlu0 %v655
        %v657 = vlaneseq
        %v658 = vand.u32 %v657, 127
        %v659 = vand.u32 %v658, 16
        %vm660 = vcmp.eq.s32.totalorder 0, %v659
        %s662 = scalar_lea.vmem %s89, 0 [#allocation1]
        %v663 = vld [vmem:[%s662] sm:$0xff]
        %664 = vperm.xlu0 %656, %v663
        %v665 = vpop.permute.xlu0 %664
        %666 = xla_tuple %v665, %v663
        %667 = xla_tuple %666
        %vm668 = vcmp.gt.f32.partialorder %v665, %v663
        %v669 = vsel %vm668, 1, 0
        %670 = xla_tuple %v669
        %671 = xla_tuple %v663, %v665
        %672 = xla_tuple %671
        %vm673 = vcmp.gt.f32.partialorder %v663, %v665
        %v674 = vsel %vm673, 1, 0
        %675 = xla_tuple %v674
        %vm676 = vcmp.ne.s32.totalorder %v669, 0
        %vm677 = vcmp.ne.s32.totalorder %v674, 0
        %v678 = vsel %vm676, %v665, %v663
        %v679 = vsel %vm677, %v665, %v663
        %v680 = vsel %vm660, %v678, %v679
        %s682 = scalar_lea.vmem %s89, 0 [#allocation1]
        %683 = vst [vmem:[%s682] sm:$0xff] %v680
        %s684 = sadd.s32 %s652, 128
        %s686 = scalar_lea.vmem %s89, 8 [#allocation1]
        %v687 = vld [vmem:[%s686] sm:$0xff]
        %688 = vperm.xlu0 %656, %v687
        %v689 = vpop.permute.xlu0 %688
        %690 = xla_tuple %v689, %v687
        %691 = xla_tuple %690
        %vm692 = vcmp.gt.f32.partialorder %v689, %v687
        %v693 = vsel %vm692, 1, 0
        %694 = xla_tuple %v693
        %695 = xla_tuple %v687, %v689
        %696 = xla_tuple %695
        %vm697 = vcmp.gt.f32.partialorder %v687, %v689
        %v698 = vsel %vm697, 1, 0
        %699 = xla_tuple %v698
        %vm700 = vcmp.ne.s32.totalorder %v693, 0
        %vm701 = vcmp.ne.s32.totalorder %v698, 0
        %v702 = vsel %vm700, %v689, %v687
        %v703 = vsel %vm701, %v689, %v687
        %v704 = vsel %vm660, %v702, %v703
        %s706 = scalar_lea.vmem %s89, 8 [#allocation1]
        %707 = vst [vmem:[%s706] sm:$0xff] %v704
        %s708 = smul.u32 %s90, 128
        %v709 = vlaneseq
        %v710 = vand.u32 %v709, 127
        %v711 = vxor.u32 %v710, 8
        %712 = vset.pattern.permute.xlu0 %v711
        %v713 = vlaneseq
        %v714 = vand.u32 %v713, 127
        %v715 = vand.u32 %v714, 8
        %vm716 = vcmp.eq.s32.totalorder 0, %v715
        %s718 = scalar_lea.vmem %s89, 0 [#allocation1]
        %v719 = vld [vmem:[%s718] sm:$0xff]
        %720 = vperm.xlu0 %712, %v719
        %v721 = vpop.permute.xlu0 %720
        %722 = xla_tuple %v721, %v719
        %723 = xla_tuple %722
        %vm724 = vcmp.gt.f32.partialorder %v721, %v719
        %v725 = vsel %vm724, 1, 0
        %726 = xla_tuple %v725
        %727 = xla_tuple %v719, %v721
        %728 = xla_tuple %727
        %vm729 = vcmp.gt.f32.partialorder %v719, %v721
        %v730 = vsel %vm729, 1, 0
        %731 = xla_tuple %v730
        %vm732 = vcmp.ne.s32.totalorder %v725, 0
        %vm733 = vcmp.ne.s32.totalorder %v730, 0
        %v734 = vsel %vm732, %v721, %v719
        %v735 = vsel %vm733, %v721, %v719
        %v736 = vsel %vm716, %v734, %v735
        %s738 = scalar_lea.vmem %s89, 0 [#allocation1]
        %739 = vst [vmem:[%s738] sm:$0xff] %v736
        %s740 = sadd.s32 %s708, 128
        %s742 = scalar_lea.vmem %s89, 8 [#allocation1]
        %v743 = vld [vmem:[%s742] sm:$0xff]
        %744 = vperm.xlu0 %712, %v743
        %v745 = vpop.permute.xlu0 %744
        %746 = xla_tuple %v745, %v743
        %747 = xla_tuple %746
        %vm748 = vcmp.gt.f32.partialorder %v745, %v743
        %v749 = vsel %vm748, 1, 0
        %750 = xla_tuple %v749
        %751 = xla_tuple %v743, %v745
        %752 = xla_tuple %751
        %vm753 = vcmp.gt.f32.partialorder %v743, %v745
        %v754 = vsel %vm753, 1, 0
        %755 = xla_tuple %v754
        %vm756 = vcmp.ne.s32.totalorder %v749, 0
        %vm757 = vcmp.ne.s32.totalorder %v754, 0
        %v758 = vsel %vm756, %v745, %v743
        %v759 = vsel %vm757, %v745, %v743
        %v760 = vsel %vm716, %v758, %v759
        %s762 = scalar_lea.vmem %s89, 8 [#allocation1]
        %763 = vst [vmem:[%s762] sm:$0xff] %v760
        %s764 = smul.u32 %s90, 128
        %v765 = vlaneseq
        %v766 = vand.u32 %v765, 127
        %v767 = vxor.u32 %v766, 4
        %768 = vset.pattern.permute.xlu0 %v767
        %v769 = vlaneseq
        %v770 = vand.u32 %v769, 127
        %v771 = vand.u32 %v770, 4
        %vm772 = vcmp.eq.s32.totalorder 0, %v771
        %s774 = scalar_lea.vmem %s89, 0 [#allocation1]
        %v775 = vld [vmem:[%s774] sm:$0xff]
        %776 = vperm.xlu0 %768, %v775
        %v777 = vpop.permute.xlu0 %776
        %778 = xla_tuple %v777, %v775
        %779 = xla_tuple %778
        %vm780 = vcmp.gt.f32.partialorder %v777, %v775
        %v781 = vsel %vm780, 1, 0
        %782 = xla_tuple %v781
        %783 = xla_tuple %v775, %v777
        %784 = xla_tuple %783
        %vm785 = vcmp.gt.f32.partialorder %v775, %v777
        %v786 = vsel %vm785, 1, 0
        %787 = xla_tuple %v786
        %vm788 = vcmp.ne.s32.totalorder %v781, 0
        %vm789 = vcmp.ne.s32.totalorder %v786, 0
        %v790 = vsel %vm788, %v777, %v775
        %v791 = vsel %vm789, %v777, %v775
        %v792 = vsel %vm772, %v790, %v791
        %s794 = scalar_lea.vmem %s89, 0 [#allocation1]
        %795 = vst [vmem:[%s794] sm:$0xff] %v792
        %s796 = sadd.s32 %s764, 128
        %s798 = scalar_lea.vmem %s89, 8 [#allocation1]
        %v799 = vld [vmem:[%s798] sm:$0xff]
        %800 = vperm.xlu0 %768, %v799
        %v801 = vpop.permute.xlu0 %800
        %802 = xla_tuple %v801, %v799
        %803 = xla_tuple %802
        %vm804 = vcmp.gt.f32.partialorder %v801, %v799
        %v805 = vsel %vm804, 1, 0
        %806 = xla_tuple %v805
        %807 = xla_tuple %v799, %v801
        %808 = xla_tuple %807
        %vm809 = vcmp.gt.f32.partialorder %v799, %v801
        %v810 = vsel %vm809, 1, 0
        %811 = xla_tuple %v810
        %vm812 = vcmp.ne.s32.totalorder %v805, 0
        %vm813 = vcmp.ne.s32.totalorder %v810, 0
        %v814 = vsel %vm812, %v801, %v799
        %v815 = vsel %vm813, %v801, %v799
        %v816 = vsel %vm772, %v814, %v815
        %s818 = scalar_lea.vmem %s89, 8 [#allocation1]
        %819 = vst [vmem:[%s818] sm:$0xff] %v816
        %s820 = smul.u32 %s90, 128
        %v821 = vlaneseq
        %v822 = vand.u32 %v821, 127
        %v823 = vxor.u32 %v822, 2
        %824 = vset.pattern.permute.xlu0 %v823
        %v825 = vlaneseq
        %v826 = vand.u32 %v825, 127
        %v827 = vand.u32 %v826, 2
        %vm828 = vcmp.eq.s32.totalorder 0, %v827
        %s830 = scalar_lea.vmem %s89, 0 [#allocation1]
        %v831 = vld [vmem:[%s830] sm:$0xff]
        %832 = vperm.xlu0 %824, %v831
        %v833 = vpop.permute.xlu0 %832
        %834 = xla_tuple %v833, %v831
        %835 = xla_tuple %834
        %vm836 = vcmp.gt.f32.partialorder %v833, %v831
        %v837 = vsel %vm836, 1, 0
        %838 = xla_tuple %v837
        %839 = xla_tuple %v831, %v833
        %840 = xla_tuple %839
        %vm841 = vcmp.gt.f32.partialorder %v831, %v833
        %v842 = vsel %vm841, 1, 0
        %843 = xla_tuple %v842
        %vm844 = vcmp.ne.s32.totalorder %v837, 0
        %vm845 = vcmp.ne.s32.totalorder %v842, 0
        %v846 = vsel %vm844, %v833, %v831
        %v847 = vsel %vm845, %v833, %v831
        %v848 = vsel %vm828, %v846, %v847
        %s850 = scalar_lea.vmem %s89, 0 [#allocation1]
        %851 = vst [vmem:[%s850] sm:$0xff] %v848
        %s852 = sadd.s32 %s820, 128
        %s854 = scalar_lea.vmem %s89, 8 [#allocation1]
        %v855 = vld [vmem:[%s854] sm:$0xff]
        %856 = vperm.xlu0 %824, %v855
        %v857 = vpop.permute.xlu0 %856
        %858 = xla_tuple %v857, %v855
        %859 = xla_tuple %858
        %vm860 = vcmp.gt.f32.partialorder %v857, %v855
        %v861 = vsel %vm860, 1, 0
        %862 = xla_tuple %v861
        %863 = xla_tuple %v855, %v857
        %864 = xla_tuple %863
        %vm865 = vcmp.gt.f32.partialorder %v855, %v857
        %v866 = vsel %vm865, 1, 0
        %867 = xla_tuple %v866
        %vm868 = vcmp.ne.s32.totalorder %v861, 0
        %vm869 = vcmp.ne.s32.totalorder %v866, 0
        %v870 = vsel %vm868, %v857, %v855
        %v871 = vsel %vm869, %v857, %v855
        %v872 = vsel %vm828, %v870, %v871
        %s874 = scalar_lea.vmem %s89, 8 [#allocation1]
        %875 = vst [vmem:[%s874] sm:$0xff] %v872
        %s876 = smul.u32 %s90, 128
        %v877 = vlaneseq
        %v878 = vand.u32 %v877, 127
        %v879 = vxor.u32 %v878, 1
        %880 = vset.pattern.permute.xlu0 %v879
        %v881 = vlaneseq
        %v882 = vand.u32 %v881, 127
        %v883 = vand.u32 %v882, 1
        %vm884 = vcmp.eq.s32.totalorder 0, %v883
        %s886 = scalar_lea.vmem %s89, 0 [#allocation1]
        %v887 = vld [vmem:[%s886] sm:$0xff]
        %888 = vperm.xlu0 %880, %v887
        %v889 = vpop.permute.xlu0 %888
        %890 = xla_tuple %v889, %v887
        %891 = xla_tuple %890
        %vm892 = vcmp.gt.f32.partialorder %v889, %v887
        %v893 = vsel %vm892, 1, 0
        %894 = xla_tuple %v893
        %895 = xla_tuple %v887, %v889
        %896 = xla_tuple %895
        %vm897 = vcmp.gt.f32.partialorder %v887, %v889
        %v898 = vsel %vm897, 1, 0
        %899 = xla_tuple %v898
        %vm900 = vcmp.ne.s32.totalorder %v893, 0
        %vm901 = vcmp.ne.s32.totalorder %v898, 0
        %v902 = vsel %vm900, %v889, %v887
        %v903 = vsel %vm901, %v889, %v887
        %v904 = vsel %vm884, %v902, %v903
        %s906 = scalar_lea.vmem %s89, 0 [#allocation1]
        %907 = vst [vmem:[%s906] sm:$0xff] %v904
        %s908 = sadd.s32 %s876, 128
        %s910 = scalar_lea.vmem %s89, 8 [#allocation1]
        %v911 = vld [vmem:[%s910] sm:$0xff]
        %912 = vperm.xlu0 %880, %v911
        %v913 = vpop.permute.xlu0 %912
        %914 = xla_tuple %v913, %v911
        %915 = xla_tuple %914
        %vm916 = vcmp.gt.f32.partialorder %v913, %v911
        %v917 = vsel %vm916, 1, 0
        %918 = xla_tuple %v917
        %919 = xla_tuple %v911, %v913
        %920 = xla_tuple %919
        %vm921 = vcmp.gt.f32.partialorder %v911, %v913
        %v922 = vsel %vm921, 1, 0
        %923 = xla_tuple %v922
        %vm924 = vcmp.ne.s32.totalorder %v917, 0
        %vm925 = vcmp.ne.s32.totalorder %v922, 0
        %v926 = vsel %vm924, %v913, %v911
        %v927 = vsel %vm925, %v913, %v911
        %v928 = vsel %vm884, %v926, %v927
        %s930 = scalar_lea.vmem %s89, 8 [#allocation1]
        %931 = vst [vmem:[%s930] sm:$0xff] %v928
        %s932 = smul.u32 %s90, 128
        %v933 = vlaneseq
        %v934 = vand.u32 %v933, 127
        %v935 = vxor.u32 %v934, 63
        %936 = vset.pattern.permute.xlu0 %v935
        %v937 = vlaneseq
        %v938 = vand.u32 %v937, 127
        %v939 = vand.u32 %v938, 32
        %vm940 = vcmp.eq.s32.totalorder 0, %v939
        %s942 = scalar_lea.vmem %s89, 0 [#allocation1]
        %v943 = vld [vmem:[%s942] sm:$0xff]
        %944 = vperm.xlu0 %936, %v943
        %v945 = vpop.permute.xlu0 %944
        %946 = xla_tuple %v945, %v943
        %947 = xla_tuple %946
        %vm948 = vcmp.gt.f32.partialorder %v945, %v943
        %v949 = vsel %vm948, 1, 0
        %950 = xla_tuple %v949
        %951 = xla_tuple %v943, %v945
        %952 = xla_tuple %951
        %vm953 = vcmp.gt.f32.partialorder %v943, %v945
        %v954 = vsel %vm953, 1, 0
        %955 = xla_tuple %v954
        %vm956 = vcmp.ne.s32.totalorder %v949, 0
        %vm957 = vcmp.ne.s32.totalorder %v954, 0
        %v958 = vsel %vm956, %v945, %v943
        %v959 = vsel %vm957, %v945, %v943
        %v960 = vsel %vm940, %v958, %v959
        %s962 = scalar_lea.vmem %s89, 0 [#allocation1]
        %963 = vst [vmem:[%s962] sm:$0xff] %v960
        %s964 = sadd.s32 %s932, 128
        %s966 = scalar_lea.vmem %s89, 8 [#allocation1]
        %v967 = vld [vmem:[%s966] sm:$0xff]
        %968 = vperm.xlu0 %936, %v967
        %v969 = vpop.permute.xlu0 %968
        %970 = xla_tuple %v969, %v967
        %971 = xla_tuple %970
        %vm972 = vcmp.gt.f32.partialorder %v969, %v967
        %v973 = vsel %vm972, 1, 0
        %974 = xla_tuple %v973
        %975 = xla_tuple %v967, %v969
        %976 = xla_tuple %975
        %vm977 = vcmp.gt.f32.partialorder %v967, %v969
        %v978 = vsel %vm977, 1, 0
        %979 = xla_tuple %v978
        %vm980 = vcmp.ne.s32.totalorder %v973, 0
        %vm981 = vcmp.ne.s32.totalorder %v978, 0
        %v982 = vsel %vm980, %v969, %v967
        %v983 = vsel %vm981, %v969, %v967
        %v984 = vsel %vm940, %v982, %v983
        %s986 = scalar_lea.vmem %s89, 8 [#allocation1]
        %987 = vst [vmem:[%s986] sm:$0xff] %v984
        %s988 = smul.u32 %s90, 128
        %v989 = vlaneseq
        %v990 = vand.u32 %v989, 127
        %v991 = vxor.u32 %v990, 16
        %992 = vset.pattern.permute.xlu0 %v991
        %v993 = vlaneseq
        %v994 = vand.u32 %v993, 127
        %v995 = vand.u32 %v994, 16
        %vm996 = vcmp.eq.s32.totalorder 0, %v995
        %s998 = scalar_lea.vmem %s89, 0 [#allocation1]
        %v999 = vld [vmem:[%s998] sm:$0xff]
        %1000 = vperm.xlu0 %992, %v999
        %v1001 = vpop.permute.xlu0 %1000
        %1002 = xla_tuple %v1001, %v999
        %1003 = xla_tuple %1002
        %vm1004 = vcmp.gt.f32.partialorder %v1001, %v999
        %v1005 = vsel %vm1004, 1, 0
        %1006 = xla_tuple %v1005
        %1007 = xla_tuple %v999, %v1001
        %1008 = xla_tuple %1007
        %vm1009 = vcmp.gt.f32.partialorder %v999, %v1001
        %v1010 = vsel %vm1009, 1, 0
        %1011 = xla_tuple %v1010
        %vm1012 = vcmp.ne.s32.totalorder %v1005, 0
        %vm1013 = vcmp.ne.s32.totalorder %v1010, 0
        %v1014 = vsel %vm1012, %v1001, %v999
        %v1015 = vsel %vm1013, %v1001, %v999
        %v1016 = vsel %vm996, %v1014, %v1015
        %s1018 = scalar_lea.vmem %s89, 0 [#allocation1]
        %1019 = vst [vmem:[%s1018] sm:$0xff] %v1016
        %s1020 = sadd.s32 %s988, 128
        %s1022 = scalar_lea.vmem %s89, 8 [#allocation1]
        %v1023 = vld [vmem:[%s1022] sm:$0xff]
        %1024 = vperm.xlu0 %992, %v1023
        %v1025 = vpop.permute.xlu0 %1024
        %1026 = xla_tuple %v1025, %v1023
        %1027 = xla_tuple %1026
        %vm1028 = vcmp.gt.f32.partialorder %v1025, %v1023
        %v1029 = vsel %vm1028, 1, 0
        %1030 = xla_tuple %v1029
        %1031 = xla_tuple %v1023, %v1025
        %1032 = xla_tuple %1031
        %vm1033 = vcmp.gt.f32.partialorder %v1023, %v1025
        %v1034 = vsel %vm1033, 1, 0
        %1035 = xla_tuple %v1034
        %vm1036 = vcmp.ne.s32.totalorder %v1029, 0
        %vm1037 = vcmp.ne.s32.totalorder %v1034, 0
        %v1038 = vsel %vm1036, %v1025, %v1023
        %v1039 = vsel %vm1037, %v1025, %v1023
        %v1040 = vsel %vm996, %v1038, %v1039
        %s1042 = scalar_lea.vmem %s89, 8 [#allocation1]
        %1043 = vst [vmem:[%s1042] sm:$0xff] %v1040
        %s1044 = smul.u32 %s90, 128
        %v1045 = vlaneseq
        %v1046 = vand.u32 %v1045, 127
        %v1047 = vxor.u32 %v1046, 8
        %1048 = vset.pattern.permute.xlu0 %v1047
        %v1049 = vlaneseq
        %v1050 = vand.u32 %v1049, 127
        %v1051 = vand.u32 %v1050, 8
        %vm1052 = vcmp.eq.s32.totalorder 0, %v1051
        %s1054 = scalar_lea.vmem %s89, 0 [#allocation1]
        %v1055 = vld [vmem:[%s1054] sm:$0xff]
        %1056 = vperm.xlu0 %1048, %v1055
        %v1057 = vpop.permute.xlu0 %1056
        %1058 = xla_tuple %v1057, %v1055
        %1059 = xla_tuple %1058
        %vm1060 = vcmp.gt.f32.partialorder %v1057, %v1055
        %v1061 = vsel %vm1060, 1, 0
        %1062 = xla_tuple %v1061
        %1063 = xla_tuple %v1055, %v1057
        %1064 = xla_tuple %1063
        %vm1065 = vcmp.gt.f32.partialorder %v1055, %v1057
        %v1066 = vsel %vm1065, 1, 0
        %1067 = xla_tuple %v1066
        %vm1068 = vcmp.ne.s32.totalorder %v1061, 0
        %vm1069 = vcmp.ne.s32.totalorder %v1066, 0
        %v1070 = vsel %vm1068, %v1057, %v1055
        %v1071 = vsel %vm1069, %v1057, %v1055
        %v1072 = vsel %vm1052, %v1070, %v1071
        %s1074 = scalar_lea.vmem %s89, 0 [#allocation1]
        %1075 = vst [vmem:[%s1074] sm:$0xff] %v1072
        %s1076 = sadd.s32 %s1044, 128
        %s1078 = scalar_lea.vmem %s89, 8 [#allocation1]
        %v1079 = vld [vmem:[%s1078] sm:$0xff]
        %1080 = vperm.xlu0 %1048, %v1079
        %v1081 = vpop.permute.xlu0 %1080
        %1082 = xla_tuple %v1081, %v1079
        %1083 = xla_tuple %1082
        %vm1084 = vcmp.gt.f32.partialorder %v1081, %v1079
        %v1085 = vsel %vm1084, 1, 0
        %1086 = xla_tuple %v1085
        %1087 = xla_tuple %v1079, %v1081
        %1088 = xla_tuple %1087
        %vm1089 = vcmp.gt.f32.partialorder %v1079, %v1081
        %v1090 = vsel %vm1089, 1, 0
        %1091 = xla_tuple %v1090
        %vm1092 = vcmp.ne.s32.totalorder %v1085, 0
        %vm1093 = vcmp.ne.s32.totalorder %v1090, 0
        %v1094 = vsel %vm1092, %v1081, %v1079
        %v1095 = vsel %vm1093, %v1081, %v1079
        %v1096 = vsel %vm1052, %v1094, %v1095
        %s1098 = scalar_lea.vmem %s89, 8 [#allocation1]
        %1099 = vst [vmem:[%s1098] sm:$0xff] %v1096
        %s1100 = smul.u32 %s90, 128
        %v1101 = vlaneseq
        %v1102 = vand.u32 %v1101, 127
        %v1103 = vxor.u32 %v1102, 4
        %1104 = vset.pattern.permute.xlu0 %v1103
        %v1105 = vlaneseq
        %v1106 = vand.u32 %v1105, 127
        %v1107 = vand.u32 %v1106, 4
        %vm1108 = vcmp.eq.s32.totalorder 0, %v1107
        %s1110 = scalar_lea.vmem %s89, 0 [#allocation1]
        %v1111 = vld [vmem:[%s1110] sm:$0xff]
        %1112 = vperm.xlu0 %1104, %v1111
        %v1113 = vpop.permute.xlu0 %1112
        %1114 = xla_tuple %v1113, %v1111
        %1115 = xla_tuple %1114
        %vm1116 = vcmp.gt.f32.partialorder %v1113, %v1111
        %v1117 = vsel %vm1116, 1, 0
        %1118 = xla_tuple %v1117
        %1119 = xla_tuple %v1111, %v1113
        %1120 = xla_tuple %1119
        %vm1121 = vcmp.gt.f32.partialorder %v1111, %v1113
        %v1122 = vsel %vm1121, 1, 0
        %1123 = xla_tuple %v1122
        %vm1124 = vcmp.ne.s32.totalorder %v1117, 0
        %vm1125 = vcmp.ne.s32.totalorder %v1122, 0
        %v1126 = vsel %vm1124, %v1113, %v1111
        %v1127 = vsel %vm1125, %v1113, %v1111
        %v1128 = vsel %vm1108, %v1126, %v1127
        %s1130 = scalar_lea.vmem %s89, 0 [#allocation1]
        %1131 = vst [vmem:[%s1130] sm:$0xff] %v1128
        %s1132 = sadd.s32 %s1100, 128
        %s1134 = scalar_lea.vmem %s89, 8 [#allocation1]
        %v1135 = vld [vmem:[%s1134] sm:$0xff]
        %1136 = vperm.xlu0 %1104, %v1135
        %v1137 = vpop.permute.xlu0 %1136
        %1138 = xla_tuple %v1137, %v1135
        %1139 = xla_tuple %1138
        %vm1140 = vcmp.gt.f32.partialorder %v1137, %v1135
        %v1141 = vsel %vm1140, 1, 0
        %1142 = xla_tuple %v1141
        %1143 = xla_tuple %v1135, %v1137
        %1144 = xla_tuple %1143
        %vm1145 = vcmp.gt.f32.partialorder %v1135, %v1137
        %v1146 = vsel %vm1145, 1, 0
        %1147 = xla_tuple %v1146
        %vm1148 = vcmp.ne.s32.totalorder %v1141, 0
        %vm1149 = vcmp.ne.s32.totalorder %v1146, 0
        %v1150 = vsel %vm1148, %v1137, %v1135
        %v1151 = vsel %vm1149, %v1137, %v1135
        %v1152 = vsel %vm1108, %v1150, %v1151
        %s1154 = scalar_lea.vmem %s89, 8 [#allocation1]
        %1155 = vst [vmem:[%s1154] sm:$0xff] %v1152
        %s1156 = smul.u32 %s90, 128
        %v1157 = vlaneseq
        %v1158 = vand.u32 %v1157, 127
        %v1159 = vxor.u32 %v1158, 2
        %1160 = vset.pattern.permute.xlu0 %v1159
        %v1161 = vlaneseq
        %v1162 = vand.u32 %v1161, 127
        %v1163 = vand.u32 %v1162, 2
        %vm1164 = vcmp.eq.s32.totalorder 0, %v1163
        %s1166 = scalar_lea.vmem %s89, 0 [#allocation1]
        %v1167 = vld [vmem:[%s1166] sm:$0xff]
        %1168 = vperm.xlu0 %1160, %v1167
        %v1169 = vpop.permute.xlu0 %1168
        %1170 = xla_tuple %v1169, %v1167
        %1171 = xla_tuple %1170
        %vm1172 = vcmp.gt.f32.partialorder %v1169, %v1167
        %v1173 = vsel %vm1172, 1, 0
        %1174 = xla_tuple %v1173
        %1175 = xla_tuple %v1167, %v1169
        %1176 = xla_tuple %1175
        %vm1177 = vcmp.gt.f32.partialorder %v1167, %v1169
        %v1178 = vsel %vm1177, 1, 0
        %1179 = xla_tuple %v1178
        %vm1180 = vcmp.ne.s32.totalorder %v1173, 0
        %vm1181 = vcmp.ne.s32.totalorder %v1178, 0
        %v1182 = vsel %vm1180, %v1169, %v1167
        %v1183 = vsel %vm1181, %v1169, %v1167
        %v1184 = vsel %vm1164, %v1182, %v1183
        %s1186 = scalar_lea.vmem %s89, 0 [#allocation1]
        %1187 = vst [vmem:[%s1186] sm:$0xff] %v1184
        %s1188 = sadd.s32 %s1156, 128
        %s1190 = scalar_lea.vmem %s89, 8 [#allocation1]
        %v1191 = vld [vmem:[%s1190] sm:$0xff]
        %1192 = vperm.xlu0 %1160, %v1191
        %v1193 = vpop.permute.xlu0 %1192
        %1194 = xla_tuple %v1193, %v1191
        %1195 = xla_tuple %1194
        %vm1196 = vcmp.gt.f32.partialorder %v1193, %v1191
        %v1197 = vsel %vm1196, 1, 0
        %1198 = xla_tuple %v1197
        %1199 = xla_tuple %v1191, %v1193
        %1200 = xla_tuple %1199
        %vm1201 = vcmp.gt.f32.partialorder %v1191, %v1193
        %v1202 = vsel %vm1201, 1, 0
        %1203 = xla_tuple %v1202
        %vm1204 = vcmp.ne.s32.totalorder %v1197, 0
        %vm1205 = vcmp.ne.s32.totalorder %v1202, 0
        %v1206 = vsel %vm1204, %v1193, %v1191
        %v1207 = vsel %vm1205, %v1193, %v1191
        %v1208 = vsel %vm1164, %v1206, %v1207
        %s1210 = scalar_lea.vmem %s89, 8 [#allocation1]
        %1211 = vst [vmem:[%s1210] sm:$0xff] %v1208
        %s1212 = smul.u32 %s90, 128
        %v1213 = vlaneseq
        %v1214 = vand.u32 %v1213, 127
        %v1215 = vxor.u32 %v1214, 1
        %1216 = vset.pattern.permute.xlu0 %v1215
        %v1217 = vlaneseq
        %v1218 = vand.u32 %v1217, 127
        %v1219 = vand.u32 %v1218, 1
        %vm1220 = vcmp.eq.s32.totalorder 0, %v1219
        %s1222 = scalar_lea.vmem %s89, 0 [#allocation1]
        %v1223 = vld [vmem:[%s1222] sm:$0xff]
        %1224 = vperm.xlu0 %1216, %v1223
        %v1225 = vpop.permute.xlu0 %1224
        %1226 = xla_tuple %v1225, %v1223
        %1227 = xla_tuple %1226
        %vm1228 = vcmp.gt.f32.partialorder %v1225, %v1223
        %v1229 = vsel %vm1228, 1, 0
        %1230 = xla_tuple %v1229
        %1231 = xla_tuple %v1223, %v1225
        %1232 = xla_tuple %1231
        %vm1233 = vcmp.gt.f32.partialorder %v1223, %v1225
        %v1234 = vsel %vm1233, 1, 0
        %1235 = xla_tuple %v1234
        %vm1236 = vcmp.ne.s32.totalorder %v1229, 0
        %vm1237 = vcmp.ne.s32.totalorder %v1234, 0
        %v1238 = vsel %vm1236, %v1225, %v1223
        %v1239 = vsel %vm1237, %v1225, %v1223
        %v1240 = vsel %vm1220, %v1238, %v1239
        %s1242 = scalar_lea.vmem %s89, 0 [#allocation1]
        %1243 = vst [vmem:[%s1242] sm:$0xff] %v1240
        %s1244 = sadd.s32 %s1212, 128
        %s1246 = scalar_lea.vmem %s89, 8 [#allocation1]
        %v1247 = vld [vmem:[%s1246] sm:$0xff]
        %1248 = vperm.xlu0 %1216, %v1247
        %v1249 = vpop.permute.xlu0 %1248
        %1250 = xla_tuple %v1249, %v1247
        %1251 = xla_tuple %1250
        %vm1252 = vcmp.gt.f32.partialorder %v1249, %v1247
        %v1253 = vsel %vm1252, 1, 0
        %1254 = xla_tuple %v1253
        %1255 = xla_tuple %v1247, %v1249
        %1256 = xla_tuple %1255
        %vm1257 = vcmp.gt.f32.partialorder %v1247, %v1249
        %v1258 = vsel %vm1257, 1, 0
        %1259 = xla_tuple %v1258
        %vm1260 = vcmp.ne.s32.totalorder %v1253, 0
        %vm1261 = vcmp.ne.s32.totalorder %v1258, 0
        %v1262 = vsel %vm1260, %v1249, %v1247
        %v1263 = vsel %vm1261, %v1249, %v1247
        %v1264 = vsel %vm1220, %v1262, %v1263
        %s1266 = scalar_lea.vmem %s89, 8 [#allocation1]
        %1267 = vst [vmem:[%s1266] sm:$0xff] %v1264
        %s1268 = smul.u32 %s90, 128
        %v1269 = vlaneseq
        %v1270 = vand.u32 %v1269, 127
        %v1271 = vxor.u32 %v1270, 127
        %1272 = vset.pattern.permute.xlu0 %v1271
        %v1273 = vlaneseq
        %v1274 = vand.u32 %v1273, 127
        %v1275 = vand.u32 %v1274, 64
        %vm1276 = vcmp.eq.s32.totalorder 0, %v1275
        %s1278 = scalar_lea.vmem %s89, 0 [#allocation1]
        %v1279 = vld [vmem:[%s1278] sm:$0xff]
        %1280 = vperm.xlu0 %1272, %v1279
        %v1281 = vpop.permute.xlu0 %1280
        %1282 = xla_tuple %v1281, %v1279
        %1283 = xla_tuple %1282
        %vm1284 = vcmp.gt.f32.partialorder %v1281, %v1279
        %v1285 = vsel %vm1284, 1, 0
        %1286 = xla_tuple %v1285
        %1287 = xla_tuple %v1279, %v1281
        %1288 = xla_tuple %1287
        %vm1289 = vcmp.gt.f32.partialorder %v1279, %v1281
        %v1290 = vsel %vm1289, 1, 0
        %1291 = xla_tuple %v1290
        %vm1292 = vcmp.ne.s32.totalorder %v1285, 0
        %vm1293 = vcmp.ne.s32.totalorder %v1290, 0
        %v1294 = vsel %vm1292, %v1281, %v1279
        %v1295 = vsel %vm1293, %v1281, %v1279
        %v1296 = vsel %vm1276, %v1294, %v1295
        %s1298 = scalar_lea.vmem %s89, 0 [#allocation1]
        %1299 = vst [vmem:[%s1298] sm:$0xff] %v1296
        %s1300 = sadd.s32 %s1268, 128
        %s1302 = scalar_lea.vmem %s89, 8 [#allocation1]
        %v1303 = vld [vmem:[%s1302] sm:$0xff]
        %1304 = vperm.xlu0 %1272, %v1303
        %v1305 = vpop.permute.xlu0 %1304
        %1306 = xla_tuple %v1305, %v1303
        %1307 = xla_tuple %1306
        %vm1308 = vcmp.gt.f32.partialorder %v1305, %v1303
        %v1309 = vsel %vm1308, 1, 0
        %1310 = xla_tuple %v1309
        %1311 = xla_tuple %v1303, %v1305
        %1312 = xla_tuple %1311
        %vm1313 = vcmp.gt.f32.partialorder %v1303, %v1305
        %v1314 = vsel %vm1313, 1, 0
        %1315 = xla_tuple %v1314
        %vm1316 = vcmp.ne.s32.totalorder %v1309, 0
        %vm1317 = vcmp.ne.s32.totalorder %v1314, 0
        %v1318 = vsel %vm1316, %v1305, %v1303
        %v1319 = vsel %vm1317, %v1305, %v1303
        %v1320 = vsel %vm1276, %v1318, %v1319
        %s1322 = scalar_lea.vmem %s89, 8 [#allocation1]
        %1323 = vst [vmem:[%s1322] sm:$0xff] %v1320
        %s1324 = smul.u32 %s90, 128
        %v1325 = vlaneseq
        %v1326 = vand.u32 %v1325, 127
        %v1327 = vxor.u32 %v1326, 32
        %1328 = vset.pattern.permute.xlu0 %v1327
        %v1329 = vlaneseq
        %v1330 = vand.u32 %v1329, 127
        %v1331 = vand.u32 %v1330, 32
        %vm1332 = vcmp.eq.s32.totalorder 0, %v1331
        %s1334 = scalar_lea.vmem %s89, 0 [#allocation1]
        %v1335 = vld [vmem:[%s1334] sm:$0xff]
        %1336 = vperm.xlu0 %1328, %v1335
        %v1337 = vpop.permute.xlu0 %1336
        %1338 = xla_tuple %v1337, %v1335
        %1339 = xla_tuple %1338
        %vm1340 = vcmp.gt.f32.partialorder %v1337, %v1335
        %v1341 = vsel %vm1340, 1, 0
        %1342 = xla_tuple %v1341
        %1343 = xla_tuple %v1335, %v1337
        %1344 = xla_tuple %1343
        %vm1345 = vcmp.gt.f32.partialorder %v1335, %v1337
        %v1346 = vsel %vm1345, 1, 0
        %1347 = xla_tuple %v1346
        %vm1348 = vcmp.ne.s32.totalorder %v1341, 0
        %vm1349 = vcmp.ne.s32.totalorder %v1346, 0
        %v1350 = vsel %vm1348, %v1337, %v1335
        %v1351 = vsel %vm1349, %v1337, %v1335
        %v1352 = vsel %vm1332, %v1350, %v1351
        %s1354 = scalar_lea.vmem %s89, 0 [#allocation1]
        %1355 = vst [vmem:[%s1354] sm:$0xff] %v1352
        %s1356 = sadd.s32 %s1324, 128
        %s1358 = scalar_lea.vmem %s89, 8 [#allocation1]
        %v1359 = vld [vmem:[%s1358] sm:$0xff]
        %1360 = vperm.xlu0 %1328, %v1359
        %v1361 = vpop.permute.xlu0 %1360
        %1362 = xla_tuple %v1361, %v1359
        %1363 = xla_tuple %1362
        %vm1364 = vcmp.gt.f32.partialorder %v1361, %v1359
        %v1365 = vsel %vm1364, 1, 0
        %1366 = xla_tuple %v1365
        %1367 = xla_tuple %v1359, %v1361
        %1368 = xla_tuple %1367
        %vm1369 = vcmp.gt.f32.partialorder %v1359, %v1361
        %v1370 = vsel %vm1369, 1, 0
        %1371 = xla_tuple %v1370
        %vm1372 = vcmp.ne.s32.totalorder %v1365, 0
        %vm1373 = vcmp.ne.s32.totalorder %v1370, 0
        %v1374 = vsel %vm1372, %v1361, %v1359
        %v1375 = vsel %vm1373, %v1361, %v1359
        %v1376 = vsel %vm1332, %v1374, %v1375
        %s1378 = scalar_lea.vmem %s89, 8 [#allocation1]
        %1379 = vst [vmem:[%s1378] sm:$0xff] %v1376
        %s1380 = smul.u32 %s90, 128
        %v1381 = vlaneseq
        %v1382 = vand.u32 %v1381, 127
        %v1383 = vxor.u32 %v1382, 16
        %1384 = vset.pattern.permute.xlu0 %v1383
        %v1385 = vlaneseq
        %v1386 = vand.u32 %v1385, 127
        %v1387 = vand.u32 %v1386, 16
        %vm1388 = vcmp.eq.s32.totalorder 0, %v1387
        %s1390 = scalar_lea.vmem %s89, 0 [#allocation1]
        %v1391 = vld [vmem:[%s1390] sm:$0xff]
        %1392 = vperm.xlu0 %1384, %v1391
        %v1393 = vpop.permute.xlu0 %1392
        %1394 = xla_tuple %v1393, %v1391
        %1395 = xla_tuple %1394
        %vm1396 = vcmp.gt.f32.partialorder %v1393, %v1391
        %v1397 = vsel %vm1396, 1, 0
        %1398 = xla_tuple %v1397
        %1399 = xla_tuple %v1391, %v1393
        %1400 = xla_tuple %1399
        %vm1401 = vcmp.gt.f32.partialorder %v1391, %v1393
        %v1402 = vsel %vm1401, 1, 0
        %1403 = xla_tuple %v1402
        %vm1404 = vcmp.ne.s32.totalorder %v1397, 0
        %vm1405 = vcmp.ne.s32.totalorder %v1402, 0
        %v1406 = vsel %vm1404, %v1393, %v1391
        %v1407 = vsel %vm1405, %v1393, %v1391
        %v1408 = vsel %vm1388, %v1406, %v1407
        %s1410 = scalar_lea.vmem %s89, 0 [#allocation1]
        %1411 = vst [vmem:[%s1410] sm:$0xff] %v1408
        %s1412 = sadd.s32 %s1380, 128
        %s1414 = scalar_lea.vmem %s89, 8 [#allocation1]
        %v1415 = vld [vmem:[%s1414] sm:$0xff]
        %1416 = vperm.xlu0 %1384, %v1415
        %v1417 = vpop.permute.xlu0 %1416
        %1418 = xla_tuple %v1417, %v1415
        %1419 = xla_tuple %1418
        %vm1420 = vcmp.gt.f32.partialorder %v1417, %v1415
        %v1421 = vsel %vm1420, 1, 0
        %1422 = xla_tuple %v1421
        %1423 = xla_tuple %v1415, %v1417
        %1424 = xla_tuple %1423
        %vm1425 = vcmp.gt.f32.partialorder %v1415, %v1417
        %v1426 = vsel %vm1425, 1, 0
        %1427 = xla_tuple %v1426
        %vm1428 = vcmp.ne.s32.totalorder %v1421, 0
        %vm1429 = vcmp.ne.s32.totalorder %v1426, 0
        %v1430 = vsel %vm1428, %v1417, %v1415
        %v1431 = vsel %vm1429, %v1417, %v1415
        %v1432 = vsel %vm1388, %v1430, %v1431
        %s1434 = scalar_lea.vmem %s89, 8 [#allocation1]
        %1435 = vst [vmem:[%s1434] sm:$0xff] %v1432
        %s1436 = smul.u32 %s90, 128
        %v1437 = vlaneseq
        %v1438 = vand.u32 %v1437, 127
        %v1439 = vxor.u32 %v1438, 8
        %1440 = vset.pattern.permute.xlu0 %v1439
        %v1441 = vlaneseq
        %v1442 = vand.u32 %v1441, 127
        %v1443 = vand.u32 %v1442, 8
        %vm1444 = vcmp.eq.s32.totalorder 0, %v1443
        %s1446 = scalar_lea.vmem %s89, 0 [#allocation1]
        %v1447 = vld [vmem:[%s1446] sm:$0xff]
        %1448 = vperm.xlu0 %1440, %v1447
        %v1449 = vpop.permute.xlu0 %1448
        %1450 = xla_tuple %v1449, %v1447
        %1451 = xla_tuple %1450
        %vm1452 = vcmp.gt.f32.partialorder %v1449, %v1447
        %v1453 = vsel %vm1452, 1, 0
        %1454 = xla_tuple %v1453
        %1455 = xla_tuple %v1447, %v1449
        %1456 = xla_tuple %1455
        %vm1457 = vcmp.gt.f32.partialorder %v1447, %v1449
        %v1458 = vsel %vm1457, 1, 0
        %1459 = xla_tuple %v1458
        %vm1460 = vcmp.ne.s32.totalorder %v1453, 0
        %vm1461 = vcmp.ne.s32.totalorder %v1458, 0
        %v1462 = vsel %vm1460, %v1449, %v1447
        %v1463 = vsel %vm1461, %v1449, %v1447
        %v1464 = vsel %vm1444, %v1462, %v1463
        %s1466 = scalar_lea.vmem %s89, 0 [#allocation1]
        %1467 = vst [vmem:[%s1466] sm:$0xff] %v1464
        %s1468 = sadd.s32 %s1436, 128
        %s1470 = scalar_lea.vmem %s89, 8 [#allocation1]
        %v1471 = vld [vmem:[%s1470] sm:$0xff]
        %1472 = vperm.xlu0 %1440, %v1471
        %v1473 = vpop.permute.xlu0 %1472
        %1474 = xla_tuple %v1473, %v1471
        %1475 = xla_tuple %1474
        %vm1476 = vcmp.gt.f32.partialorder %v1473, %v1471
        %v1477 = vsel %vm1476, 1, 0
        %1478 = xla_tuple %v1477
        %1479 = xla_tuple %v1471, %v1473
        %1480 = xla_tuple %1479
        %vm1481 = vcmp.gt.f32.partialorder %v1471, %v1473
        %v1482 = vsel %vm1481, 1, 0
        %1483 = xla_tuple %v1482
        %vm1484 = vcmp.ne.s32.totalorder %v1477, 0
        %vm1485 = vcmp.ne.s32.totalorder %v1482, 0
        %v1486 = vsel %vm1484, %v1473, %v1471
        %v1487 = vsel %vm1485, %v1473, %v1471
        %v1488 = vsel %vm1444, %v1486, %v1487
        %s1490 = scalar_lea.vmem %s89, 8 [#allocation1]
        %1491 = vst [vmem:[%s1490] sm:$0xff] %v1488
        %s1492 = smul.u32 %s90, 128
        %v1493 = vlaneseq
        %v1494 = vand.u32 %v1493, 127
        %v1495 = vxor.u32 %v1494, 4
        %1496 = vset.pattern.permute.xlu0 %v1495
        %v1497 = vlaneseq
        %v1498 = vand.u32 %v1497, 127
        %v1499 = vand.u32 %v1498, 4
        %vm1500 = vcmp.eq.s32.totalorder 0, %v1499
        %s1502 = scalar_lea.vmem %s89, 0 [#allocation1]
        %v1503 = vld [vmem:[%s1502] sm:$0xff]
        %1504 = vperm.xlu0 %1496, %v1503
        %v1505 = vpop.permute.xlu0 %1504
        %1506 = xla_tuple %v1505, %v1503
        %1507 = xla_tuple %1506
        %vm1508 = vcmp.gt.f32.partialorder %v1505, %v1503
        %v1509 = vsel %vm1508, 1, 0
        %1510 = xla_tuple %v1509
        %1511 = xla_tuple %v1503, %v1505
        %1512 = xla_tuple %1511
        %vm1513 = vcmp.gt.f32.partialorder %v1503, %v1505
        %v1514 = vsel %vm1513, 1, 0
        %1515 = xla_tuple %v1514
        %vm1516 = vcmp.ne.s32.totalorder %v1509, 0
        %vm1517 = vcmp.ne.s32.totalorder %v1514, 0
        %v1518 = vsel %vm1516, %v1505, %v1503
        %v1519 = vsel %vm1517, %v1505, %v1503
        %v1520 = vsel %vm1500, %v1518, %v1519
        %s1522 = scalar_lea.vmem %s89, 0 [#allocation1]
        %1523 = vst [vmem:[%s1522] sm:$0xff] %v1520
        %s1524 = sadd.s32 %s1492, 128
        %s1526 = scalar_lea.vmem %s89, 8 [#allocation1]
        %v1527 = vld [vmem:[%s1526] sm:$0xff]
        %1528 = vperm.xlu0 %1496, %v1527
        %v1529 = vpop.permute.xlu0 %1528
        %1530 = xla_tuple %v1529, %v1527
        %1531 = xla_tuple %1530
        %vm1532 = vcmp.gt.f32.partialorder %v1529, %v1527
        %v1533 = vsel %vm1532, 1, 0
        %1534 = xla_tuple %v1533
        %1535 = xla_tuple %v1527, %v1529
        %1536 = xla_tuple %1535
        %vm1537 = vcmp.gt.f32.partialorder %v1527, %v1529
        %v1538 = vsel %vm1537, 1, 0
        %1539 = xla_tuple %v1538
        %vm1540 = vcmp.ne.s32.totalorder %v1533, 0
        %vm1541 = vcmp.ne.s32.totalorder %v1538, 0
        %v1542 = vsel %vm1540, %v1529, %v1527
        %v1543 = vsel %vm1541, %v1529, %v1527
        %v1544 = vsel %vm1500, %v1542, %v1543
        %s1546 = scalar_lea.vmem %s89, 8 [#allocation1]
        %1547 = vst [vmem:[%s1546] sm:$0xff] %v1544
        %s1548 = smul.u32 %s90, 128
        %v1549 = vlaneseq
        %v1550 = vand.u32 %v1549, 127
        %v1551 = vxor.u32 %v1550, 2
        %1552 = vset.pattern.permute.xlu0 %v1551
        %v1553 = vlaneseq
        %v1554 = vand.u32 %v1553, 127
        %v1555 = vand.u32 %v1554, 2
        %vm1556 = vcmp.eq.s32.totalorder 0, %v1555
        %s1558 = scalar_lea.vmem %s89, 0 [#allocation1]
        %v1559 = vld [vmem:[%s1558] sm:$0xff]
        %1560 = vperm.xlu0 %1552, %v1559
        %v1561 = vpop.permute.xlu0 %1560
        %1562 = xla_tuple %v1561, %v1559
        %1563 = xla_tuple %1562
        %vm1564 = vcmp.gt.f32.partialorder %v1561, %v1559
        %v1565 = vsel %vm1564, 1, 0
        %1566 = xla_tuple %v1565
        %1567 = xla_tuple %v1559, %v1561
        %1568 = xla_tuple %1567
        %vm1569 = vcmp.gt.f32.partialorder %v1559, %v1561
        %v1570 = vsel %vm1569, 1, 0
        %1571 = xla_tuple %v1570
        %vm1572 = vcmp.ne.s32.totalorder %v1565, 0
        %vm1573 = vcmp.ne.s32.totalorder %v1570, 0
        %v1574 = vsel %vm1572, %v1561, %v1559
        %v1575 = vsel %vm1573, %v1561, %v1559
        %v1576 = vsel %vm1556, %v1574, %v1575
        %s1578 = scalar_lea.vmem %s89, 0 [#allocation1]
        %1579 = vst [vmem:[%s1578] sm:$0xff] %v1576
        %s1580 = sadd.s32 %s1548, 128
        %s1582 = scalar_lea.vmem %s89, 8 [#allocation1]
        %v1583 = vld [vmem:[%s1582] sm:$0xff]
        %1584 = vperm.xlu0 %1552, %v1583
        %v1585 = vpop.permute.xlu0 %1584
        %1586 = xla_tuple %v1585, %v1583
        %1587 = xla_tuple %1586
        %vm1588 = vcmp.gt.f32.partialorder %v1585, %v1583
        %v1589 = vsel %vm1588, 1, 0
        %1590 = xla_tuple %v1589
        %1591 = xla_tuple %v1583, %v1585
        %1592 = xla_tuple %1591
        %vm1593 = vcmp.gt.f32.partialorder %v1583, %v1585
        %v1594 = vsel %vm1593, 1, 0
        %1595 = xla_tuple %v1594
        %vm1596 = vcmp.ne.s32.totalorder %v1589, 0
        %vm1597 = vcmp.ne.s32.totalorder %v1594, 0
        %v1598 = vsel %vm1596, %v1585, %v1583
        %v1599 = vsel %vm1597, %v1585, %v1583
        %v1600 = vsel %vm1556, %v1598, %v1599
        %s1602 = scalar_lea.vmem %s89, 8 [#allocation1]
        %1603 = vst [vmem:[%s1602] sm:$0xff] %v1600
        %s1604 = smul.u32 %s90, 128
        %v1605 = vlaneseq
        %v1606 = vand.u32 %v1605, 127
        %v1607 = vxor.u32 %v1606, 1
        %1608 = vset.pattern.permute.xlu0 %v1607
        %v1609 = vlaneseq
        %v1610 = vand.u32 %v1609, 127
        %v1611 = vand.u32 %v1610, 1
        %vm1612 = vcmp.eq.s32.totalorder 0, %v1611
        %s1614 = scalar_lea.vmem %s89, 0 [#allocation1]
        %v1615 = vld [vmem:[%s1614] sm:$0xff]
        %1616 = vperm.xlu0 %1608, %v1615
        %v1617 = vpop.permute.xlu0 %1616
        %1618 = xla_tuple %v1617, %v1615
        %1619 = xla_tuple %1618
        %vm1620 = vcmp.gt.f32.partialorder %v1617, %v1615
        %v1621 = vsel %vm1620, 1, 0
        %1622 = xla_tuple %v1621
        %1623 = xla_tuple %v1615, %v1617
        %1624 = xla_tuple %1623
        %vm1625 = vcmp.gt.f32.partialorder %v1615, %v1617
        %v1626 = vsel %vm1625, 1, 0
        %1627 = xla_tuple %v1626
        %vm1628 = vcmp.ne.s32.totalorder %v1621, 0
        %vm1629 = vcmp.ne.s32.totalorder %v1626, 0
        %v1630 = vsel %vm1628, %v1617, %v1615
        %v1631 = vsel %vm1629, %v1617, %v1615
        %v1632 = vsel %vm1612, %v1630, %v1631
        %s1634 = scalar_lea.vmem %s89, 0 [#allocation1]
        %1635 = vst [vmem:[%s1634] sm:$0xff] %v1632
        %s1636 = sadd.s32 %s1604, 128
        %s1638 = scalar_lea.vmem %s89, 8 [#allocation1]
        %v1639 = vld [vmem:[%s1638] sm:$0xff]
        %1640 = vperm.xlu0 %1608, %v1639
        %v1641 = vpop.permute.xlu0 %1640
        %1642 = xla_tuple %v1641, %v1639
        %1643 = xla_tuple %1642
        %vm1644 = vcmp.gt.f32.partialorder %v1641, %v1639
        %v1645 = vsel %vm1644, 1, 0
        %1646 = xla_tuple %v1645
        %1647 = xla_tuple %v1639, %v1641
        %1648 = xla_tuple %1647
        %vm1649 = vcmp.gt.f32.partialorder %v1639, %v1641
        %v1650 = vsel %vm1649, 1, 0
        %1651 = xla_tuple %v1650
        %vm1652 = vcmp.ne.s32.totalorder %v1645, 0
        %vm1653 = vcmp.ne.s32.totalorder %v1650, 0
        %v1654 = vsel %vm1652, %v1641, %v1639
        %v1655 = vsel %vm1653, %v1641, %v1639
        %v1656 = vsel %vm1612, %v1654, %v1655
        %s1658 = scalar_lea.vmem %s89, 8 [#allocation1]
        %1659 = vst [vmem:[%s1658] sm:$0xff] %v1656
        %s1660 = smul.u32 %s90, 128
        %s1661 = sadd.s32 %s1660, 128
        %vm1662 = vcmp.ne.s32.totalorder 1, 0
        %s1664 = scalar_lea.vmem %s89, 0 [#allocation1]
        %s1666 = scalar_lea.vmem %s89, 8 [#allocation1]
        %v1667 = vld [vmem:[%s1664] sm:$0xff]
        %v1668 = vld [vmem:[%s1666] sm:$0xff]
        %v1669 = vlaneseq
        %v1670 = vand.u32 %v1669, 127
        %v1671 = vsub.s32 %v1670, 127
        %v1672 = vsub.s32 0, %v1671
        %1673 = vset.pattern.permute.xlu0 %v1672
        %1674 = vperm.xlu0 %1673, %v1668
        %v1675 = vpop.permute.xlu0 %1674
        %1676 = xla_tuple %v1675, %v1667
        %1677 = xla_tuple %1676
        %vm1678 = vcmp.gt.f32.partialorder %v1675, %v1667
        %v1679 = vsel %vm1678, 1, 0
        %1680 = xla_tuple %v1679
        %v1681 = vsel %vm1662, %v1679, 0
        %vm1682 = vcmp.ne.s32.totalorder %v1681, 0
        %v1683 = vsel %vm1682, %v1675, %v1667
        %v1684 = vsel %vm1682, %v1667, %v1675
        %s1686 = scalar_lea.vmem %s89, 0 [#allocation1]
        %1687 = vst [vmem:[%s1686] sm:$0xff] %v1683
        %s1689 = scalar_lea.vmem %s89, 8 [#allocation1]
        %v1690 = vlaneseq
        %v1691 = vand.u32 %v1690, 127
        %v1692 = vsub.s32 %v1691, 127
        %v1693 = vsub.s32 0, %v1692
        %1694 = vset.pattern.permute.xlu0 %v1693
        %1695 = vperm.xlu0 %1694, %v1684
        %v1696 = vpop.permute.xlu0 %1695
        %1697 = vst [vmem:[%s1689] sm:$0xff] %v1696
        %s1698 = smul.u32 %s90, 128
        %v1699 = vlaneseq
        %v1700 = vand.u32 %v1699, 127
        %v1701 = vxor.u32 %v1700, 64
        %1702 = vset.pattern.permute.xlu0 %v1701
        %v1703 = vlaneseq
        %v1704 = vand.u32 %v1703, 127
        %v1705 = vand.u32 %v1704, 64
        %vm1706 = vcmp.eq.s32.totalorder 0, %v1705
        %s1708 = scalar_lea.vmem %s89, 0 [#allocation1]
        %v1709 = vld [vmem:[%s1708] sm:$0xff]
        %1710 = vperm.xlu0 %1702, %v1709
        %v1711 = vpop.permute.xlu0 %1710
        %1712 = xla_tuple %v1711, %v1709
        %1713 = xla_tuple %1712
        %vm1714 = vcmp.gt.f32.partialorder %v1711, %v1709
        %v1715 = vsel %vm1714, 1, 0
        %1716 = xla_tuple %v1715
        %1717 = xla_tuple %v1709, %v1711
        %1718 = xla_tuple %1717
        %vm1719 = vcmp.gt.f32.partialorder %v1709, %v1711
        %v1720 = vsel %vm1719, 1, 0
        %1721 = xla_tuple %v1720
        %vm1722 = vcmp.ne.s32.totalorder %v1715, 0
        %vm1723 = vcmp.ne.s32.totalorder %v1720, 0
        %v1724 = vsel %vm1722, %v1711, %v1709
        %v1725 = vsel %vm1723, %v1711, %v1709
        %v1726 = vsel %vm1706, %v1724, %v1725
        %s1728 = scalar_lea.vmem %s89, 0 [#allocation1]
        %1729 = vst [vmem:[%s1728] sm:$0xff] %v1726
        %s1730 = sadd.s32 %s1698, 128
        %s1732 = scalar_lea.vmem %s89, 8 [#allocation1]
        %v1733 = vld [vmem:[%s1732] sm:$0xff]
        %1734 = vperm.xlu0 %1702, %v1733
        %v1735 = vpop.permute.xlu0 %1734
        %1736 = xla_tuple %v1735, %v1733
        %1737 = xla_tuple %1736
        %vm1738 = vcmp.gt.f32.partialorder %v1735, %v1733
        %v1739 = vsel %vm1738, 1, 0
        %1740 = xla_tuple %v1739
        %1741 = xla_tuple %v1733, %v1735
        %1742 = xla_tuple %1741
        %vm1743 = vcmp.gt.f32.partialorder %v1733, %v1735
        %v1744 = vsel %vm1743, 1, 0
        %1745 = xla_tuple %v1744
        %vm1746 = vcmp.ne.s32.totalorder %v1739, 0
        %vm1747 = vcmp.ne.s32.totalorder %v1744, 0
        %v1748 = vsel %vm1746, %v1735, %v1733
        %v1749 = vsel %vm1747, %v1735, %v1733
        %v1750 = vsel %vm1706, %v1748, %v1749
        %s1752 = scalar_lea.vmem %s89, 8 [#allocation1]
        %1753 = vst [vmem:[%s1752] sm:$0xff] %v1750
        %s1754 = smul.u32 %s90, 128
        %v1755 = vlaneseq
        %v1756 = vand.u32 %v1755, 127
        %v1757 = vxor.u32 %v1756, 32
        %1758 = vset.pattern.permute.xlu0 %v1757
        %v1759 = vlaneseq
        %v1760 = vand.u32 %v1759, 127
        %v1761 = vand.u32 %v1760, 32
        %vm1762 = vcmp.eq.s32.totalorder 0, %v1761
        %s1764 = scalar_lea.vmem %s89, 0 [#allocation1]
        %v1765 = vld [vmem:[%s1764] sm:$0xff]
        %1766 = vperm.xlu0 %1758, %v1765
        %v1767 = vpop.permute.xlu0 %1766
        %1768 = xla_tuple %v1767, %v1765
        %1769 = xla_tuple %1768
        %vm1770 = vcmp.gt.f32.partialorder %v1767, %v1765
        %v1771 = vsel %vm1770, 1, 0
        %1772 = xla_tuple %v1771
        %1773 = xla_tuple %v1765, %v1767
        %1774 = xla_tuple %1773
        %vm1775 = vcmp.gt.f32.partialorder %v1765, %v1767
        %v1776 = vsel %vm1775, 1, 0
        %1777 = xla_tuple %v1776
        %vm1778 = vcmp.ne.s32.totalorder %v1771, 0
        %vm1779 = vcmp.ne.s32.totalorder %v1776, 0
        %v1780 = vsel %vm1778, %v1767, %v1765
        %v1781 = vsel %vm1779, %v1767, %v1765
        %v1782 = vsel %vm1762, %v1780, %v1781
        %s1784 = scalar_lea.vmem %s89, 0 [#allocation1]
        %1785 = vst [vmem:[%s1784] sm:$0xff] %v1782
        %s1786 = sadd.s32 %s1754, 128
        %s1788 = scalar_lea.vmem %s89, 8 [#allocation1]
        %v1789 = vld [vmem:[%s1788] sm:$0xff]
        %1790 = vperm.xlu0 %1758, %v1789
        %v1791 = vpop.permute.xlu0 %1790
        %1792 = xla_tuple %v1791, %v1789
        %1793 = xla_tuple %1792
        %vm1794 = vcmp.gt.f32.partialorder %v1791, %v1789
        %v1795 = vsel %vm1794, 1, 0
        %1796 = xla_tuple %v1795
        %1797 = xla_tuple %v1789, %v1791
        %1798 = xla_tuple %1797
        %vm1799 = vcmp.gt.f32.partialorder %v1789, %v1791
        %v1800 = vsel %vm1799, 1, 0
        %1801 = xla_tuple %v1800
        %vm1802 = vcmp.ne.s32.totalorder %v1795, 0
        %vm1803 = vcmp.ne.s32.totalorder %v1800, 0
        %v1804 = vsel %vm1802, %v1791, %v1789
        %v1805 = vsel %vm1803, %v1791, %v1789
        %v1806 = vsel %vm1762, %v1804, %v1805
        %s1808 = scalar_lea.vmem %s89, 8 [#allocation1]
        %1809 = vst [vmem:[%s1808] sm:$0xff] %v1806
        %s1810 = smul.u32 %s90, 128
        %v1811 = vlaneseq
        %v1812 = vand.u32 %v1811, 127
        %v1813 = vxor.u32 %v1812, 16
        %1814 = vset.pattern.permute.xlu0 %v1813
        %v1815 = vlaneseq
        %v1816 = vand.u32 %v1815, 127
        %v1817 = vand.u32 %v1816, 16
        %vm1818 = vcmp.eq.s32.totalorder 0, %v1817
        %s1820 = scalar_lea.vmem %s89, 0 [#allocation1]
        %v1821 = vld [vmem:[%s1820] sm:$0xff]
        %1822 = vperm.xlu0 %1814, %v1821
        %v1823 = vpop.permute.xlu0 %1822
        %1824 = xla_tuple %v1823, %v1821
        %1825 = xla_tuple %1824
        %vm1826 = vcmp.gt.f32.partialorder %v1823, %v1821
        %v1827 = vsel %vm1826, 1, 0
        %1828 = xla_tuple %v1827
        %1829 = xla_tuple %v1821, %v1823
        %1830 = xla_tuple %1829
        %vm1831 = vcmp.gt.f32.partialorder %v1821, %v1823
        %v1832 = vsel %vm1831, 1, 0
        %1833 = xla_tuple %v1832
        %vm1834 = vcmp.ne.s32.totalorder %v1827, 0
        %vm1835 = vcmp.ne.s32.totalorder %v1832, 0
        %v1836 = vsel %vm1834, %v1823, %v1821
        %v1837 = vsel %vm1835, %v1823, %v1821
        %v1838 = vsel %vm1818, %v1836, %v1837
        %s1840 = scalar_lea.vmem %s89, 0 [#allocation1]
        %1841 = vst [vmem:[%s1840] sm:$0xff] %v1838
        %s1842 = sadd.s32 %s1810, 128
        %s1844 = scalar_lea.vmem %s89, 8 [#allocation1]
        %v1845 = vld [vmem:[%s1844] sm:$0xff]
        %1846 = vperm.xlu0 %1814, %v1845
        %v1847 = vpop.permute.xlu0 %1846
        %1848 = xla_tuple %v1847, %v1845
        %1849 = xla_tuple %1848
        %vm1850 = vcmp.gt.f32.partialorder %v1847, %v1845
        %v1851 = vsel %vm1850, 1, 0
        %1852 = xla_tuple %v1851
        %1853 = xla_tuple %v1845, %v1847
        %1854 = xla_tuple %1853
        %vm1855 = vcmp.gt.f32.partialorder %v1845, %v1847
        %v1856 = vsel %vm1855, 1, 0
        %1857 = xla_tuple %v1856
        %vm1858 = vcmp.ne.s32.totalorder %v1851, 0
        %vm1859 = vcmp.ne.s32.totalorder %v1856, 0
        %v1860 = vsel %vm1858, %v1847, %v1845
        %v1861 = vsel %vm1859, %v1847, %v1845
        %v1862 = vsel %vm1818, %v1860, %v1861
        %s1864 = scalar_lea.vmem %s89, 8 [#allocation1]
        %1865 = vst [vmem:[%s1864] sm:$0xff] %v1862
        %s1866 = smul.u32 %s90, 128
        %v1867 = vlaneseq
        %v1868 = vand.u32 %v1867, 127
        %v1869 = vxor.u32 %v1868, 8
        %1870 = vset.pattern.permute.xlu0 %v1869
        %v1871 = vlaneseq
        %v1872 = vand.u32 %v1871, 127
        %v1873 = vand.u32 %v1872, 8
        %vm1874 = vcmp.eq.s32.totalorder 0, %v1873
        %s1876 = scalar_lea.vmem %s89, 0 [#allocation1]
        %v1877 = vld [vmem:[%s1876] sm:$0xff]
        %1878 = vperm.xlu0 %1870, %v1877
        %v1879 = vpop.permute.xlu0 %1878
        %1880 = xla_tuple %v1879, %v1877
        %1881 = xla_tuple %1880
        %vm1882 = vcmp.gt.f32.partialorder %v1879, %v1877
        %v1883 = vsel %vm1882, 1, 0
        %1884 = xla_tuple %v1883
        %1885 = xla_tuple %v1877, %v1879
        %1886 = xla_tuple %1885
        %vm1887 = vcmp.gt.f32.partialorder %v1877, %v1879
        %v1888 = vsel %vm1887, 1, 0
        %1889 = xla_tuple %v1888
        %vm1890 = vcmp.ne.s32.totalorder %v1883, 0
        %vm1891 = vcmp.ne.s32.totalorder %v1888, 0
        %v1892 = vsel %vm1890, %v1879, %v1877
        %v1893 = vsel %vm1891, %v1879, %v1877
        %v1894 = vsel %vm1874, %v1892, %v1893
        %s1896 = scalar_lea.vmem %s89, 0 [#allocation1]
        %1897 = vst [vmem:[%s1896] sm:$0xff] %v1894
        %s1898 = sadd.s32 %s1866, 128
        %s1900 = scalar_lea.vmem %s89, 8 [#allocation1]
        %v1901 = vld [vmem:[%s1900] sm:$0xff]
        %1902 = vperm.xlu0 %1870, %v1901
        %v1903 = vpop.permute.xlu0 %1902
        %1904 = xla_tuple %v1903, %v1901
        %1905 = xla_tuple %1904
        %vm1906 = vcmp.gt.f32.partialorder %v1903, %v1901
        %v1907 = vsel %vm1906, 1, 0
        %1908 = xla_tuple %v1907
        %1909 = xla_tuple %v1901, %v1903
        %1910 = xla_tuple %1909
        %vm1911 = vcmp.gt.f32.partialorder %v1901, %v1903
        %v1912 = vsel %vm1911, 1, 0
        %1913 = xla_tuple %v1912
        %vm1914 = vcmp.ne.s32.totalorder %v1907, 0
        %vm1915 = vcmp.ne.s32.totalorder %v1912, 0
        %v1916 = vsel %vm1914, %v1903, %v1901
        %v1917 = vsel %vm1915, %v1903, %v1901
        %v1918 = vsel %vm1874, %v1916, %v1917
        %s1920 = scalar_lea.vmem %s89, 8 [#allocation1]
        %1921 = vst [vmem:[%s1920] sm:$0xff] %v1918
        %s1922 = smul.u32 %s90, 128
        %v1923 = vlaneseq
        %v1924 = vand.u32 %v1923, 127
        %v1925 = vxor.u32 %v1924, 4
        %1926 = vset.pattern.permute.xlu0 %v1925
        %v1927 = vlaneseq
        %v1928 = vand.u32 %v1927, 127
        %v1929 = vand.u32 %v1928, 4
        %vm1930 = vcmp.eq.s32.totalorder 0, %v1929
        %s1932 = scalar_lea.vmem %s89, 0 [#allocation1]
        %v1933 = vld [vmem:[%s1932] sm:$0xff]
        %1934 = vperm.xlu0 %1926, %v1933
        %v1935 = vpop.permute.xlu0 %1934
        %1936 = xla_tuple %v1935, %v1933
        %1937 = xla_tuple %1936
        %vm1938 = vcmp.gt.f32.partialorder %v1935, %v1933
        %v1939 = vsel %vm1938, 1, 0
        %1940 = xla_tuple %v1939
        %1941 = xla_tuple %v1933, %v1935
        %1942 = xla_tuple %1941
        %vm1943 = vcmp.gt.f32.partialorder %v1933, %v1935
        %v1944 = vsel %vm1943, 1, 0
        %1945 = xla_tuple %v1944
        %vm1946 = vcmp.ne.s32.totalorder %v1939, 0
        %vm1947 = vcmp.ne.s32.totalorder %v1944, 0
        %v1948 = vsel %vm1946, %v1935, %v1933
        %v1949 = vsel %vm1947, %v1935, %v1933
        %v1950 = vsel %vm1930, %v1948, %v1949
        %s1952 = scalar_lea.vmem %s89, 0 [#allocation1]
        %1953 = vst [vmem:[%s1952] sm:$0xff] %v1950
        %s1954 = sadd.s32 %s1922, 128
        %s1956 = scalar_lea.vmem %s89, 8 [#allocation1]
        %v1957 = vld [vmem:[%s1956] sm:$0xff]
        %1958 = vperm.xlu0 %1926, %v1957
        %v1959 = vpop.permute.xlu0 %1958
        %1960 = xla_tuple %v1959, %v1957
        %1961 = xla_tuple %1960
        %vm1962 = vcmp.gt.f32.partialorder %v1959, %v1957
        %v1963 = vsel %vm1962, 1, 0
        %1964 = xla_tuple %v1963
        %1965 = xla_tuple %v1957, %v1959
        %1966 = xla_tuple %1965
        %vm1967 = vcmp.gt.f32.partialorder %v1957, %v1959
        %v1968 = vsel %vm1967, 1, 0
        %1969 = xla_tuple %v1968
        %vm1970 = vcmp.ne.s32.totalorder %v1963, 0
        %vm1971 = vcmp.ne.s32.totalorder %v1968, 0
        %v1972 = vsel %vm1970, %v1959, %v1957
        %v1973 = vsel %vm1971, %v1959, %v1957
        %v1974 = vsel %vm1930, %v1972, %v1973
        %s1976 = scalar_lea.vmem %s89, 8 [#allocation1]
        %1977 = vst [vmem:[%s1976] sm:$0xff] %v1974
        %s1978 = smul.u32 %s90, 128
        %v1979 = vlaneseq
        %v1980 = vand.u32 %v1979, 127
        %v1981 = vxor.u32 %v1980, 2
        %1982 = vset.pattern.permute.xlu0 %v1981
        %v1983 = vlaneseq
        %v1984 = vand.u32 %v1983, 127
        %v1985 = vand.u32 %v1984, 2
        %vm1986 = vcmp.eq.s32.totalorder 0, %v1985
        %s1988 = scalar_lea.vmem %s89, 0 [#allocation1]
        %v1989 = vld [vmem:[%s1988] sm:$0xff]
        %1990 = vperm.xlu0 %1982, %v1989
        %v1991 = vpop.permute.xlu0 %1990
        %1992 = xla_tuple %v1991, %v1989
        %1993 = xla_tuple %1992
        %vm1994 = vcmp.gt.f32.partialorder %v1991, %v1989
        %v1995 = vsel %vm1994, 1, 0
        %1996 = xla_tuple %v1995
        %1997 = xla_tuple %v1989, %v1991
        %1998 = xla_tuple %1997
        %vm1999 = vcmp.gt.f32.partialorder %v1989, %v1991
        %v2000 = vsel %vm1999, 1, 0
        %2001 = xla_tuple %v2000
        %vm2002 = vcmp.ne.s32.totalorder %v1995, 0
        %vm2003 = vcmp.ne.s32.totalorder %v2000, 0
        %v2004 = vsel %vm2002, %v1991, %v1989
        %v2005 = vsel %vm2003, %v1991, %v1989
        %v2006 = vsel %vm1986, %v2004, %v2005
        %s2008 = scalar_lea.vmem %s89, 0 [#allocation1]
        %2009 = vst [vmem:[%s2008] sm:$0xff] %v2006
        %s2010 = sadd.s32 %s1978, 128
        %s2012 = scalar_lea.vmem %s89, 8 [#allocation1]
        %v2013 = vld [vmem:[%s2012] sm:$0xff]
        %2014 = vperm.xlu0 %1982, %v2013
        %v2015 = vpop.permute.xlu0 %2014
        %2016 = xla_tuple %v2015, %v2013
        %2017 = xla_tuple %2016
        %vm2018 = vcmp.gt.f32.partialorder %v2015, %v2013
        %v2019 = vsel %vm2018, 1, 0
        %2020 = xla_tuple %v2019
        %2021 = xla_tuple %v2013, %v2015
        %2022 = xla_tuple %2021
        %vm2023 = vcmp.gt.f32.partialorder %v2013, %v2015
        %v2024 = vsel %vm2023, 1, 0
        %2025 = xla_tuple %v2024
        %vm2026 = vcmp.ne.s32.totalorder %v2019, 0
        %vm2027 = vcmp.ne.s32.totalorder %v2024, 0
        %v2028 = vsel %vm2026, %v2015, %v2013
        %v2029 = vsel %vm2027, %v2015, %v2013
        %v2030 = vsel %vm1986, %v2028, %v2029
        %s2032 = scalar_lea.vmem %s89, 8 [#allocation1]
        %2033 = vst [vmem:[%s2032] sm:$0xff] %v2030
        %s2034 = smul.u32 %s90, 128
        %v2035 = vlaneseq
        %v2036 = vand.u32 %v2035, 127
        %v2037 = vxor.u32 %v2036, 1
        %2038 = vset.pattern.permute.xlu0 %v2037
        %v2039 = vlaneseq
        %v2040 = vand.u32 %v2039, 127
        %v2041 = vand.u32 %v2040, 1
        %vm2042 = vcmp.eq.s32.totalorder 0, %v2041
        %s2044 = scalar_lea.vmem %s89, 0 [#allocation1]
        %v2045 = vld [vmem:[%s2044] sm:$0xff]
        %2046 = vperm.xlu0 %2038, %v2045
        %v2047 = vpop.permute.xlu0 %2046
        %2048 = xla_tuple %v2047, %v2045
        %2049 = xla_tuple %2048
        %vm2050 = vcmp.gt.f32.partialorder %v2047, %v2045
        %v2051 = vsel %vm2050, 1, 0
        %2052 = xla_tuple %v2051
        %2053 = xla_tuple %v2045, %v2047
        %2054 = xla_tuple %2053
        %vm2055 = vcmp.gt.f32.partialorder %v2045, %v2047
        %v2056 = vsel %vm2055, 1, 0
        %2057 = xla_tuple %v2056
        %vm2058 = vcmp.ne.s32.totalorder %v2051, 0
        %vm2059 = vcmp.ne.s32.totalorder %v2056, 0
        %v2060 = vsel %vm2058, %v2047, %v2045
        %v2061 = vsel %vm2059, %v2047, %v2045
        %v2062 = vsel %vm2042, %v2060, %v2061
        %s2064 = scalar_lea.vmem %s89, 0 [#allocation1]
        %2065 = vst [vmem:[%s2064] sm:$0xff] %v2062
        %s2066 = sadd.s32 %s2034, 128
        %s2068 = scalar_lea.vmem %s89, 8 [#allocation1]
        %v2069 = vld [vmem:[%s2068] sm:$0xff]
        %2070 = vperm.xlu0 %2038, %v2069
        %v2071 = vpop.permute.xlu0 %2070
        %2072 = xla_tuple %v2071, %v2069
        %2073 = xla_tuple %2072
        %vm2074 = vcmp.gt.f32.partialorder %v2071, %v2069
        %v2075 = vsel %vm2074, 1, 0
        %2076 = xla_tuple %v2075
        %2077 = xla_tuple %v2069, %v2071
        %2078 = xla_tuple %2077
        %vm2079 = vcmp.gt.f32.partialorder %v2069, %v2071
        %v2080 = vsel %vm2079, 1, 0
        %2081 = xla_tuple %v2080
        %vm2082 = vcmp.ne.s32.totalorder %v2075, 0
        %vm2083 = vcmp.ne.s32.totalorder %v2080, 0
        %v2084 = vsel %vm2082, %v2071, %v2069
        %v2085 = vsel %vm2083, %v2071, %v2069
        %v2086 = vsel %vm2042, %v2084, %v2085
        %s2088 = scalar_lea.vmem %s89, 8 [#allocation1]
        %2089 = vst [vmem:[%s2088] sm:$0xff] %v2086
        %s2090 = sand.u32 %s8, 1
        %s2091 = sand.u32 %s8, 1
        %s2092 = smul.addr %s2091, 16
        %s2093 = scalar_lea.vmem [#allocation1], %s2092
        %s2094 = smul.u32 2, %s15
        %s2095 = smul.addr %s14, 2
        %s2096 = sadd.s32 %s2094, %s2095
        %s2097 = smul.addr %s13, 2
        %s2098 = sadd.s32 %s2096, %s2097
        %s2099 = smul.addr %s2098, 8
        %s2100 = scalar_lea.vmem %s1, %s2099
        // Predicated region
        $region40: #{approx_top_k.2} parent=38 // pred_check
          _
        $region41: #{approx_top_k.2} parent=38 // pred_check_branch
          %2102 = sbr.rel (0) target = $region43
        $region42: #{approx_top_k.2} parent=38 // pred_region
          // Predicated region
          $region44: #{approx_top_k.2} parent=42 // pred_check
            _
          $region45: #{approx_top_k.2} parent=42 // pred_check_branch
            %2104 = sbr.rel (0) target = $region47
          $region46: #{approx_top_k.2} parent=42 // pred_region
            loop: start=0, step=1, limit=1
            $region48: #{approx_top_k.2} parent=46 // loop_pre_header
              _
            $region49: #{approx_top_k.2} parent=46 // loop_header
              %s2106 = sphi 0, %s2110
              %p2107 = scmp.ge.s32.totalorder %s2106, 1
              %s2111 = sphi %s2093, %s2093
              %s2112 = sphi %s2100, %s2100
            $region50: #{approx_top_k.2} parent=46 // loop_header_branch
              %2109 = sbr.rel (%p2107) target = $region54
            $region51: #{approx_top_k.2} parent=46 // loop_body
              %v2113 = vld [vmem:[%s2111] sm:$0xff]
              %2114 = vst [vmem:[%s2112] sm:$0xff] %v2113
              %v2115 = vld [vmem:[%s2111 + $0x8] sm:$0xff]
              %2116 = vst [vmem:[%s2112 + $0x8] sm:$0xff] %v2115
            $region52: #{approx_top_k.2} parent=46 // loop_footer
              %s2110 = sadd.s32 1, %s2106
            $region53: #{approx_top_k.2} parent=46 // loop_footer_branch
              %2105 = sbr.rel target = $region49
            $region54: #{approx_top_k.2} parent=46 // loop_exit
              _
          $region47: #{approx_top_k.2} parent=42 // pred_fallthru
            _
          // Predicated region
          $region55: #{approx_top_k.2} parent=42 // pred_check
            _
          $region56: #{approx_top_k.2} parent=42 // pred_check_branch
            %2118 = sbr.rel target = $region58
          $region57: #{approx_top_k.2} parent=42 // pred_region
            _
          $region58: #{approx_top_k.2} parent=42 // pred_fallthru
            _
        $region43: #{approx_top_k.2} parent=38 // pred_fallthru
          _
        %2119 = vnop
      $region39: #{approx_top_k.2} parent=5 // pred_fallthru
        _
      %p2120 = scmp.le.s32.totalorder 2, %s3
      // Predicated region
      $region59: #{approx_top_k.2} parent=5 // pred_check
        %p2121 = pneg %p2120
      $region60: #{approx_top_k.2} parent=5 // pred_check_branch
        %2123 = sbr.rel (%p2121) target = $region62
      $region61: #{approx_top_k.2} parent=5 // pred_region
        %s2124 = ssub.s32 %s3, 2
        %s2125 = sand.u32 %s9, 1
        %s2126 = sand.u32 %s9, 1
        %s2127 = smul.addr %s2126, 16
        %s2128 = scalar_lea.vmem [#allocation1], %s2127
      $region62: #{approx_top_k.2} parent=5 // pred_fallthru
        _
    $region6: #{approx_top_k.2} parent=1 // loop_footer
      %s7 = sadd.s32 1, %s3
    $region7: #{approx_top_k.2} parent=1 // loop_footer_branch
      %2 = sbr.rel target = $region3
    $region8: #{approx_top_k.2} parent=1 // loop_exit
      _

// kernel: detection_loss.2
$region0: #{detection_loss.2}
  #allocation0 [shape = 'u32[]', space=smem, size = 0x4, offset = 0x4, fixed_abs, tag = 'smem constant byte address 0x4 - core index']
  #allocation1 [shape = 'u32[144,128]{1,0:T(1,128)}', space=vmem, size = 0x12000, scoped, tag = 'internal scratch']
  %s0 = inlined_call_operand.vmem [shape: f32[2,8,4], index: 0, kind: input, shape index: {}]
  %s1 = inlined_call_operand.vmem [shape: f32[2,8,1], index: 1, kind: input, shape index: {}]
  %s2 = inlined_call_operand.vmem [shape: f32[4,512], index: 2, kind: input, shape index: {}]
  %s3 = inlined_call_operand.vmem [shape: f32[2,4,512], index: 3, kind: input, shape index: {}]
  %s4 = inlined_call_operand.vmem [shape: f32[2,8,512], index: 4, kind: input, shape index: {}]
  %s5 = inlined_call_operand.vmem [shape: f32[2,8,512], index: 5, kind: output, shape index: {0}]
  %s6 = inlined_call_operand.vmem [shape: f32[2,8,512], index: 6, kind: output, shape index: {1}]
  %7 = xla_tuple %s5, %s6
  %s8 = sld [smem:[#allocation0]]
  $region61: #{detection_loss.2} parent=0
    _
  %s10 = ssub.s32 1, %s8
  %s11 = scalar_select 0, %s10, %s8
  loop: start=0, step=1, limit=4
  $region2: #{detection_loss.2} parent=0 // loop_pre_header
    _
  $region3: #{detection_loss.2} parent=0 // loop_header
    %s13 = sphi 0, %s17
    %p14 = scmp.ge.s32.totalorder %s13, 4
    %s20 = sphi 0, %s32
    %s21 = sphi 0, %s28
    %s22 = sphi 0, %s20
    %s23 = sphi 0, %s21
    %s24 = sphi 0, %s22
    %s25 = sphi 0, %s23
    %s35 = sphi 0, %s37
    %s38 = sphi 0, %s35
    %s39 = sphi 0, %s38
    %s55 = sphi 0, %s39
    %s61 = sphi 0, %s63
    %s64 = sphi 0, %s61
    %s65 = sphi 0, %s64
    %s81 = sphi 0, %s65
    %s87 = sphi 0, %s89
    %s90 = sphi 0, %s87
    %s91 = sphi 0, %s90
    %s107 = sphi 0, %s91
    %s115 = sphi 0, %s117
    %s118 = sphi 0, %s115
    %s119 = sphi 0, %s118
    %s135 = sphi 0, %s119
    %s143 = sphi 0, %s145
    %s146 = sphi 0, %s143
    %s147 = sphi 0, %s146
    %s163 = sphi 0, %s147
    %s171 = sphi 0, %s173
    %s174 = sphi 0, %s171
    %s175 = sphi 0, %s174
    %s191 = sphi 0, %s175
    %s199 = sphi 0, %s201
    %s202 = sphi 0, %s199
    %s203 = sphi 0, %s202
    %s219 = sphi 0, %s203
  $region4: #{detection_loss.2} parent=0 // loop_header_branch
    %16 = sbr.rel (%p14) target = $region8
  $region5: #{detection_loss.2} parent=0 // loop_body
    %s18 = ssub.s32 %s13, 1
    %s19 = ssub.s32 %s13, 2
    %s26 = sadd.s32 1, %s21
    %p27 = scmp.ge.s32.totalorder %s26, 1
    %s28 = scalar_select %p27, 0, %s26
    %s29 = sadd.s32 1, %s20
    %s30 = scalar_select %p27, %s29, %s20
    %p31 = scmp.ge.s32.totalorder %s30, 2
    %s32 = scalar_select %p31, 0, %s30
    %s33 = ssub.s32 %s20, %s32
    %p34 = scmp.eq.s32.totalorder %s33, 0
    %s36 = sadd.s32 %s35, 1
    %s37 = scalar_select %p34, %s35, %s36
    %p40 = pneg %p34
    %p41 = scmp.eq.s32.totalorder %s13, 1
    %p42 = por %p40, %p41
    %p43 = scmp.ne.s32.totalorder %s35, %s38
    %p44 = scmp.eq.s32.totalorder %s13, 0
    %p45 = por %p43, %p44
    %p46 = scmp.ne.s32.totalorder %s35, %s38
    %p47 = scmp.eq.s32.totalorder %s18, 1
    %p48 = por %p46, %p47
    %p49 = scmp.ne.s32.totalorder %s38, %s39
    %p50 = scmp.eq.s32.totalorder %s18, 0
    %p51 = por %p49, %p50
    %p52 = scmp.ne.s32.totalorder %s38, %s39
    %p53 = scmp.eq.s32.totalorder %s19, 1
    %p54 = por %p52, %p53
    %p56 = scmp.ne.s32.totalorder %s39, %s55
    %p57 = scmp.eq.s32.totalorder %s19, 0
    %p58 = por %p56, %p57
    %s59 = ssub.s32 %s20, %s32
    %p60 = scmp.eq.s32.totalorder %s59, 0
    %s62 = sadd.s32 %s61, 1
    %s63 = scalar_select %p60, %s61, %s62
    %p66 = pneg %p60
    %p67 = scmp.eq.s32.totalorder %s13, 1
    %p68 = por %p66, %p67
    %p69 = scmp.ne.s32.totalorder %s61, %s64
    %p70 = scmp.eq.s32.totalorder %s13, 0
    %p71 = por %p69, %p70
    %p72 = scmp.ne.s32.totalorder %s61, %s64
    %p73 = scmp.eq.s32.totalorder %s18, 1
    %p74 = por %p72, %p73
    %p75 = scmp.ne.s32.totalorder %s64, %s65
    %p76 = scmp.eq.s32.totalorder %s18, 0
    %p77 = por %p75, %p76
    %p78 = scmp.ne.s32.totalorder %s64, %s65
    %p79 = scmp.eq.s32.totalorder %s19, 1
    %p80 = por %p78, %p79
    %p82 = scmp.ne.s32.totalorder %s65, %s81
    %p83 = scmp.eq.s32.totalorder %s19, 0
    %p84 = por %p82, %p83
    %s85 = ssub.s32 %s21, %s28
    %p86 = scmp.eq.s32.totalorder %s85, 0
    %s88 = sadd.s32 %s87, 1
    %s89 = scalar_select %p86, %s87, %s88
    %p92 = pneg %p86
    %p93 = scmp.eq.s32.totalorder %s13, 1
    %p94 = por %p92, %p93
    %p95 = scmp.ne.s32.totalorder %s87, %s90
    %p96 = scmp.eq.s32.totalorder %s13, 0
    %p97 = por %p95, %p96
    %p98 = scmp.ne.s32.totalorder %s87, %s90
    %p99 = scmp.eq.s32.totalorder %s18, 1
    %p100 = por %p98, %p99
    %p101 = scmp.ne.s32.totalorder %s90, %s91
    %p102 = scmp.eq.s32.totalorder %s18, 0
    %p103 = por %p101, %p102
    %p104 = scmp.ne.s32.totalorder %s90, %s91
    %p105 = scmp.eq.s32.totalorder %s19, 1
    %p106 = por %p104, %p105
    %p108 = scmp.ne.s32.totalorder %s91, %s107
    %p109 = scmp.eq.s32.totalorder %s19, 0
    %p110 = por %p108, %p109
    %s111 = ssub.s32 %s20, %s32
    %s112 = ssub.s32 %s21, %s28
    %s113 = sor.u32 %s111, %s112
    %p114 = scmp.eq.s32.totalorder %s113, 0
    %s116 = sadd.s32 %s115, 1
    %s117 = scalar_select %p114, %s115, %s116
    %p120 = pneg %p114
    %p121 = scmp.eq.s32.totalorder %s13, 1
    %p122 = por %p120, %p121
    %p123 = scmp.ne.s32.totalorder %s115, %s118
    %p124 = scmp.eq.s32.totalorder %s13, 0
    %p125 = por %p123, %p124
    %p126 = scmp.ne.s32.totalorder %s115, %s118
    %p127 = scmp.eq.s32.totalorder %s18, 1
    %p128 = por %p126, %p127
    %p129 = scmp.ne.s32.totalorder %s118, %s119
    %p130 = scmp.eq.s32.totalorder %s18, 0
    %p131 = por %p129, %p130
    %p132 = scmp.ne.s32.totalorder %s118, %s119
    %p133 = scmp.eq.s32.totalorder %s19, 1
    %p134 = por %p132, %p133
    %p136 = scmp.ne.s32.totalorder %s119, %s135
    %p137 = scmp.eq.s32.totalorder %s19, 0
    %p138 = por %p136, %p137
    %s139 = ssub.s32 %s20, %s32
    %s140 = ssub.s32 %s21, %s28
    %s141 = sor.u32 %s139, %s140
    %p142 = scmp.eq.s32.totalorder %s141, 0
    %s144 = sadd.s32 %s143, 1
    %s145 = scalar_select %p142, %s143, %s144
    %p148 = pneg %p142
    %p149 = scmp.eq.s32.totalorder %s13, 1
    %p150 = por %p148, %p149
    %p151 = scmp.ne.s32.totalorder %s143, %s146
    %p152 = scmp.eq.s32.totalorder %s13, 0
    %p153 = por %p151, %p152
    %p154 = scmp.ne.s32.totalorder %s143, %s146
    %p155 = scmp.eq.s32.totalorder %s18, 1
    %p156 = por %p154, %p155
    %p157 = scmp.ne.s32.totalorder %s146, %s147
    %p158 = scmp.eq.s32.totalorder %s18, 0
    %p159 = por %p157, %p158
    %p160 = scmp.ne.s32.totalorder %s146, %s147
    %p161 = scmp.eq.s32.totalorder %s19, 1
    %p162 = por %p160, %p161
    %p164 = scmp.ne.s32.totalorder %s147, %s163
    %p165 = scmp.eq.s32.totalorder %s19, 0
    %p166 = por %p164, %p165
    %s167 = ssub.s32 %s20, %s32
    %s168 = ssub.s32 %s21, %s28
    %s169 = sor.u32 %s167, %s168
    %p170 = scmp.eq.s32.totalorder %s169, 0
    %s172 = sadd.s32 %s171, 1
    %s173 = scalar_select %p170, %s171, %s172
    %p176 = pneg %p170
    %p177 = scmp.eq.s32.totalorder %s13, 1
    %p178 = por %p176, %p177
    %p179 = scmp.ne.s32.totalorder %s171, %s174
    %p180 = scmp.eq.s32.totalorder %s13, 0
    %p181 = por %p179, %p180
    %p182 = scmp.ne.s32.totalorder %s171, %s174
    %p183 = scmp.eq.s32.totalorder %s18, 1
    %p184 = por %p182, %p183
    %p185 = scmp.ne.s32.totalorder %s174, %s175
    %p186 = scmp.eq.s32.totalorder %s18, 0
    %p187 = por %p185, %p186
    %p188 = scmp.ne.s32.totalorder %s174, %s175
    %p189 = scmp.eq.s32.totalorder %s19, 1
    %p190 = por %p188, %p189
    %p192 = scmp.ne.s32.totalorder %s175, %s191
    %p193 = scmp.eq.s32.totalorder %s19, 0
    %p194 = por %p192, %p193
    %s195 = ssub.s32 %s20, %s32
    %s196 = ssub.s32 %s21, %s28
    %s197 = sor.u32 %s195, %s196
    %p198 = scmp.eq.s32.totalorder %s197, 0
    %s200 = sadd.s32 %s199, 1
    %s201 = scalar_select %p198, %s199, %s200
    %p204 = pneg %p198
    %p205 = scmp.eq.s32.totalorder %s13, 1
    %p206 = por %p204, %p205
    %p207 = scmp.ne.s32.totalorder %s199, %s202
    %p208 = scmp.eq.s32.totalorder %s13, 0
    %p209 = por %p207, %p208
    %p210 = scmp.ne.s32.totalorder %s199, %s202
    %p211 = scmp.eq.s32.totalorder %s18, 1
    %p212 = por %p210, %p211
    %p213 = scmp.ne.s32.totalorder %s202, %s203
    %p214 = scmp.eq.s32.totalorder %s18, 0
    %p215 = por %p213, %p214
    %p216 = scmp.ne.s32.totalorder %s202, %s203
    %p217 = scmp.eq.s32.totalorder %s19, 1
    %p218 = por %p216, %p217
    %p220 = scmp.ne.s32.totalorder %s203, %s219
    %p221 = scmp.eq.s32.totalorder %s19, 0
    %p222 = por %p220, %p221
    %p223 = scmp.le.s32.totalorder 1, %s13
    %p224 = scmp.lt.s32.totalorder %s13, 3
    %p225 = pnand %p223, %p224
    %p226 = pneg %p225
    // Predicated region
    $region9: #{detection_loss.2} parent=5 // pred_check
      _
    $region10: #{detection_loss.2} parent=5 // pred_check_branch
      %228 = sbr.rel (%p225) target = $region12
    $region11: #{detection_loss.2} parent=5 // pred_region
      %s229 = ssub.s32 %s13, 1
      // Predicated region
      $region13: #{detection_loss.2} parent=11 // pred_check
        %p230 = pneg %p103
      $region14: #{detection_loss.2} parent=11 // pred_check_branch
        %232 = sbr.rel (%p230) target = $region16
      $region15: #{detection_loss.2} parent=11 // pred_region
        %s233 = smul.u32 4, %s23
        %p234 = scmp.lt.s32.totalorder %s233, 3
        %s235 = scalar_select %p234, %s233, 3
        %s236 = smul.addr %s235, 4
        %s237 = scalar_lea.vmem %s2, %s236
        %s238 = smul.u32 4, %s23
      $region16: #{detection_loss.2} parent=11 // pred_fallthru
        _
    $region12: #{detection_loss.2} parent=5 // pred_fallthru
      _
    %p239 = scmp.lt.s32.totalorder %s13, 2
    // Predicated region
    $region17: #{detection_loss.2} parent=5 // pred_check
      %p240 = pneg %p239
    $region18: #{detection_loss.2} parent=5 // pred_check_branch
      %242 = sbr.rel (%p240) target = $region20
    $region19: #{detection_loss.2} parent=5 // pred_region
      // Predicated region
      $region21: #{detection_loss.2} parent=19 // pred_check
        %p243 = pneg %p45
      $region22: #{detection_loss.2} parent=19 // pred_check_branch
        %245 = sbr.rel (%p243) target = $region24
      $region23: #{detection_loss.2} parent=19 // pred_region
        %p246 = scmp.lt.s32.totalorder %s20, 1
        %s247 = scalar_select %p246, %s20, 1
        %s248 = smul.addr %s247, 8
        %s249 = scalar_lea.vmem %s0, %s248
      $region24: #{detection_loss.2} parent=19 // pred_fallthru
        _
      // Predicated region
      $region25: #{detection_loss.2} parent=19 // pred_check
        %p250 = pneg %p71
      $region26: #{detection_loss.2} parent=19 // pred_check_branch
        %252 = sbr.rel (%p250) target = $region28
      $region27: #{detection_loss.2} parent=19 // pred_region
        %p253 = scmp.lt.s32.totalorder %s20, 1
        %s254 = scalar_select %p253, %s20, 1
        %s255 = smul.addr %s254, 8
        %s256 = scalar_lea.vmem %s1, %s255
      $region28: #{detection_loss.2} parent=19 // pred_fallthru
        _
      // Predicated region
      $region29: #{detection_loss.2} parent=19 // pred_check
        %p257 = pneg %p125
      $region30: #{detection_loss.2} parent=19 // pred_check_branch
        %259 = sbr.rel (%p257) target = $region32
      $region31: #{detection_loss.2} parent=19 // pred_region
        %s260 = smul.u32 4, %s21
        %p261 = scmp.lt.s32.totalorder %s20, 1
        %s262 = scalar_select %p261, %s20, 1
        %p263 = scmp.lt.s32.totalorder %s260, 3
        %s264 = scalar_select %p263, %s260, 3
        %s265 = smul.addr %s262, 4
        %s266 = sadd.s32 %s264, %s265
        %s267 = smul.addr %s266, 4
        %s268 = scalar_lea.vmem %s3, %s267
        %s269 = smul.u32 4, %s21
      $region32: #{detection_loss.2} parent=19 // pred_fallthru
        _
      // Predicated region
      $region33: #{detection_loss.2} parent=19 // pred_check
        %p270 = pneg %p153
      $region34: #{detection_loss.2} parent=19 // pred_check_branch
        %272 = sbr.rel (%p270) target = $region36
      $region35: #{detection_loss.2} parent=19 // pred_region
        %s273 = smul.u32 4, %s21
        %p274 = scmp.lt.s32.totalorder %s20, 1
        %s275 = scalar_select %p274, %s20, 1
        %p276 = scmp.lt.s32.totalorder %s273, 3
        %s277 = scalar_select %p276, %s273, 3
        %s278 = smul.addr %s275, 4
        %s279 = sadd.s32 %s277, %s278
        %s280 = smul.addr %s279, 8
        %s281 = scalar_lea.vmem %s4, %s280
        %s282 = smul.u32 4, %s21
      $region36: #{detection_loss.2} parent=19 // pred_fallthru
        _
    $region20: #{detection_loss.2} parent=5 // pred_fallthru
      _
    %p283 = scmp.le.s32.totalorder 1, %s13
    %p284 = scmp.lt.s32.totalorder %s13, 3
    %p285 = pnand %p283, %p284
    %p286 = pneg %p285
    // Predicated region
    $region37: #{detection_loss.2} parent=5 // pred_check
      _
    $region38: #{detection_loss.2} parent=5 // pred_check_branch
      %288 = sbr.rel (%p285) target = $region40
    $region39: #{detection_loss.2} parent=5 // pred_region
      %s289 = ssub.s32 %s13, 1
      %p290 = scmp.lt.s32.totalorder %s22, 1
      %s291 = scalar_select %p290, %s22, 1
      %s292 = smul.addr %s291, 8
      %s293 = scalar_lea.vmem %s0, %s292
      %p294 = pneg %p51
      %p295 = pneg %p48
      %p296 = scmp.lt.s32.totalorder %s22, 1
      %s297 = scalar_select %p296, %s22, 1
      %s298 = smul.addr %s297, 8
      %s299 = scalar_lea.vmem %s1, %s298
      %p300 = pneg %p77
      %p301 = pneg %p74
      %s302 = smul.u32 4, %s23
      %p303 = scmp.lt.s32.totalorder %s302, 3
      %s304 = scalar_select %p303, %s302, 3
      %s305 = smul.addr %s304, 4
      %s306 = scalar_lea.vmem %s2, %s305
      %p307 = pneg %p103
      %p308 = pneg %p100
      %s309 = smul.u32 4, %s23
      %p310 = scmp.lt.s32.totalorder %s22, 1
      %s311 = scalar_select %p310, %s22, 1
      %p312 = scmp.lt.s32.totalorder %s309, 3
      %s313 = scalar_select %p312, %s309, 3
      %s314 = smul.addr %s311, 4
      %s315 = sadd.s32 %s313, %s314
      %s316 = smul.addr %s315, 4
      %s317 = scalar_lea.vmem %s3, %s316
      %p318 = pneg %p131
      %p319 = pneg %p128
      %s320 = smul.u32 4, %s23
      %p321 = scmp.lt.s32.totalorder %s22, 1
      %s322 = scalar_select %p321, %s22, 1
      %p323 = scmp.lt.s32.totalorder %s320, 3
      %s324 = scalar_select %p323, %s320, 3
      %s325 = smul.addr %s322, 4
      %s326 = sadd.s32 %s324, %s325
      %s327 = smul.addr %s326, 8
      %s328 = scalar_lea.vmem %s4, %s327
      %p329 = pneg %p159
      %p330 = pneg %p156
      %p331 = pneg %p187
      %p332 = pneg %p184
      %s333 = smul.u32 4, %s23
      %p334 = scmp.lt.s32.totalorder %s22, 1
      %s335 = scalar_select %p334, %s22, 1
      %p336 = scmp.lt.s32.totalorder %s333, 3
      %s337 = scalar_select %p336, %s333, 3
      %s338 = smul.addr %s335, 4
      %s339 = sadd.s32 %s337, %s338
      %s340 = smul.addr %s339, 8
      %s341 = scalar_lea.vmem %s5, %s340
      %p342 = pneg %p215
      %p343 = pneg %p212
      %s344 = smul.u32 4, %s23
      %p345 = scmp.lt.s32.totalorder %s22, 1
      %s346 = scalar_select %p345, %s22, 1
      %p347 = scmp.lt.s32.totalorder %s344, 3
      %s348 = scalar_select %p347, %s344, 3
      %s349 = smul.addr %s346, 4
      %s350 = sadd.s32 %s348, %s349
      %s351 = smul.addr %s350, 8
      %s352 = scalar_lea.vmem %s6, %s351
      %p353 = scmp.lt.s32.totalorder %s22, 1
      %s354 = scalar_select %p353, %s22, 1
      %s355 = smul.addr %s354, 8
      %s356 = scalar_lea.vmem %s0, %s355
      %p357 = scmp.lt.s32.totalorder %s22, 1
      %s358 = scalar_select %p357, %s22, 1
      %s359 = smul.addr %s358, 8
      %s360 = scalar_lea.vmem %s1, %s359
      %s361 = smul.u32 4, %s23
      %p362 = scmp.lt.s32.totalorder %s361, 3
      %s363 = scalar_select %p362, %s361, 3
      %s364 = smul.addr %s363, 4
      %s365 = scalar_lea.vmem %s2, %s364
      %s366 = smul.u32 4, %s23
      %s367 = smul.u32 4, %s23
      %p368 = scmp.lt.s32.totalorder %s22, 1
      %s369 = scalar_select %p368, %s22, 1
      %p370 = scmp.lt.s32.totalorder %s367, 3
      %s371 = scalar_select %p370, %s367, 3
      %s372 = smul.addr %s369, 4
      %s373 = sadd.s32 %s371, %s372
      %s374 = smul.addr %s373, 4
      %s375 = scalar_lea.vmem %s3, %s374
      %s376 = smul.u32 4, %s23
      %s377 = smul.u32 4, %s23
      %p378 = scmp.lt.s32.totalorder %s22, 1
      %s379 = scalar_select %p378, %s22, 1
      %p380 = scmp.lt.s32.totalorder %s377, 3
      %s381 = scalar_select %p380, %s377, 3
      %s382 = smul.addr %s379, 4
      %s383 = sadd.s32 %s381, %s382
      %s384 = smul.addr %s383, 8
      %s385 = scalar_lea.vmem %s4, %s384
      %s386 = smul.u32 4, %s23
      %s387 = smul.u32 4, %s23
      %p388 = scmp.lt.s32.totalorder %s22, 1
      %s389 = scalar_select %p388, %s22, 1
      %p390 = scmp.lt.s32.totalorder %s387, 3
      %s391 = scalar_select %p390, %s387, 3
      %s392 = smul.addr %s389, 4
      %s393 = sadd.s32 %s391, %s392
      %s394 = smul.addr %s393, 8
      %s395 = scalar_lea.vmem %s5, %s394
      %s396 = smul.u32 4, %s23
      %s397 = smul.u32 4, %s23
      %p398 = scmp.lt.s32.totalorder %s22, 1
      %s399 = scalar_select %p398, %s22, 1
      %p400 = scmp.lt.s32.totalorder %s397, 3
      %s401 = scalar_select %p400, %s397, 3
      %s402 = smul.addr %s399, 4
      %s403 = sadd.s32 %s401, %s402
      %s404 = smul.addr %s403, 8
      %s405 = scalar_lea.vmem %s6, %s404
      %s406 = smul.u32 4, %s23
      %v407 = vld [vmem:[%s356] sm:$0xff]
      %409 = vrot.lane.b32.xlu0 %v407, 2
      %v410 = vpop.permute.xlu0 %409
      %v412 = vsub.f32 %v407, %v410
      %414 = vrot.lane.b32.xlu0 %v412, 127
      %v415 = vpop.permute.xlu0 %414
      %v417 = vmul.f32 %v412, %v415
      %v418 = vld [vmem:[%s365] ss:$4 sm:$0xf]
      %s419 = scalar_lea.vmem %s365, 1
      %v420 = vld [vmem:[%s419] ss:$4 sm:$0xf]
      %s421 = scalar_lea.vmem %s365, 2
      %v422 = vld [vmem:[%s421] ss:$4 sm:$0xf]
      %s423 = scalar_lea.vmem %s365, 3
      %v424 = vld [vmem:[%s423] ss:$4 sm:$0xf]
      %v425 = vld [vmem:[%s375] ss:$4 sm:$0xf]
      %s426 = scalar_lea.vmem %s375, 1
      %v427 = vld [vmem:[%s426] ss:$4 sm:$0xf]
      %s428 = scalar_lea.vmem %s375, 2
      %v429 = vld [vmem:[%s428] ss:$4 sm:$0xf]
      %s430 = scalar_lea.vmem %s375, 3
      %v431 = vld [vmem:[%s430] ss:$4 sm:$0xf]
      %v432 = vmul.f32 %v422, 0.5
      %v433 = vsub.f32 %v418, %v432
      %v434 = vmul.f32 %v424, 0.5
      %v435 = vsub.f32 %v420, %v434
      %v436 = vadd.f32 %v418, %v432
      %v437 = vadd.f32 %v420, %v434
      %v438 = vmul.f32 %v425, 0.1
      %v439 = vmul.f32 %v438, %v422
      %v440 = vadd.f32 %v418, %v439
      %v441 = vmul.f32 %v427, 0.1
      %v442 = vmul.f32 %v441, %v424
      %v443 = vadd.f32 %v420, %v442
      %v444 = vmul.f32 %v429, 0.2
      %v445 = vmul.f32 %v444, 1.442695
      %v446 = vpow.pop %v445
      %v447 = vmul.f32 %v422, %v446
      %v448 = vmul.f32 %v431, 0.2
      %v449 = vmul.f32 %v448, 1.442695
      %v450 = vpow.pop %v449
      %v451 = vmul.f32 %v424, %v450
      %v452 = vmul.f32 %v447, 0.5
      %v453 = vsub.f32 %v440, %v452
      %v454 = vmul.f32 %v451, 0.5
      %v455 = vsub.f32 %v443, %v454
      %v456 = vadd.f32 %v440, %v452
      %v457 = vadd.f32 %v443, %v454
      %v458 = vld [vmem:[%s360] sm:$0xff]
      %459 = vset.pattern.permute.xlu0 2
      %460 = vperm.xlu0 %459, %v407
      %v461 = vpop.permute.xlu0 %460
      %v464 = vlaneseq
      %v465 = vshrl.u32 %v464, 7
      %v466 = vsub.s32 0, %v465
      %v467 = vrot.slane %v456, %v466
      %v468 = vlaneseq
      %v469 = vshrl.u32 %v468, 7
      %v470 = vsub.s32 1, %v469
      %v471 = vrot.slane %v456, %v470
      %v472 = vlaneseq
      %v473 = vshrl.u32 %v472, 7
      %v474 = vsub.s32 2, %v473
      %v475 = vrot.slane %v456, %v474
      %v476 = vlaneseq
      %v477 = vshrl.u32 %v476, 7
      %v478 = vsub.s32 3, %v477
      %v479 = vrot.slane %v456, %v478
      %v484 = vmin.f32 %v461, %v467
      %v485 = vmin.f32 %v461, %v471
      %v486 = vmin.f32 %v461, %v475
      %v487 = vmin.f32 %v461, %v479
      %488 = vset.pattern.permute.xlu0 0
      %489 = vperm.xlu0 %488, %v407
      %v490 = vpop.permute.xlu0 %489
      %v493 = vlaneseq
      %v494 = vshrl.u32 %v493, 7
      %v495 = vsub.s32 0, %v494
      %v496 = vrot.slane %v453, %v495
      %v497 = vlaneseq
      %v498 = vshrl.u32 %v497, 7
      %v499 = vsub.s32 1, %v498
      %v500 = vrot.slane %v453, %v499
      %v501 = vlaneseq
      %v502 = vshrl.u32 %v501, 7
      %v503 = vsub.s32 2, %v502
      %v504 = vrot.slane %v453, %v503
      %v505 = vlaneseq
      %v506 = vshrl.u32 %v505, 7
      %v507 = vsub.s32 3, %v506
      %v508 = vrot.slane %v453, %v507
      %v513 = vmax.f32 %v490, %v496
      %v514 = vmax.f32 %v490, %v500
      %v515 = vmax.f32 %v490, %v504
      %v516 = vmax.f32 %v490, %v508
      %v517 = vsub.f32 %v484, %v513
      %v518 = vsub.f32 %v485, %v514
      %v519 = vsub.f32 %v486, %v515
      %v520 = vsub.f32 %v487, %v516
      %v521 = vmax.f32 %v517, 0.0
      %v522 = vmax.f32 %v518, 0.0
      %v523 = vmax.f32 %v519, 0.0
      %v524 = vmax.f32 %v520, 0.0
      %525 = vset.pattern.permute.xlu0 3
      %526 = vperm.xlu0 %525, %v407
      %v527 = vpop.permute.xlu0 %526
      %v530 = vlaneseq
      %v531 = vshrl.u32 %v530, 7
      %v532 = vsub.s32 0, %v531
      %v533 = vrot.slane %v457, %v532
      %v534 = vlaneseq
      %v535 = vshrl.u32 %v534, 7
      %v536 = vsub.s32 1, %v535
      %v537 = vrot.slane %v457, %v536
      %v538 = vlaneseq
      %v539 = vshrl.u32 %v538, 7
      %v540 = vsub.s32 2, %v539
      %v541 = vrot.slane %v457, %v540
      %v542 = vlaneseq
      %v543 = vshrl.u32 %v542, 7
      %v544 = vsub.s32 3, %v543
      %v545 = vrot.slane %v457, %v544
      %v550 = vmin.f32 %v527, %v533
      %v551 = vmin.f32 %v527, %v537
      %v552 = vmin.f32 %v527, %v541
      %v553 = vmin.f32 %v527, %v545
      %554 = vset.pattern.permute.xlu0 1
      %555 = vperm.xlu0 %554, %v407
      %v556 = vpop.permute.xlu0 %555
      %v559 = vlaneseq
      %v560 = vshrl.u32 %v559, 7
      %v561 = vsub.s32 0, %v560
      %v562 = vrot.slane %v455, %v561
      %v563 = vlaneseq
      %v564 = vshrl.u32 %v563, 7
      %v565 = vsub.s32 1, %v564
      %v566 = vrot.slane %v455, %v565
      %v567 = vlaneseq
      %v568 = vshrl.u32 %v567, 7
      %v569 = vsub.s32 2, %v568
      %v570 = vrot.slane %v455, %v569
      %v571 = vlaneseq
      %v572 = vshrl.u32 %v571, 7
      %v573 = vsub.s32 3, %v572
      %v574 = vrot.slane %v455, %v573
      %v579 = vmax.f32 %v556, %v562
      %v580 = vmax.f32 %v556, %v566
      %v581 = vmax.f32 %v556, %v570
      %v582 = vmax.f32 %v556, %v574
      %v583 = vsub.f32 %v550, %v579
      %v584 = vsub.f32 %v551, %v580
      %v585 = vsub.f32 %v552, %v581
      %v586 = vsub.f32 %v553, %v582
      %v587 = vmax.f32 %v583, 0.0
      %v588 = vmax.f32 %v584, 0.0
      %v589 = vmax.f32 %v585, 0.0
      %v590 = vmax.f32 %v586, 0.0
      %v591 = vmul.f32 %v521, %v587
      %v592 = vmul.f32 %v522, %v588
      %v593 = vmul.f32 %v523, %v589
      %v594 = vmul.f32 %v524, %v590
      %v595 = vsub.f32 %v456, %v453
      %v596 = vsub.f32 %v457, %v455
      %v597 = vmul.f32 %v595, %v596
      %599 = vset.pattern.permute.xlu0 2
      %600 = vperm.xlu0 %599, %v417
      %v601 = vpop.permute.xlu0 %600
      %v604 = vlaneseq
      %v605 = vshrl.u32 %v604, 7
      %v606 = vsub.s32 0, %v605
      %v607 = vrot.slane %v597, %v606
      %v608 = vlaneseq
      %v609 = vshrl.u32 %v608, 7
      %v610 = vsub.s32 1, %v609
      %v611 = vrot.slane %v597, %v610
      %v612 = vlaneseq
      %v613 = vshrl.u32 %v612, 7
      %v614 = vsub.s32 2, %v613
      %v615 = vrot.slane %v597, %v614
      %v616 = vlaneseq
      %v617 = vshrl.u32 %v616, 7
      %v618 = vsub.s32 3, %v617
      %v619 = vrot.slane %v597, %v618
      %v624 = vadd.f32 %v601, %v607
      %v625 = vadd.f32 %v601, %v611
      %v626 = vadd.f32 %v601, %v615
      %v627 = vadd.f32 %v601, %v619
      %v628 = vsub.f32 %v624, %v591
      %v629 = vsub.f32 %v625, %v592
      %v630 = vsub.f32 %v626, %v593
      %v631 = vsub.f32 %v627, %v594
      %v632 = vmax.f32 %v628, 1e-10
      %v633 = vmax.f32 %v629, 1e-10
      %v634 = vmax.f32 %v630, 1e-10
      %v635 = vmax.f32 %v631, 1e-10
      %v636 = vrcp.pop %v632
      %v637 = vrcp.pop %v633
      %v638 = vrcp.pop %v634
      %v639 = vrcp.pop %v635
      %v640 = vmul.f32 %v591, %v636
      %v641 = vmul.f32 %v592, %v637
      %v642 = vmul.f32 %v593, %v638
      %v643 = vmul.f32 %v594, %v639
      %645 = vset.pattern.permute.xlu0 0
      %646 = vperm.xlu0 %645, %v458
      %v647 = vpop.permute.xlu0 %646
      %v649 = vmul.f32 %v640, %v647
      %v650 = vmul.f32 %v641, %v647
      %v651 = vmul.f32 %v642, %v647
      %v652 = vmul.f32 %v643, %v647
      %653 = vst [vmem:[%s395] sm:$0xff] %v649
      %654 = vst [vmem:[%s395 + $0x8] sm:$0xff] %v650
      %655 = vst [vmem:[%s395 + $0x10] sm:$0xff] %v651
      %656 = vst [vmem:[%s395 + $0x18] sm:$0xff] %v652
      %v658 = vlaneseq
      %v659 = vshrl.u32 %v658, 7
      %v660 = vsub.s32 0, %v659
      %v661 = vrot.slane %v436, %v660
      %v662 = vlaneseq
      %v663 = vshrl.u32 %v662, 7
      %v664 = vsub.s32 1, %v663
      %v665 = vrot.slane %v436, %v664
      %v666 = vlaneseq
      %v667 = vshrl.u32 %v666, 7
      %v668 = vsub.s32 2, %v667
      %v669 = vrot.slane %v436, %v668
      %v670 = vlaneseq
      %v671 = vshrl.u32 %v670, 7
      %v672 = vsub.s32 3, %v671
      %v673 = vrot.slane %v436, %v672
      %v678 = vmin.f32 %v461, %v661
      %v679 = vmin.f32 %v461, %v665
      %v680 = vmin.f32 %v461, %v669
      %v681 = vmin.f32 %v461, %v673
      %v683 = vlaneseq
      %v684 = vshrl.u32 %v683, 7
      %v685 = vsub.s32 0, %v684
      %v686 = vrot.slane %v433, %v685
      %v687 = vlaneseq
      %v688 = vshrl.u32 %v687, 7
      %v689 = vsub.s32 1, %v688
      %v690 = vrot.slane %v433, %v689
      %v691 = vlaneseq
      %v692 = vshrl.u32 %v691, 7
      %v693 = vsub.s32 2, %v692
      %v694 = vrot.slane %v433, %v693
      %v695 = vlaneseq
      %v696 = vshrl.u32 %v695, 7
      %v697 = vsub.s32 3, %v696
      %v698 = vrot.slane %v433, %v697
      %v703 = vmax.f32 %v490, %v686
      %v704 = vmax.f32 %v490, %v690
      %v705 = vmax.f32 %v490, %v694
      %v706 = vmax.f32 %v490, %v698
      %v707 = vsub.f32 %v678, %v703
      %v708 = vsub.f32 %v679, %v704
      %v709 = vsub.f32 %v680, %v705
      %v710 = vsub.f32 %v681, %v706
      %v711 = vmax.f32 %v707, 0.0
      %v712 = vmax.f32 %v708, 0.0
      %v713 = vmax.f32 %v709, 0.0
      %v714 = vmax.f32 %v710, 0.0
      %v716 = vlaneseq
      %v717 = vshrl.u32 %v716, 7
      %v718 = vsub.s32 0, %v717
      %v719 = vrot.slane %v437, %v718
      %v720 = vlaneseq
      %v721 = vshrl.u32 %v720, 7
      %v722 = vsub.s32 1, %v721
      %v723 = vrot.slane %v437, %v722
      %v724 = vlaneseq
      %v725 = vshrl.u32 %v724, 7
      %v726 = vsub.s32 2, %v725
      %v727 = vrot.slane %v437, %v726
      %v728 = vlaneseq
      %v729 = vshrl.u32 %v728, 7
      %v730 = vsub.s32 3, %v729
      %v731 = vrot.slane %v437, %v730
      %v736 = vmin.f32 %v527, %v719
      %v737 = vmin.f32 %v527, %v723
      %v738 = vmin.f32 %v527, %v727
      %v739 = vmin.f32 %v527, %v731
      %v741 = vlaneseq
      %v742 = vshrl.u32 %v741, 7
      %v743 = vsub.s32 0, %v742
      %v744 = vrot.slane %v435, %v743
      %v745 = vlaneseq
      %v746 = vshrl.u32 %v745, 7
      %v747 = vsub.s32 1, %v746
      %v748 = vrot.slane %v435, %v747
      %v749 = vlaneseq
      %v750 = vshrl.u32 %v749, 7
      %v751 = vsub.s32 2, %v750
      %v752 = vrot.slane %v435, %v751
      %v753 = vlaneseq
      %v754 = vshrl.u32 %v753, 7
      %v755 = vsub.s32 3, %v754
      %v756 = vrot.slane %v435, %v755
      %v761 = vmax.f32 %v556, %v744
      %v762 = vmax.f32 %v556, %v748
      %v763 = vmax.f32 %v556, %v752
      %v764 = vmax.f32 %v556, %v756
      %v765 = vsub.f32 %v736, %v761
      %v766 = vsub.f32 %v737, %v762
      %v767 = vsub.f32 %v738, %v763
      %v768 = vsub.f32 %v739, %v764
      %v769 = vmax.f32 %v765, 0.0
      %v770 = vmax.f32 %v766, 0.0
      %v771 = vmax.f32 %v767, 0.0
      %v772 = vmax.f32 %v768, 0.0
      %v773 = vmul.f32 %v711, %v769
      %v774 = vmul.f32 %v712, %v770
      %v775 = vmul.f32 %v713, %v771
      %v776 = vmul.f32 %v714, %v772
      %v777 = vsub.f32 %v436, %v433
      %v778 = vsub.f32 %v437, %v435
      %v779 = vmul.f32 %v777, %v778
      %v781 = vlaneseq
      %v782 = vshrl.u32 %v781, 7
      %v783 = vsub.s32 0, %v782
      %v784 = vrot.slane %v779, %v783
      %v785 = vlaneseq
      %v786 = vshrl.u32 %v785, 7
      %v787 = vsub.s32 1, %v786
      %v788 = vrot.slane %v779, %v787
      %v789 = vlaneseq
      %v790 = vshrl.u32 %v789, 7
      %v791 = vsub.s32 2, %v790
      %v792 = vrot.slane %v779, %v791
      %v793 = vlaneseq
      %v794 = vshrl.u32 %v793, 7
      %v795 = vsub.s32 3, %v794
      %v796 = vrot.slane %v779, %v795
      %v801 = vadd.f32 %v601, %v784
      %v802 = vadd.f32 %v601, %v788
      %v803 = vadd.f32 %v601, %v792
      %v804 = vadd.f32 %v601, %v796
      %v805 = vsub.f32 %v801, %v773
      %v806 = vsub.f32 %v802, %v774
      %v807 = vsub.f32 %v803, %v775
      %v808 = vsub.f32 %v804, %v776
      %v809 = vmax.f32 %v805, 1e-10
      %v810 = vmax.f32 %v806, 1e-10
      %v811 = vmax.f32 %v807, 1e-10
      %v812 = vmax.f32 %v808, 1e-10
      %v813 = vrcp.pop %v809
      %v814 = vrcp.pop %v810
      %v815 = vrcp.pop %v811
      %v816 = vrcp.pop %v812
      %v817 = vmul.f32 %v773, %v813
      %v818 = vmul.f32 %v774, %v814
      %v819 = vmul.f32 %v775, %v815
      %v820 = vmul.f32 %v776, %v816
      %v821 = vld [vmem:[%s385] sm:$0xff]
      %v822 = vld [vmem:[%s385 + $0x8] sm:$0xff]
      %v823 = vld [vmem:[%s385 + $0x10] sm:$0xff]
      %v824 = vld [vmem:[%s385 + $0x18] sm:$0xff]
      %v825 = vmul.f32 %v817, %v821
      %v826 = vmul.f32 %v818, %v822
      %v827 = vmul.f32 %v819, %v823
      %v828 = vmul.f32 %v820, %v824
      %829 = vst [vmem:[%s405] sm:$0xff] %v825
      %830 = vst [vmem:[%s405 + $0x8] sm:$0xff] %v826
      %831 = vst [vmem:[%s405 + $0x10] sm:$0xff] %v827
      %832 = vst [vmem:[%s405 + $0x18] sm:$0xff] %v828
      %s833 = smul.u32 4, %s23
      %p834 = scmp.lt.s32.totalorder %s22, 1
      %s835 = scalar_select %p834, %s22, 1
      %p836 = scmp.lt.s32.totalorder %s833, 3
      %s837 = scalar_select %p836, %s833, 3
      %s838 = smul.addr %s835, 4
      %s839 = sadd.s32 %s837, %s838
      %s840 = smul.addr %s839, 8
      %s841 = scalar_lea.vmem %s5, %s840
      %s842 = smul.u32 4, %s23
      %p843 = scmp.lt.s32.totalorder %s22, 1
      %s844 = scalar_select %p843, %s22, 1
      %p845 = scmp.lt.s32.totalorder %s842, 3
      %s846 = scalar_select %p845, %s842, 3
      %s847 = smul.addr %s844, 4
      %s848 = sadd.s32 %s846, %s847
      %s849 = smul.addr %s848, 8
      %s850 = scalar_lea.vmem %s6, %s849
      // Predicated region
      $region41: #{detection_loss.2} parent=39 // pred_check
        %p851 = pneg %p184
      $region42: #{detection_loss.2} parent=39 // pred_check_branch
        %853 = sbr.rel (%p851) target = $region44
      $region43: #{detection_loss.2} parent=39 // pred_region
        %s854 = smul.u32 4, %s23
      $region44: #{detection_loss.2} parent=39 // pred_fallthru
        _
      // Predicated region
      $region45: #{detection_loss.2} parent=39 // pred_check
        %p855 = pneg %p212
      $region46: #{detection_loss.2} parent=39 // pred_check_branch
        %857 = sbr.rel (%p855) target = $region48
      $region47: #{detection_loss.2} parent=39 // pred_region
        %s858 = smul.u32 4, %s23
      $region48: #{detection_loss.2} parent=39 // pred_fallthru
        _
    $region40: #{detection_loss.2} parent=5 // pred_fallthru
      _
    %p859 = scmp.le.s32.totalorder 2, %s13
    // Predicated region
    $region49: #{detection_loss.2} parent=5 // pred_check
      %p860 = pneg %p859
    $region50: #{detection_loss.2} parent=5 // pred_check_branch
      %862 = sbr.rel (%p860) target = $region52
    $region51: #{detection_loss.2} parent=5 // pred_region
      %s863 = ssub.s32 %s13, 2
      // Predicated region
      $region53: #{detection_loss.2} parent=51 // pred_check
        %p864 = pneg %p190
      $region54: #{detection_loss.2} parent=51 // pred_check_branch
        %866 = sbr.rel (%p864) target = $region56
      $region55: #{detection_loss.2} parent=51 // pred_region
        %s867 = smul.u32 4, %s25
        %p868 = scmp.lt.s32.totalorder %s24, 1
        %s869 = scalar_select %p868, %s24, 1
        %p870 = scmp.lt.s32.totalorder %s867, 3
        %s871 = scalar_select %p870, %s867, 3
        %s872 = smul.addr %s869, 4
        %s873 = sadd.s32 %s871, %s872
        %s874 = smul.addr %s873, 8
        %s875 = scalar_lea.vmem %s5, %s874
      $region56: #{detection_loss.2} parent=51 // pred_fallthru
        _
      // Predicated region
      $region57: #{detection_loss.2} parent=51 // pred_check
        %p876 = pneg %p218
      $region58: #{detection_loss.2} parent=51 // pred_check_branch
        %878 = sbr.rel (%p876) target = $region60
      $region59: #{detection_loss.2} parent=51 // pred_region
        %s879 = smul.u32 4, %s25
        %p880 = scmp.lt.s32.totalorder %s24, 1
        %s881 = scalar_select %p880, %s24, 1
        %p882 = scmp.lt.s32.totalorder %s879, 3
        %s883 = scalar_select %p882, %s879, 3
        %s884 = smul.addr %s881, 4
        %s885 = sadd.s32 %s883, %s884
        %s886 = smul.addr %s885, 8
        %s887 = scalar_lea.vmem %s6, %s886
      $region60: #{detection_loss.2} parent=51 // pred_fallthru
        _
    $region52: #{detection_loss.2} parent=5 // pred_fallthru
      _
  $region6: #{detection_loss.2} parent=0 // loop_footer
    %s17 = sadd.s32 1, %s13
  $region7: #{detection_loss.2} parent=0 // loop_footer_branch
    %12 = sbr.rel target = $region3
  $region8: #{detection_loss.2} parent=0 // loop_exit
    _

// kernel: detection_loss.3
$region0: #{detection_loss.3}
  #allocation0 [shape = 'u32[]', space=smem, size = 0x4, offset = 0x4, fixed_abs, tag = 'smem constant byte address 0x4 - core index']
  #allocation1 [shape = 'u32[144,128]{1,0:T(1,128)}', space=vmem, size = 0x12000, scoped, tag = 'internal scratch']
  %s0 = inlined_call_operand.vmem [shape: bf16[64,128], index: 0, kind: input, shape index: {}]
  %s1 = inlined_call_operand.vmem [shape: bf16[64,128], index: 1, kind: input, shape index: {}]
  %s2 = inlined_call_operand.vmem [shape: bf16[32,128], index: 2, kind: input, shape index: {}]
  %s3 = inlined_call_operand.vmem [shape: bf16[32,128], index: 3, kind: input, shape index: {}]
  %s4 = inlined_call_operand.vmem [shape: bf16[32,128], index: 4, kind: input, shape index: {}]
  %s5 = inlined_call_operand.vmem [shape: f32[2,8,128], index: 5, kind: output, shape index: {0}]
  %s6 = inlined_call_operand.vmem [shape: f32[2,8,128], index: 6, kind: output, shape index: {1}]
  %7 = xla_tuple %s5, %s6
  %s8 = sld [smem:[#allocation0]]
  $region65: #{detection_loss.3} parent=0
    _
  %s10 = ssub.s32 1, %s8
  %s11 = scalar_select 0, %s10, %s8
  loop: start=0, step=1, limit=4
  $region2: #{detection_loss.3} parent=0 // loop_pre_header
    _
  $region3: #{detection_loss.3} parent=0 // loop_header
    %s13 = sphi 0, %s17
    %p14 = scmp.ge.s32.totalorder %s13, 4
    %s20 = sphi 0, %s32
    %s21 = sphi 0, %s28
    %s22 = sphi 0, %s20
    %s23 = sphi 0, %s21
    %s24 = sphi 0, %s22
    %s25 = sphi 0, %s23
    %s37 = sphi 0, %s39
    %s40 = sphi 0, %s37
    %s41 = sphi 0, %s40
    %s57 = sphi 0, %s41
    %s65 = sphi 0, %s67
    %s68 = sphi 0, %s65
    %s69 = sphi 0, %s68
    %s85 = sphi 0, %s69
    %s93 = sphi 0, %s95
    %s96 = sphi 0, %s93
    %s97 = sphi 0, %s96
    %s113 = sphi 0, %s97
    %s121 = sphi 0, %s123
    %s124 = sphi 0, %s121
    %s125 = sphi 0, %s124
    %s141 = sphi 0, %s125
    %s149 = sphi 0, %s151
    %s152 = sphi 0, %s149
    %s153 = sphi 0, %s152
    %s169 = sphi 0, %s153
    %s175 = sphi 0, %s177
    %s178 = sphi 0, %s175
    %s179 = sphi 0, %s178
    %s195 = sphi 0, %s179
    %s201 = sphi 0, %s203
    %s204 = sphi 0, %s201
    %s205 = sphi 0, %s204
    %s221 = sphi 0, %s205
  $region4: #{detection_loss.3} parent=0 // loop_header_branch
    %16 = sbr.rel (%p14) target = $region8
  $region5: #{detection_loss.3} parent=0 // loop_body
    %s18 = ssub.s32 %s13, 1
    %s19 = ssub.s32 %s13, 2
    %s26 = sadd.s32 1, %s21
    %p27 = scmp.ge.s32.totalorder %s26, 1
    %s28 = scalar_select %p27, 0, %s26
    %s29 = sadd.s32 1, %s20
    %s30 = scalar_select %p27, %s29, %s20
    %p31 = scmp.ge.s32.totalorder %s30, 2
    %s32 = scalar_select %p31, 0, %s30
    %s33 = sadd.s32 %s20, %s21
    %s34 = sadd.s32 %s32, %s28
    %s35 = ssub.s32 %s33, %s34
    %p36 = scmp.eq.s32.totalorder %s35, 0
    %s38 = sadd.s32 %s37, 1
    %s39 = scalar_select %p36, %s37, %s38
    %p42 = pneg %p36
    %p43 = scmp.eq.s32.totalorder %s13, 1
    %p44 = por %p42, %p43
    %p45 = scmp.ne.s32.totalorder %s37, %s40
    %p46 = scmp.eq.s32.totalorder %s13, 0
    %p47 = por %p45, %p46
    %p48 = scmp.ne.s32.totalorder %s37, %s40
    %p49 = scmp.eq.s32.totalorder %s18, 1
    %p50 = por %p48, %p49
    %p51 = scmp.ne.s32.totalorder %s40, %s41
    %p52 = scmp.eq.s32.totalorder %s18, 0
    %p53 = por %p51, %p52
    %p54 = scmp.ne.s32.totalorder %s40, %s41
    %p55 = scmp.eq.s32.totalorder %s19, 1
    %p56 = por %p54, %p55
    %p58 = scmp.ne.s32.totalorder %s41, %s57
    %p59 = scmp.eq.s32.totalorder %s19, 0
    %p60 = por %p58, %p59
    %s61 = sadd.s32 %s20, %s21
    %s62 = sadd.s32 %s32, %s28
    %s63 = ssub.s32 %s61, %s62
    %p64 = scmp.eq.s32.totalorder %s63, 0
    %s66 = sadd.s32 %s65, 1
    %s67 = scalar_select %p64, %s65, %s66
    %p70 = pneg %p64
    %p71 = scmp.eq.s32.totalorder %s13, 1
    %p72 = por %p70, %p71
    %p73 = scmp.ne.s32.totalorder %s65, %s68
    %p74 = scmp.eq.s32.totalorder %s13, 0
    %p75 = por %p73, %p74
    %p76 = scmp.ne.s32.totalorder %s65, %s68
    %p77 = scmp.eq.s32.totalorder %s18, 1
    %p78 = por %p76, %p77
    %p79 = scmp.ne.s32.totalorder %s68, %s69
    %p80 = scmp.eq.s32.totalorder %s18, 0
    %p81 = por %p79, %p80
    %p82 = scmp.ne.s32.totalorder %s68, %s69
    %p83 = scmp.eq.s32.totalorder %s19, 1
    %p84 = por %p82, %p83
    %p86 = scmp.ne.s32.totalorder %s69, %s85
    %p87 = scmp.eq.s32.totalorder %s19, 0
    %p88 = por %p86, %p87
    %s89 = sadd.s32 %s20, %s21
    %s90 = sadd.s32 %s32, %s28
    %s91 = ssub.s32 %s89, %s90
    %p92 = scmp.eq.s32.totalorder %s91, 0
    %s94 = sadd.s32 %s93, 1
    %s95 = scalar_select %p92, %s93, %s94
    %p98 = pneg %p92
    %p99 = scmp.eq.s32.totalorder %s13, 1
    %p100 = por %p98, %p99
    %p101 = scmp.ne.s32.totalorder %s93, %s96
    %p102 = scmp.eq.s32.totalorder %s13, 0
    %p103 = por %p101, %p102
    %p104 = scmp.ne.s32.totalorder %s93, %s96
    %p105 = scmp.eq.s32.totalorder %s18, 1
    %p106 = por %p104, %p105
    %p107 = scmp.ne.s32.totalorder %s96, %s97
    %p108 = scmp.eq.s32.totalorder %s18, 0
    %p109 = por %p107, %p108
    %p110 = scmp.ne.s32.totalorder %s96, %s97
    %p111 = scmp.eq.s32.totalorder %s19, 1
    %p112 = por %p110, %p111
    %p114 = scmp.ne.s32.totalorder %s97, %s113
    %p115 = scmp.eq.s32.totalorder %s19, 0
    %p116 = por %p114, %p115
    %s117 = sadd.s32 %s20, %s21
    %s118 = sadd.s32 %s32, %s28
    %s119 = ssub.s32 %s117, %s118
    %p120 = scmp.eq.s32.totalorder %s119, 0
    %s122 = sadd.s32 %s121, 1
    %s123 = scalar_select %p120, %s121, %s122
    %p126 = pneg %p120
    %p127 = scmp.eq.s32.totalorder %s13, 1
    %p128 = por %p126, %p127
    %p129 = scmp.ne.s32.totalorder %s121, %s124
    %p130 = scmp.eq.s32.totalorder %s13, 0
    %p131 = por %p129, %p130
    %p132 = scmp.ne.s32.totalorder %s121, %s124
    %p133 = scmp.eq.s32.totalorder %s18, 1
    %p134 = por %p132, %p133
    %p135 = scmp.ne.s32.totalorder %s124, %s125
    %p136 = scmp.eq.s32.totalorder %s18, 0
    %p137 = por %p135, %p136
    %p138 = scmp.ne.s32.totalorder %s124, %s125
    %p139 = scmp.eq.s32.totalorder %s19, 1
    %p140 = por %p138, %p139
    %p142 = scmp.ne.s32.totalorder %s125, %s141
    %p143 = scmp.eq.s32.totalorder %s19, 0
    %p144 = por %p142, %p143
    %s145 = sadd.s32 %s20, %s21
    %s146 = sadd.s32 %s32, %s28
    %s147 = ssub.s32 %s145, %s146
    %p148 = scmp.eq.s32.totalorder %s147, 0
    %s150 = sadd.s32 %s149, 1
    %s151 = scalar_select %p148, %s149, %s150
    %p154 = pneg %p148
    %p155 = scmp.eq.s32.totalorder %s13, 1
    %p156 = por %p154, %p155
    %p157 = scmp.ne.s32.totalorder %s149, %s152
    %p158 = scmp.eq.s32.totalorder %s13, 0
    %p159 = por %p157, %p158
    %p160 = scmp.ne.s32.totalorder %s149, %s152
    %p161 = scmp.eq.s32.totalorder %s18, 1
    %p162 = por %p160, %p161
    %p163 = scmp.ne.s32.totalorder %s152, %s153
    %p164 = scmp.eq.s32.totalorder %s18, 0
    %p165 = por %p163, %p164
    %p166 = scmp.ne.s32.totalorder %s152, %s153
    %p167 = scmp.eq.s32.totalorder %s19, 1
    %p168 = por %p166, %p167
    %p170 = scmp.ne.s32.totalorder %s153, %s169
    %p171 = scmp.eq.s32.totalorder %s19, 0
    %p172 = por %p170, %p171
    %s173 = ssub.s32 %s20, %s32
    %p174 = scmp.eq.s32.totalorder %s173, 0
    %s176 = sadd.s32 %s175, 1
    %s177 = scalar_select %p174, %s175, %s176
    %p180 = pneg %p174
    %p181 = scmp.eq.s32.totalorder %s13, 1
    %p182 = por %p180, %p181
    %p183 = scmp.ne.s32.totalorder %s175, %s178
    %p184 = scmp.eq.s32.totalorder %s13, 0
    %p185 = por %p183, %p184
    %p186 = scmp.ne.s32.totalorder %s175, %s178
    %p187 = scmp.eq.s32.totalorder %s18, 1
    %p188 = por %p186, %p187
    %p189 = scmp.ne.s32.totalorder %s178, %s179
    %p190 = scmp.eq.s32.totalorder %s18, 0
    %p191 = por %p189, %p190
    %p192 = scmp.ne.s32.totalorder %s178, %s179
    %p193 = scmp.eq.s32.totalorder %s19, 1
    %p194 = por %p192, %p193
    %p196 = scmp.ne.s32.totalorder %s179, %s195
    %p197 = scmp.eq.s32.totalorder %s19, 0
    %p198 = por %p196, %p197
    %s199 = ssub.s32 %s20, %s32
    %p200 = scmp.eq.s32.totalorder %s199, 0
    %s202 = sadd.s32 %s201, 1
    %s203 = scalar_select %p200, %s201, %s202
    %p206 = pneg %p200
    %p207 = scmp.eq.s32.totalorder %s13, 1
    %p208 = por %p206, %p207
    %p209 = scmp.ne.s32.totalorder %s201, %s204
    %p210 = scmp.eq.s32.totalorder %s13, 0
    %p211 = por %p209, %p210
    %p212 = scmp.ne.s32.totalorder %s201, %s204
    %p213 = scmp.eq.s32.totalorder %s18, 1
    %p214 = por %p212, %p213
    %p215 = scmp.ne.s32.totalorder %s204, %s205
    %p216 = scmp.eq.s32.totalorder %s18, 0
    %p217 = por %p215, %p216
    %p218 = scmp.ne.s32.totalorder %s204, %s205
    %p219 = scmp.eq.s32.totalorder %s19, 1
    %p220 = por %p218, %p219
    %p222 = scmp.ne.s32.totalorder %s205, %s221
    %p223 = scmp.eq.s32.totalorder %s19, 0
    %p224 = por %p222, %p223
    %p225 = scmp.le.s32.totalorder 1, %s13
    %p226 = scmp.lt.s32.totalorder %s13, 3
    %p227 = pnand %p225, %p226
    %p228 = pneg %p227
    // Predicated region
    $region9: #{detection_loss.3} parent=5 // pred_check
      _
    $region10: #{detection_loss.3} parent=5 // pred_check_branch
      %230 = sbr.rel (%p227) target = $region12
    $region11: #{detection_loss.3} parent=5 // pred_region
      %s231 = ssub.s32 %s13, 1
    $region12: #{detection_loss.3} parent=5 // pred_fallthru
      _
    %p232 = scmp.lt.s32.totalorder %s13, 2
    // Predicated region
    $region13: #{detection_loss.3} parent=5 // pred_check
      %p233 = pneg %p232
    $region14: #{detection_loss.3} parent=5 // pred_check_branch
      %235 = sbr.rel (%p233) target = $region16
    $region15: #{detection_loss.3} parent=5 // pred_region
      // Predicated region
      $region17: #{detection_loss.3} parent=15 // pred_check
        %p236 = pneg %p47
      $region18: #{detection_loss.3} parent=15 // pred_check_branch
        %238 = sbr.rel (%p236) target = $region20
      $region19: #{detection_loss.3} parent=15 // pred_region
        %s239 = sadd.s32 %s20, %s21
        %s240 = smul.u32 4, %s239
        %p241 = scmp.lt.s32.totalorder %s240, 7
        %s242 = scalar_select %p241, %s240, 7
        %s243 = smul.addr %s242, 4
        %s244 = scalar_lea.vmem %s0, %s243
        %s245 = sadd.s32 %s20, %s21
        %s246 = smul.u32 4, %s245
      $region20: #{detection_loss.3} parent=15 // pred_fallthru
        _
      // Predicated region
      $region21: #{detection_loss.3} parent=15 // pred_check
        %p247 = pneg %p75
      $region22: #{detection_loss.3} parent=15 // pred_check_branch
        %249 = sbr.rel (%p247) target = $region24
      $region23: #{detection_loss.3} parent=15 // pred_region
        %s250 = sadd.s32 %s20, %s21
        %s251 = smul.u32 4, %s250
        %p252 = scmp.lt.s32.totalorder %s251, 7
        %s253 = scalar_select %p252, %s251, 7
        %s254 = smul.addr %s253, 4
        %s255 = scalar_lea.vmem %s1, %s254
        %s256 = sadd.s32 %s20, %s21
        %s257 = smul.u32 4, %s256
      $region24: #{detection_loss.3} parent=15 // pred_fallthru
        _
      // Predicated region
      $region25: #{detection_loss.3} parent=15 // pred_check
        %p258 = pneg %p103
      $region26: #{detection_loss.3} parent=15 // pred_check_branch
        %260 = sbr.rel (%p258) target = $region28
      $region27: #{detection_loss.3} parent=15 // pred_region
        %s261 = sadd.s32 %s20, %s21
        %s262 = smul.u32 2, %s261
        %p263 = scmp.lt.s32.totalorder %s262, 3
        %s264 = scalar_select %p263, %s262, 3
        %s265 = smul.addr %s264, 4
        %s266 = scalar_lea.vmem %s2, %s265
        %s267 = sadd.s32 %s20, %s21
        %s268 = smul.u32 2, %s267
      $region28: #{detection_loss.3} parent=15 // pred_fallthru
        _
      // Predicated region
      $region29: #{detection_loss.3} parent=15 // pred_check
        %p269 = pneg %p131
      $region30: #{detection_loss.3} parent=15 // pred_check_branch
        %271 = sbr.rel (%p269) target = $region32
      $region31: #{detection_loss.3} parent=15 // pred_region
        %s272 = sadd.s32 %s20, %s21
        %s273 = smul.u32 2, %s272
        %p274 = scmp.lt.s32.totalorder %s273, 3
        %s275 = scalar_select %p274, %s273, 3
        %s276 = smul.addr %s275, 4
        %s277 = scalar_lea.vmem %s3, %s276
        %s278 = sadd.s32 %s20, %s21
        %s279 = smul.u32 2, %s278
      $region32: #{detection_loss.3} parent=15 // pred_fallthru
        _
      // Predicated region
      $region33: #{detection_loss.3} parent=15 // pred_check
        %p280 = pneg %p159
      $region34: #{detection_loss.3} parent=15 // pred_check_branch
        %282 = sbr.rel (%p280) target = $region36
      $region35: #{detection_loss.3} parent=15 // pred_region
        %s283 = sadd.s32 %s20, %s21
        %s284 = smul.u32 2, %s283
        %p285 = scmp.lt.s32.totalorder %s284, 3
        %s286 = scalar_select %p285, %s284, 3
        %s287 = smul.addr %s286, 4
        %s288 = scalar_lea.vmem %s4, %s287
        %s289 = sadd.s32 %s20, %s21
        %s290 = smul.u32 2, %s289
      $region36: #{detection_loss.3} parent=15 // pred_fallthru
        _
    $region16: #{detection_loss.3} parent=5 // pred_fallthru
      _
    %p291 = scmp.le.s32.totalorder 1, %s13
    %p292 = scmp.lt.s32.totalorder %s13, 3
    %p293 = pnand %p291, %p292
    %p294 = pneg %p293
    // Predicated region
    $region37: #{detection_loss.3} parent=5 // pred_check
      _
    $region38: #{detection_loss.3} parent=5 // pred_check_branch
      %296 = sbr.rel (%p293) target = $region40
    $region39: #{detection_loss.3} parent=5 // pred_region
      %s297 = ssub.s32 %s13, 1
      %s298 = sadd.s32 %s22, %s23
      %s299 = smul.u32 4, %s298
      %p300 = scmp.lt.s32.totalorder %s299, 7
      %s301 = scalar_select %p300, %s299, 7
      %s302 = smul.addr %s301, 4
      %s303 = scalar_lea.vmem %s0, %s302
      %p304 = pneg %p53
      %p305 = pneg %p50
      %s306 = sadd.s32 %s22, %s23
      %s307 = smul.u32 4, %s306
      %p308 = scmp.lt.s32.totalorder %s307, 7
      %s309 = scalar_select %p308, %s307, 7
      %s310 = smul.addr %s309, 4
      %s311 = scalar_lea.vmem %s1, %s310
      %p312 = pneg %p81
      %p313 = pneg %p78
      %s314 = sadd.s32 %s22, %s23
      %s315 = smul.u32 2, %s314
      %p316 = scmp.lt.s32.totalorder %s315, 3
      %s317 = scalar_select %p316, %s315, 3
      %s318 = smul.addr %s317, 4
      %s319 = scalar_lea.vmem %s2, %s318
      %p320 = pneg %p109
      %p321 = pneg %p106
      %s322 = sadd.s32 %s22, %s23
      %s323 = smul.u32 2, %s322
      %p324 = scmp.lt.s32.totalorder %s323, 3
      %s325 = scalar_select %p324, %s323, 3
      %s326 = smul.addr %s325, 4
      %s327 = scalar_lea.vmem %s3, %s326
      %p328 = pneg %p137
      %p329 = pneg %p134
      %s330 = sadd.s32 %s22, %s23
      %s331 = smul.u32 2, %s330
      %p332 = scmp.lt.s32.totalorder %s331, 3
      %s333 = scalar_select %p332, %s331, 3
      %s334 = smul.addr %s333, 4
      %s335 = scalar_lea.vmem %s4, %s334
      %p336 = pneg %p165
      %p337 = pneg %p162
      %p338 = pneg %p191
      %p339 = pneg %p188
      %p340 = scmp.lt.s32.totalorder %s22, 1
      %s341 = scalar_select %p340, %s22, 1
      %s342 = smul.addr %s341, 8
      %s343 = scalar_lea.vmem %s5, %s342
      %p344 = pneg %p217
      %p345 = pneg %p214
      %p346 = scmp.lt.s32.totalorder %s22, 1
      %s347 = scalar_select %p346, %s22, 1
      %s348 = smul.addr %s347, 8
      %s349 = scalar_lea.vmem %s6, %s348
      %s350 = sadd.s32 %s22, %s23
      %s351 = smul.u32 4, %s350
      %p352 = scmp.lt.s32.totalorder %s351, 7
      %s353 = scalar_select %p352, %s351, 7
      %s354 = smul.addr %s353, 4
      %s355 = scalar_lea.vmem %s0, %s354
      %s356 = sadd.s32 %s22, %s23
      %s357 = smul.u32 4, %s356
      %s358 = sadd.s32 %s22, %s23
      %s359 = smul.u32 4, %s358
      %p360 = scmp.lt.s32.totalorder %s359, 7
      %s361 = scalar_select %p360, %s359, 7
      %s362 = smul.addr %s361, 4
      %s363 = scalar_lea.vmem %s1, %s362
      %s364 = sadd.s32 %s22, %s23
      %s365 = smul.u32 4, %s364
      %s366 = sadd.s32 %s22, %s23
      %s367 = smul.u32 2, %s366
      %p368 = scmp.lt.s32.totalorder %s367, 3
      %s369 = scalar_select %p368, %s367, 3
      %s370 = smul.addr %s369, 4
      %s371 = scalar_lea.vmem %s2, %s370
      %s372 = sadd.s32 %s22, %s23
      %s373 = smul.u32 2, %s372
      %s374 = sadd.s32 %s22, %s23
      %s375 = smul.u32 2, %s374
      %p376 = scmp.lt.s32.totalorder %s375, 3
      %s377 = scalar_select %p376, %s375, 3
      %s378 = smul.addr %s377, 4
      %s379 = scalar_lea.vmem %s3, %s378
      %s380 = sadd.s32 %s22, %s23
      %s381 = smul.u32 2, %s380
      %s382 = sadd.s32 %s22, %s23
      %s383 = smul.u32 2, %s382
      %p384 = scmp.lt.s32.totalorder %s383, 3
      %s385 = scalar_select %p384, %s383, 3
      %s386 = smul.addr %s385, 4
      %s387 = scalar_lea.vmem %s4, %s386
      %s388 = sadd.s32 %s22, %s23
      %s389 = smul.u32 2, %s388
      %p390 = scmp.lt.s32.totalorder %s22, 1
      %s391 = scalar_select %p390, %s22, 1
      %s392 = smul.addr %s391, 8
      %s393 = scalar_lea.vmem %s5, %s392
      %p394 = scmp.lt.s32.totalorder %s22, 1
      %s395 = scalar_select %p394, %s22, 1
      %s396 = smul.addr %s395, 8
      %s397 = scalar_lea.vmem %s6, %s396
      %p398 = scmp.eq.s32.totalorder %s23, 0
      // Predicated region
      $region41: #{detection_loss.3} parent=39 // pred_check
        %p399 = pneg %p398
      $region42: #{detection_loss.3} parent=39 // pred_check_branch
        %401 = sbr.rel (%p399) target = $region44
      $region43: #{detection_loss.3} parent=39 // pred_region
        %402 = vst [vmem:[%s393] sm:$0xff] 0.0
        %403 = vst [vmem:[%s397] sm:$0xff] 0.0
      $region44: #{detection_loss.3} parent=39 // pred_fallthru
        _
      %v404 = vld [vmem:[%s355] sm:$0xf]
      %v405 = vld [vmem:[%s355 + $0x4] sm:$0xf]
      %v406 = vld [vmem:[%s355 + $0x8] sm:$0xf]
      %v407 = vld [vmem:[%s355 + $0xc] sm:$0xf]
      %v408 = vunpack.c.l.bf16 %v404
      %v409 = vunpack.c.l.bf16 %v405
      %v410 = vunpack.c.l.bf16 %v406
      %v411 = vunpack.c.l.bf16 %v407
      %v412 = vld [vmem:[%s363] sm:$0xf]
      %v413 = vld [vmem:[%s363 + $0x4] sm:$0xf]
      %v414 = vld [vmem:[%s363 + $0x8] sm:$0xf]
      %v415 = vld [vmem:[%s363 + $0xc] sm:$0xf]
      %v416 = vunpack.c.l.bf16 %v412
      %v417 = vunpack.c.l.bf16 %v413
      %v418 = vunpack.c.l.bf16 %v414
      %v419 = vunpack.c.l.bf16 %v415
      %v420 = vand.u32 2147483647, %v408
      %v421 = vand.u32 2147483647, %v409
      %v422 = vand.u32 2147483647, %v410
      %v423 = vand.u32 2147483647, %v411
      %v424 = vsub.f32 0.0, %v420
      %v425 = vsub.f32 0.0, %v421
      %v426 = vsub.f32 0.0, %v422
      %v427 = vsub.f32 0.0, %v423
      %v428 = vmul.f32 %v424, 1.442695
      %v429 = vpow.pop %v428
      %v430 = vmul.f32 %v425, 1.442695
      %v431 = vpow.pop %v430
      %v432 = vmul.f32 %v426, 1.442695
      %v433 = vpow.pop %v432
      %v434 = vmul.f32 %v427, 1.442695
      %v435 = vpow.pop %v434
      %v436 = vadd.f32 %v429, 1.0
      %v437 = vadd.f32 %v431, 1.0
      %v438 = vadd.f32 %v433, 1.0
      %v439 = vadd.f32 %v435, 1.0
      %v440 = vrcp.pop %v436
      %v441 = vrcp.pop %v437
      %v442 = vrcp.pop %v438
      %v443 = vrcp.pop %v439
      %vm444 = vcmp.ge.f32.partialorder %v408, 0.0
      %vm445 = vcmp.ge.f32.partialorder %v409, 0.0
      %vm446 = vcmp.ge.f32.partialorder %v410, 0.0
      %vm447 = vcmp.ge.f32.partialorder %v411, 0.0
      %v448 = vmul.f32 %v429, %v440
      %v449 = vmul.f32 %v431, %v441
      %v450 = vmul.f32 %v433, %v442
      %v451 = vmul.f32 %v435, %v443
      %v452 = vsel %vm444, %v440, %v448
      %v453 = vsel %vm445, %v441, %v449
      %v454 = vsel %vm446, %v442, %v450
      %v455 = vsel %vm447, %v443, %v451
      %v456 = vmax.f32 %v408, 0.0
      %v457 = vmax.f32 %v409, 0.0
      %v458 = vmax.f32 %v410, 0.0
      %v459 = vmax.f32 %v411, 0.0
      %v460 = vmul.f32 %v408, %v416
      %v461 = vmul.f32 %v409, %v417
      %v462 = vmul.f32 %v410, %v418
      %v463 = vmul.f32 %v411, %v419
      %v464 = vsub.f32 %v456, %v460
      %v465 = vsub.f32 %v457, %v461
      %v466 = vsub.f32 %v458, %v462
      %v467 = vsub.f32 %v459, %v463
      %v468 = vadd.f32 %v429, 1.0
      %v469 = vlog2.pop %v468
      %v470 = vmul.f32 %v469, 0.6931472
      %v471 = vmul.f32 -0.5, %v429
      %v472 = vadd.f32 %v471, 1.0
      %v473 = vmul.f32 %v472, %v429
      %v474 = vand.u32 2147483647, %v429
      %vm475 = vcmp.lt.f32.partialorder %v474, 0.0004427343
      %v476 = vsel %vm475, %v473, %v470
      %v477 = vadd.f32 %v431, 1.0
      %v478 = vlog2.pop %v477
      %v479 = vmul.f32 %v478, 0.6931472
      %v480 = vmul.f32 -0.5, %v431
      %v481 = vadd.f32 %v480, 1.0
      %v482 = vmul.f32 %v481, %v431
      %v483 = vand.u32 2147483647, %v431
      %vm484 = vcmp.lt.f32.partialorder %v483, 0.0004427343
      %v485 = vsel %vm484, %v482, %v479
      %v486 = vadd.f32 %v433, 1.0
      %v487 = vlog2.pop %v486
      %v488 = vmul.f32 %v487, 0.6931472
      %v489 = vmul.f32 -0.5, %v433
      %v490 = vadd.f32 %v489, 1.0
      %v491 = vmul.f32 %v490, %v433
      %v492 = vand.u32 2147483647, %v433
      %vm493 = vcmp.lt.f32.partialorder %v492, 0.0004427343
      %v494 = vsel %vm493, %v491, %v488
      %v495 = vadd.f32 %v435, 1.0
      %v496 = vlog2.pop %v495
      %v497 = vmul.f32 %v496, 0.6931472
      %v498 = vmul.f32 -0.5, %v435
      %v499 = vadd.f32 %v498, 1.0
      %v500 = vmul.f32 %v499, %v435
      %v501 = vand.u32 2147483647, %v435
      %vm502 = vcmp.lt.f32.partialorder %v501, 0.0004427343
      %v503 = vsel %vm502, %v500, %v497
      %v504 = vadd.f32 %v464, %v476
      %v505 = vadd.f32 %v465, %v485
      %v506 = vadd.f32 %v466, %v494
      %v507 = vadd.f32 %v467, %v503
      %v508 = vsub.f32 %v452, %v416
      %v509 = vsub.f32 %v453, %v417
      %v510 = vsub.f32 %v454, %v418
      %v511 = vsub.f32 %v455, %v419
      %v512 = vmul.f32 %v508, %v508
      %v513 = vmul.f32 %v509, %v509
      %v514 = vmul.f32 %v510, %v510
      %v515 = vmul.f32 %v511, %v511
      %v516 = vmul.f32 %v504, %v512
      %v517 = vmul.f32 %v505, %v513
      %v518 = vmul.f32 %v506, %v514
      %v519 = vmul.f32 %v507, %v515
      %v520 = vld [vmem:[%s393] sm:$0xff]
      %v521 = vadd.f32 %v516, %v517
      %v522 = vadd.f32 %v521, %v518
      %v523 = vadd.f32 %v522, %v519
      %v524 = vadd.f32 %v520, %v523
      %525 = vst [vmem:[%s393] sm:$0xff] %v524
      %v526 = vld [vmem:[%s371] sm:$0xf]
      %v527 = vld [vmem:[%s371 + $0x4] sm:$0xf]
      %v528 = vunpack.c.l.bf16 %v526
      %v529 = vunpack.c.l.bf16 %v527
      %v530 = vld [vmem:[%s379] sm:$0xf]
      %v531 = vld [vmem:[%s379 + $0x4] sm:$0xf]
      %v532 = vunpack.c.l.bf16 %v530
      %v533 = vunpack.c.l.bf16 %v531
      %v534 = vsub.f32 %v528, %v532
      %v535 = vsub.f32 %v529, %v533
      %v536 = vand.u32 2147483647, %v534
      %v537 = vand.u32 2147483647, %v535
      %v538 = vmul.f32 %v536, 19.085537
      %v539 = vmul.f32 %v537, 19.085537
      %v540 = vadd.f32 %v538, 1.0
      %v541 = vadd.f32 %v539, 1.0
      %v542 = vmul.f32 %v540, 0.026197849
      %v543 = vmul.f32 %v541, 0.026197849
      %v544 = vrcp.pop 0.11
      %v545 = vmul.f32 %v538, %v544
      %v546 = vmul.f32 %v539, %v544
      %v547 = vadd.f32 %v545, 1.0
      %v548 = vadd.f32 %v546, 1.0
      %v549 = vlog2.pop %v547
      %v550 = vmul.f32 %v549, 0.6931472
      %v551 = vlog2.pop %v548
      %v552 = vmul.f32 %v551, 0.6931472
      %v553 = vmul.f32 %v542, %v550
      %v554 = vmul.f32 %v543, %v552
      %v555 = vmul.f32 %v536, 0.5
      %v556 = vmul.f32 %v537, 0.5
      %v557 = vsub.f32 %v553, %v555
      %v558 = vsub.f32 %v554, %v556
      %v559 = vmul.f32 %v536, 1.5
      %v560 = vmul.f32 %v537, 1.5
      %v561 = vadd.f32 %v559, 0.023593545
      %v562 = vadd.f32 %v560, 0.023593545
      %vm563 = vcmp.lt.f32.partialorder %v536, 0.11
      %vm564 = vcmp.lt.f32.partialorder %v537, 0.11
      %v565 = vsel %vm563, %v557, %v561
      %v566 = vsel %vm564, %v558, %v562
      %v567 = vld [vmem:[%s387] sm:$0xf]
      %v568 = vld [vmem:[%s387 + $0x4] sm:$0xf]
      %v569 = vunpack.c.l.bf16 %v567
      %v570 = vunpack.c.l.bf16 %v568
      %v571 = vmul.f32 %v565, %v569
      %v572 = vmul.f32 %v566, %v570
      %v573 = vld [vmem:[%s397] sm:$0xff]
      %v574 = vadd.f32 %v571, %v572
      %v575 = vadd.f32 %v573, %v574
      %576 = vst [vmem:[%s397] sm:$0xff] %v575
      %p577 = scmp.lt.s32.totalorder %s22, 1
      %s578 = scalar_select %p577, %s22, 1
      %s579 = smul.addr %s578, 8
      %s580 = scalar_lea.vmem %s5, %s579
      %p581 = scmp.lt.s32.totalorder %s22, 1
      %s582 = scalar_select %p581, %s22, 1
      %s583 = smul.addr %s582, 8
      %s584 = scalar_lea.vmem %s6, %s583
      // Predicated region
      $region45: #{detection_loss.3} parent=39 // pred_check
        %p585 = pneg %p188
      $region46: #{detection_loss.3} parent=39 // pred_check_branch
        %587 = sbr.rel (%p585) target = $region48
      $region47: #{detection_loss.3} parent=39 // pred_region
        _
      $region48: #{detection_loss.3} parent=39 // pred_fallthru
        _
      // Predicated region
      $region49: #{detection_loss.3} parent=39 // pred_check
        %p588 = pneg %p214
      $region50: #{detection_loss.3} parent=39 // pred_check_branch
        %590 = sbr.rel (%p588) target = $region52
      $region51: #{detection_loss.3} parent=39 // pred_region
        _
      $region52: #{detection_loss.3} parent=39 // pred_fallthru
        _
    $region40: #{detection_loss.3} parent=5 // pred_fallthru
      _
    %p591 = scmp.le.s32.totalorder 2, %s13
    // Predicated region
    $region53: #{detection_loss.3} parent=5 // pred_check
      %p592 = pneg %p591
    $region54: #{detection_loss.3} parent=5 // pred_check_branch
      %594 = sbr.rel (%p592) target = $region56
    $region55: #{detection_loss.3} parent=5 // pred_region
      %s595 = ssub.s32 %s13, 2
      // Predicated region
      $region57: #{detection_loss.3} parent=55 // pred_check
        %p596 = pneg %p194
      $region58: #{detection_loss.3} parent=55 // pred_check_branch
        %598 = sbr.rel (%p596) target = $region60
      $region59: #{detection_loss.3} parent=55 // pred_region
        %p599 = scmp.lt.s32.totalorder %s24, 1
        %s600 = scalar_select %p599, %s24, 1
        %s601 = smul.addr %s600, 8
        %s602 = scalar_lea.vmem %s5, %s601
      $region60: #{detection_loss.3} parent=55 // pred_fallthru
        _
      // Predicated region
      $region61: #{detection_loss.3} parent=55 // pred_check
        %p603 = pneg %p220
      $region62: #{detection_loss.3} parent=55 // pred_check_branch
        %605 = sbr.rel (%p603) target = $region64
      $region63: #{detection_loss.3} parent=55 // pred_region
        %p606 = scmp.lt.s32.totalorder %s24, 1
        %s607 = scalar_select %p606, %s24, 1
        %s608 = smul.addr %s607, 8
        %s609 = scalar_lea.vmem %s6, %s608
      $region64: #{detection_loss.3} parent=55 // pred_fallthru
        _
    $region56: #{detection_loss.3} parent=5 // pred_fallthru
      _
  $region6: #{detection_loss.3} parent=0 // loop_footer
    %s17 = sadd.s32 1, %s13
  $region7: #{detection_loss.3} parent=0 // loop_footer_branch
    %12 = sbr.rel target = $region3
  $region8: #{detection_loss.3} parent=0 // loop_exit
    _

</llo_original>
